<compile_context>
chip_gen: v7x
topology: tpu7x:2x2x1
jax: 0.10.0
libtpu: 0.0.40
codegen_flags: <defaults>
</compile_context>

<pallas_src>
import functools

import numpy as np
import jax
import jax.numpy as jnp
from jax.experimental import pallas as pl
from jax.experimental.pallas import tpu as pltpu


# ----------------------------------------------------------------------------
# Host-side (one-time) packing of torch-layout params into MXU operands.
# ----------------------------------------------------------------------------
def _round_up(x, m):
    return (x + m - 1) // m * m


def _deconv_phase_weights(w_t):
    """ConvTranspose2d(k=5, s=2, p=2, op=1) -> 4 stacked phase weight matrices.

    w_t: torch layout (Cin, Cout, 5, 5) (already sliced to one input-channel
    group).  Returns (4*Cout, 9*Cin): phase p = 2*ph + pw (output row/col
    parity) occupies rows [p*Cout, (p+1)*Cout); column (th*3 + tw)*Cin + ci
    multiplies the 3x3 im2col tap (th, tw) of the pad-1 padded (UNdilated)
    input."""
    Cin, Cout = w_t.shape[:2]
    W_all = np.zeros((4, Cout, 9 * Cin), np.float32)
    for ph in range(2):
        for pw in range(2):
            p = 2 * ph + pw
            for th in range(3):
                kh = ph + 4 - 2 * th          # kernel row hit by this tap
                if not 0 <= kh < 5:
                    continue
                for tw in range(3):
                    kw = pw + 4 - 2 * tw
                    if not 0 <= kw < 5:
                        continue
                    t = th * 3 + tw
                    W_all[p, :, t * Cin:(t + 1) * Cin] = w_t[:, :, kh, kw].T
            # bias handled as a separate broadcast add in the kernel
    return W_all.reshape(4 * Cout, 9 * Cin)


def _conv3x3_weights(w):
    """Conv2d 3x3 torch weights (Cout, Cin, 3, 3) -> (Cout, 9*Cin)."""
    Cout, Cin = w.shape[:2]
    Wm = np.zeros((Cout, 9 * Cin), np.float32)
    for kh in range(3):
        for kw in range(3):
            t = kh * 3 + kw
            Wm[:, t * Cin:(t + 1) * Cin] = w[:, :, kh, kw]
    return Wm


def _winterleave_mat(W):
    """Per-row stride-2 interleave + pad-1 column routing.

    Shape (W, 2*(2W+2)); left half routes column-phase pw=0 (j -> 2j+1),
    right half routes pw=1 (j -> 2j+2).  Exactly representable in bf16."""
    P = 2 * W + 2
    S = np.zeros((W, 2 * P), np.float32)
    for j in range(W):
        S[j, 2 * j + 1] = 1.0            # pw = 0
        S[j, P + 2 * j + 2] = 1.0        # pw = 1
    return S


def _junk_col_mask(H, W):
    """Mask (1, L) zeroing the 2 pitch-slack columns of every pitched row."""
    Wp = W + 2
    L = (H - 1) * Wp + W
    m = np.zeros((1, L), np.float32)
    for j in range(L):
        if (j % Wp) < W:
            m[0, j] = 1.0
    return m


def pack_params(params, H0, W0, compute_dtype=jnp.bfloat16):
    """One-time packing of torch-layout params into MXU-friendly operands."""
    f = lambda a: np.asarray(a, np.float32)
    di = params["up0_w"].shape[0] // 2
    dm = params["up0_w"].shape[1]
    do = params["lo1_w"].shape[0] // 2
    do_pad = _round_up(do, 8)
    H2, W2 = 4 * H0, 4 * W0

    up0w = f(params["up0_w"])
    lo0w = f(params["lo0_w"])

    # last conv: pad each output-channel half (mean / scale) to a multiple of 8
    w_lo1 = _conv3x3_weights(f(params["lo1_w"]))
    w_lo1_pad = np.zeros((2 * do_pad, w_lo1.shape[1]), np.float32)
    w_lo1_pad[:do] = w_lo1[:do]
    w_lo1_pad[do_pad:do_pad + do] = w_lo1[do:]
    b_lo1 = f(params["lo1_b"])
    b_lo1_pad = np.zeros((2 * do_pad, 1), np.float32)
    b_lo1_pad[:do, 0] = b_lo1[:do]
    b_lo1_pad[do_pad:do_pad + do, 0] = b_lo1[do:]

    packed = dict(
        # upper deconv 0, split by input-channel group (hyper / flow_hyper)
        w_up0_h=_deconv_phase_weights(up0w[:di]),
        w_up0_f=_deconv_phase_weights(up0w[di:]),
        b_up0=np.tile(f(params["up0_b"]), 4)[:, None],
        s_up0=_winterleave_mat(W0),
        # upper deconv 1
        w_up1=_deconv_phase_weights(f(params["up1_w"])),
        b_up1=np.tile(f(params["up1_b"]), 4)[:, None],
        s_up1=_winterleave_mat(2 * W0),
        # lower conv 0, split by input-channel group (upper output / flow)
        w_lo0_a=_conv3x3_weights(lo0w[:, :dm]),
        w_lo0_f=_conv3x3_weights(lo0w[:, dm:]),
        b_lo0=f(params["lo0_b"])[:, None],
        mask_lo=_junk_col_mask(H2, W2),
        # lower conv 1 (mean|scale halves padded to do_pad rows each)
        w_lo1=w_lo1_pad,
        b_lo1=b_lo1_pad,
    )
    matmul_operands = {"w_up0_h", "w_up0_f", "s_up0", "w_up1", "s_up1",
                       "w_lo0_a", "w_lo0_f", "w_lo1"}
    return {k: jnp.asarray(v, compute_dtype if k in matmul_operands
                           else jnp.float32)
            for k, v in packed.items()}


# ----------------------------------------------------------------------------
# Fused Pallas kernel: whole decoder, batch_tile image(s) per grid step.
# ----------------------------------------------------------------------------
def _decoder_kernel(hyp_ref, fhyp_ref, flow_ref,
                    wu0h_ref, wu0f_ref, bu0_ref, s0_ref,
                    wu1_ref, bu1_ref, s1_ref,
                    wl0a_ref, wl0f_ref, bl0_ref, mask_ref,
                    wl1_ref, bl1_ref,
                    mean_ref, scale_ref,
                    *, dim_mid, do_pad, H0, W0, batch_tile):
    f32 = jnp.float32
    cdt = wu0h_ref.dtype                     # MXU compute dtype (bf16)
    H1, W1 = 2 * H0, 2 * W0
    H2, W2 = 4 * H0, 4 * W0

    def pad_contig(x, H, W):
        """(C, H*W) contiguous rows -> zero-padded pitched flat
        (C, (H+2)*(W+2)) via lane-chunk concat (no scatter matmul)."""
        Wp = W + 2
        C = x.shape[0]
        big = jnp.zeros((C, Wp + 1), cdt)
        two = jnp.zeros((C, 2), cdt)
        chunks = [big]
        for h in range(H):
            chunks.append(x[:, h * W:(h + 1) * W])
            chunks.append(two if h < H - 1 else big)
        return jnp.concatenate(chunks, axis=1)

    def im2col(a, H, W):
        """a: (C, (H+2)*(W+2)) padded pitched activation.  Each 3x3 tap is a
        constant lane offset; returns (9*C, L), L = (H-1)*(W+2) + W."""
        Wp = W + 2
        L = (H - 1) * Wp + W
        taps = [a[:, th * Wp + tw: th * Wp + tw + L]
                for th in range(3) for tw in range(3)]
        return jnp.concatenate(taps, axis=0)

    def deconv_place(y, s_ref, H, W):
        """Place the 4 phase blocks of a stride-2 deconv output into the next
        layer's zero-padded pitched flat buffer: per input row, one tiny
        (4C, W)x(W, 2*(2W+2)) matmul interleaves/pads the columns, and the
        concat order interleaves the rows.  Returns (C, (2H+2)*(2W+2))."""
        Cm = dim_mid
        Wp = W + 2
        P = 2 * W + 2
        yc = y.astype(cdt)
        s = s_ref[...]
        zrow = jnp.zeros((Cm, P), cdt)
        chunks = [zrow]
        for h in range(H):
            r = jnp.dot(yc[:, h * Wp:h * Wp + W], s,
                        preferred_element_type=f32)           # (4Cm, 2P)
            z0 = (r[0 * Cm:1 * Cm, :P] + r[1 * Cm:2 * Cm, P:]).astype(cdt)
            z1 = (r[2 * Cm:3 * Cm, :P] + r[3 * Cm:4 * Cm, P:]).astype(cdt)
            chunks.append(z0)                                  # dest row 2h+1
            chunks.append(z1)                                  # dest row 2h+2
        chunks.append(zrow)
        return jnp.concatenate(chunks, axis=1)

    for i in range(batch_tile):
        hyp = hyp_ref[i].astype(cdt)          # (di, H0*W0)
        fhyp = fhyp_ref[i].astype(cdt)
        flow = flow_ref[i].astype(cdt)        # (do, H2*W2)

        # ---- upper deconv 0: split matmul over {hyper, flow_hyper} groups ----
        a_h = pad_contig(hyp, H0, W0)
        a_f = pad_contig(fhyp, H0, W0)
        y = (jnp.dot(wu0h_ref[...], im2col(a_h, H0, W0),
                     preferred_element_type=f32) +
             jnp.dot(wu0f_ref[...], im2col(a_f, H0, W0),
                     preferred_element_type=f32))
        y = jnp.maximum(y + bu0_ref[...], 0.0)                 # bias + ReLU
        a1 = deconv_place(y, s0_ref, H0, W0)                   # (dm, (H1+2)(W1+2))

        # ---- upper deconv 1 ----
        y = jnp.dot(wu1_ref[...], im2col(a1, H1, W1),
                    preferred_element_type=f32)
        y = jnp.maximum(y + bu1_ref[...], 0.0)
        a2 = deconv_place(y, s1_ref, H1, W1)                   # (dm, (H2+2)(W2+2))

        # ---- lower conv 0: split matmul over {upper output, flow} groups ----
        a_fl = pad_contig(flow, H2, W2)
        y = (jnp.dot(wl0a_ref[...], im2col(a2, H2, W2),
                     preferred_element_type=f32) +
             jnp.dot(wl0f_ref[...], im2col(a_fl, H2, W2),
                     preferred_element_type=f32))
        y = jnp.maximum(y + bl0_ref[...], 0.0) * mask_ref[...]  # ReLU + zero junk cols
        Wp2 = W2 + 2
        zpad = jnp.zeros((dim_mid, Wp2 + 1), cdt)
        # junk-zeroed pitched rows ARE the pad pattern of the next buffer
        a3 = jnp.concatenate([zpad, y.astype(cdt), zpad], axis=1)

        # ---- lower conv 1 (no activation) ----
        y = jnp.dot(wl1_ref[...], im2col(a3, H2, W2),
                    preferred_element_type=f32) + bl1_ref[...]  # (2*do_pad, L2)
        # de-pitch: drop the 2 slack columns of every row -> (2*do_pad, H2*W2)
        out = jnp.concatenate([y[:, h * Wp2: h * Wp2 + W2] for h in range(H2)],
                              axis=1)

        # aligned split + LowerBound(scale, 0.11); lane-dense full-block stores
        mean_ref[i] = out[:do_pad].astype(mean_ref.dtype)
        scale_ref[i] = jnp.maximum(out[do_pad:], 0.11).astype(scale_ref.dtype)


def _cost_estimate(B, di, dm, do, do_pad, H0, W0, packed):
    H1, W1, H2, W2 = 2 * H0, 2 * W0, 4 * H0, 4 * W0
    L0 = (H0 - 1) * (W0 + 2) + W0
    L1 = (H1 - 1) * (W1 + 2) + W1
    L2 = (H2 - 1) * (W2 + 2) + W2
    flops = 2 * B * (
        (4 * dm) * (9 * 2 * di) * L0 + H0 * (4 * dm) * W0 * 2 * (2 * W0 + 2) +
        (4 * dm) * (9 * dm) * L1 + H1 * (4 * dm) * W1 * 2 * (2 * W1 + 2) +
        dm * (9 * (dm + do)) * L2 +
        (2 * do_pad) * (9 * dm) * L2)
    io_bytes = 4 * B * (2 * di * H0 * W0 + do * H2 * W2 + 2 * do_pad * H2 * W2)
    w_bytes = sum(int(np.prod(v.shape)) * v.dtype.itemsize
                  for v in packed.values())
    return pl.CostEstimate(flops=flops, transcendentals=0,
                           bytes_accessed=io_bytes + w_bytes)


def hyper_cond_decoder(packed, hyper_latent, flow_latent, flow_hyper_latent,
                       *, batch_tile=1):
    """Inputs/outputs are NCHW (PyTorch convention), float32."""
    B, di, H0, W0 = hyper_latent.shape
    _, do, H2, W2 = flow_latent.shape
    assert (H2, W2) == (4 * H0, 4 * W0)
    assert B % batch_tile == 0
    dm = packed["w_up0_h"].shape[0] // 4
    do_pad = packed["w_lo1"].shape[0] // 2
    Bt = batch_tile

    # free (contiguous-trailing-dims) reshapes: NCHW -> (B, C, H*W)
    hyp = hyper_latent.reshape(B, di, H0 * W0)
    fhyp = flow_hyper_latent.reshape(B, di, H0 * W0)
    flow = flow_latent.reshape(B, do, H2 * W2)

    kernel = functools.partial(_decoder_kernel, dim_mid=dm, do_pad=do_pad,
                               H0=H0, W0=W0, batch_tile=Bt)

    names = ["w_up0_h", "w_up0_f", "b_up0", "s_up0",
             "w_up1", "b_up1", "s_up1",
             "w_lo0_a", "w_lo0_f", "b_lo0", "mask_lo",
             "w_lo1", "b_lo1"]
    weights = [packed[k] for k in names]

    def rep_spec(a):                      # grid-invariant (replicated) operand
        n = a.ndim
        return pl.BlockSpec(a.shape, lambda b, n=n: (0,) * n)

    in_specs = [
        pl.BlockSpec((Bt, di, H0 * W0), lambda b: (b, 0, 0)),
        pl.BlockSpec((Bt, di, H0 * W0), lambda b: (b, 0, 0)),
        pl.BlockSpec((Bt, do, H2 * W2), lambda b: (b, 0, 0)),
    ] + [rep_spec(w) for w in weights]

    out_specs = (pl.BlockSpec((Bt, do_pad, H2 * W2), lambda b: (b, 0, 0)),
                 pl.BlockSpec((Bt, do_pad, H2 * W2), lambda b: (b, 0, 0)))
    out_shape = (jax.ShapeDtypeStruct((B, do_pad, H2 * W2), jnp.float32),
                 jax.ShapeDtypeStruct((B, do_pad, H2 * W2), jnp.float32))

    mean_p, scale_p = pl.pallas_call(
        kernel,
        grid=(B // Bt,),
        in_specs=in_specs,
        out_specs=out_specs,
        out_shape=out_shape,
        compiler_params=pltpu.CompilerParams(
            dimension_semantics=("parallel",),
            vmem_limit_bytes=64 * 1024 * 1024),
        cost_estimate=_cost_estimate(B, di, dm, do, do_pad, H0, W0, packed),
    )(hyp, fhyp, flow, *weights)

    mean = mean_p[:, :do].reshape(B, do, H2, W2)
    scale = scale_p[:, :do].reshape(B, do, H2, W2)
    return mean, scale


# ----------------------------------------------------------------------------
# Parameter init (torch layouts) + plain numpy reference of the torch module.
# ----------------------------------------------------------------------------
def init_params(key, dim_in, dim_mid, dim_out):
    ks = jax.random.split(key, 8)
    p = {}
    p["up0_w"] = 0.1 * jax.random.normal(ks[0], (dim_in * 2, dim_mid, 5, 5), jnp.float32)
    p["up0_b"] = 0.1 * jax.random.normal(ks[1], (dim_mid,), jnp.float32)
    p["up1_w"] = 0.1 * jax.random.normal(ks[2], (dim_mid, dim_mid, 5, 5), jnp.float32)
    p["up1_b"] = 0.1 * jax.random.normal(ks[3], (dim_mid,), jnp.float32)
    p["lo0_w"] = 0.1 * jax.random.normal(ks[4], (dim_mid, dim_mid + dim_out, 3, 3), jnp.float32)
    p["lo0_b"] = 0.1 * jax.random.normal(ks[5], (dim_mid,), jnp.float32)
    p["lo1_w"] = 0.1 * jax.random.normal(ks[6], (dim_out * 2, dim_mid, 3, 3), jnp.float32)
    p["lo1_b"] = 0.1 * jax.random.normal(ks[7], (dim_out * 2,), jnp.float32)
    return p


def _ref_conv(x, w, b, pad):
    Cout, Cin, KH, KW = w.shape
    _, H, W = x.shape
    xp = np.pad(x, ((0, 0), (pad, pad), (pad, pad)))
    Ho, Wo = H + 2 * pad - KH + 1, W + 2 * pad - KW + 1
    out = np.zeros((Cout, Ho, Wo), np.float32)
    for kh in range(KH):
        for kw in range(KW):
            out += np.einsum("oc,chw->ohw", w[:, :, kh, kw],
                             xp[:, kh:kh + Ho, kw:kw + Wo])
    return out + b[:, None, None]


def _ref_deconv(x, w_t, b):  # ConvTranspose2d(k=5, s=2, p=2, op=1)
    Cin, Cout, KH, KW = w_t.shape
    _, H, W = x.shape
    xd = np.zeros((Cin, 2 * H, 2 * W), np.float32)
    xd[:, 0:2 * H - 1:2, 0:2 * W - 1:2] = x
    w_eq = w_t[:, :, ::-1, ::-1].transpose(1, 0, 2, 3)
    return _ref_conv(xd, w_eq, b, pad=KH - 1 - 2)


def _ref_forward(params, hyper, flow, fhyper):
    f = lambda a: np.asarray(a, np.float32)
    means, scales = [], []
    for i in range(hyper.shape[0]):
        x = np.concatenate([f(hyper[i]), f(fhyper[i])], axis=0)
        x = np.maximum(_ref_deconv(x, f(params["up0_w"]), f(params["up0_b"])), 0.0)
        x = np.maximum(_ref_deconv(x, f(params["up1_w"]), f(params["up1_b"])), 0.0)
        x = np.concatenate([x, f(flow[i])], axis=0)
        x = np.maximum(_ref_conv(x, f(params["lo0_w"]), f(params["lo0_b"]), 1), 0.0)
        x = _ref_conv(x, f(params["lo1_w"]), f(params["lo1_b"]), 1)
        c = x.shape[0] // 2
        means.append(x[:c])
        scales.append(np.maximum(x[c:], 0.11))
    return np.stack(means), np.stack(scales)


if __name__ == "__main__":
    B, dim_in, dim_mid, dim_out = 2, 4, 8, 4
    H = W = 4  # hyper-latent spatial; flow_latent is 4x (two stride-2 deconvs)

    key = jax.random.PRNGKey(0)
    k1, k2, k3, kp = jax.random.split(key, 4)
    hyper_latent = jax.random.normal(k1, (B, dim_in, H, W), jnp.float32)
    flow_hyper_latent = jax.random.normal(k2, (B, dim_in, H, W), jnp.float32)
    flow_latent = jax.random.normal(k3, (B, dim_out, 4 * H, 4 * W), jnp.float32)
    params = init_params(kp, dim_in, dim_mid, dim_out)

    packed = pack_params(params, H, W)
    fwd = jax.jit(functools.partial(hyper_cond_decoder, packed))
    mean, scale = fwd(hyper_latent, flow_latent, flow_hyper_latent)
    jax.block_until_ready((mean, scale))

    assert mean.shape == (B, dim_out, 4 * H, 4 * W), mean.shape
    assert scale.shape == (B, dim_out, 4 * H, 4 * W), scale.shape
    assert float(scale.min()) >= 0.11 - 1e-6

    # Correctness vs. a plain numpy f32 reference of the torch module (loose
    # tolerance: kernel uses bf16 MXU operands with f32 accumulation).
    ref_mean, ref_scale = _ref_forward(params, np.asarray(hyper_latent),
                                       np.asarray(flow_latent),
                                       np.asarray(flow_hyper_latent))
    np.testing.assert_allclose(np.asarray(mean), ref_mean, rtol=5e-2, atol=5e-2)
    np.testing.assert_allclose(np.asarray(scale), ref_scale, rtol=5e-2, atol=5e-2)
    print("KERNEL_OK")
</pallas_src>

<mosaic_0001>
module attributes {stable_mosaic.version = 11 : i64} {
  func.func @_decoder_kernel(%arg0: i32, %arg1: memref<1x4x16xf32, #tpu.memory_space<vmem>>, %arg2: memref<1x4x16xf32, #tpu.memory_space<vmem>>, %arg3: memref<1x4x256xf32, #tpu.memory_space<vmem>>, %arg4: memref<32x36xbf16, #tpu.memory_space<vmem>>, %arg5: memref<32x36xbf16, #tpu.memory_space<vmem>>, %arg6: memref<32x1xf32, #tpu.memory_space<vmem>>, %arg7: memref<4x20xbf16, #tpu.memory_space<vmem>>, %arg8: memref<32x72xbf16, #tpu.memory_space<vmem>>, %arg9: memref<32x1xf32, #tpu.memory_space<vmem>>, %arg10: memref<8x36xbf16, #tpu.memory_space<vmem>>, %arg11: memref<8x72xbf16, #tpu.memory_space<vmem>>, %arg12: memref<8x36xbf16, #tpu.memory_space<vmem>>, %arg13: memref<8x1xf32, #tpu.memory_space<vmem>>, %arg14: memref<1x286xf32, #tpu.memory_space<vmem>>, %arg15: memref<16x72xbf16, #tpu.memory_space<vmem>>, %arg16: memref<16x1xf32, #tpu.memory_space<vmem>>, %arg17: memref<1x8x256xf32, #tpu.memory_space<vmem>>, %arg18: memref<1x8x256xf32, #tpu.memory_space<vmem>>) attributes {dimension_semantics = [#tpu.dimension_semantics<parallel>], iteration_bounds = array<i64: 2>, scalar_prefetch = 0 : i64, scratch_operands = 0 : i64, tpu.core_type = #tpu.core_type<tc>, window_params = [{transform_indices = @transform_0, window_bounds = array<i64: 1, 4, 16>}, {transform_indices = @transform_1, window_bounds = array<i64: 1, 4, 16>}, {transform_indices = @transform_2, window_bounds = array<i64: 1, 4, 256>}, {pipeline_mode = #tpu.pipeline_mode<synchronous>, transform_indices = @transform_3, window_bounds = array<i64: 32, 36>}, {pipeline_mode = #tpu.pipeline_mode<synchronous>, transform_indices = @transform_4, window_bounds = array<i64: 32, 36>}, {pipeline_mode = #tpu.pipeline_mode<synchronous>, transform_indices = @transform_5, window_bounds = array<i64: 32, 1>}, {pipeline_mode = #tpu.pipeline_mode<synchronous>, transform_indices = @transform_6, window_bounds = array<i64: 4, 20>}, {pipeline_mode = #tpu.pipeline_mode<synchronous>, transform_indices = @transform_7, window_bounds = array<i64: 32, 72>}, {pipeline_mode = #tpu.pipeline_mode<synchronous>, transform_indices = @transform_8, window_bounds = array<i64: 32, 1>}, {pipeline_mode = #tpu.pipeline_mode<synchronous>, transform_indices = @transform_9, window_bounds = array<i64: 8, 36>}, {pipeline_mode = #tpu.pipeline_mode<synchronous>, transform_indices = @transform_10, window_bounds = array<i64: 8, 72>}, {pipeline_mode = #tpu.pipeline_mode<synchronous>, transform_indices = @transform_11, window_bounds = array<i64: 8, 36>}, {pipeline_mode = #tpu.pipeline_mode<synchronous>, transform_indices = @transform_12, window_bounds = array<i64: 8, 1>}, {pipeline_mode = #tpu.pipeline_mode<synchronous>, transform_indices = @transform_13, window_bounds = array<i64: 1, 286>}, {pipeline_mode = #tpu.pipeline_mode<synchronous>, transform_indices = @transform_14, window_bounds = array<i64: 16, 72>}, {pipeline_mode = #tpu.pipeline_mode<synchronous>, transform_indices = @transform_15, window_bounds = array<i64: 16, 1>}, {transform_indices = @transform_16, window_bounds = array<i64: 1, 8, 256>}, {transform_indices = @transform_17, window_bounds = array<i64: 1, 8, 256>}]} {
    %c0 = arith.constant 0 : index
    %c0_0 = arith.constant 0 : index
    %c0_1 = arith.constant 0 : index
    %0 = vector.load %arg1[%c0, %c0_0, %c0_1] : memref<1x4x16xf32, #tpu.memory_space<vmem>>, vector<1x4x16xf32>
    %1 = vector.shape_cast %0 : vector<1x4x16xf32> to vector<4x16xf32>
    %2 = arith.truncf %1 : vector<4x16xf32> to vector<4x16xbf16>
    %c0_2 = arith.constant 0 : index
    %c0_3 = arith.constant 0 : index
    %c0_4 = arith.constant 0 : index
    %3 = vector.load %arg2[%c0_2, %c0_3, %c0_4] : memref<1x4x16xf32, #tpu.memory_space<vmem>>, vector<1x4x16xf32>
    %4 = vector.shape_cast %3 : vector<1x4x16xf32> to vector<4x16xf32>
    %5 = arith.truncf %4 : vector<4x16xf32> to vector<4x16xbf16>
    %c0_5 = arith.constant 0 : index
    %c0_6 = arith.constant 0 : index
    %c0_7 = arith.constant 0 : index
    %6 = vector.load %arg3[%c0_5, %c0_6, %c0_7] : memref<1x4x256xf32, #tpu.memory_space<vmem>>, vector<1x4x256xf32>
    %7 = vector.shape_cast %6 : vector<1x4x256xf32> to vector<4x256xf32>
    %8 = arith.truncf %7 : vector<4x256xf32> to vector<4x256xbf16>
    %cst = arith.constant 0.000000e+00 : bf16
    %9 = vector.broadcast %cst : bf16 to vector<4x7xbf16>
    %cst_8 = arith.constant 0.000000e+00 : bf16
    %10 = vector.broadcast %cst_8 : bf16 to vector<4x2xbf16>
    %11 = vector.extract_strided_slice %2 {offsets = [0, 0], sizes = [4, 4], strides = [1, 1]} : vector<4x16xbf16> to vector<4x4xbf16>
    %12 = vector.extract_strided_slice %2 {offsets = [0, 4], sizes = [4, 4], strides = [1, 1]} : vector<4x16xbf16> to vector<4x4xbf16>
    %13 = vector.extract_strided_slice %2 {offsets = [0, 8], sizes = [4, 4], strides = [1, 1]} : vector<4x16xbf16> to vector<4x4xbf16>
    %14 = vector.extract_strided_slice %2 {offsets = [0, 12], sizes = [4, 4], strides = [1, 1]} : vector<4x16xbf16> to vector<4x4xbf16>
    %15 = tpu.concatenate %9, %11, %10, %12, %10, %13, %10, %14, %9 in 1 : vector<4x7xbf16>, vector<4x4xbf16>, vector<4x2xbf16>, vector<4x4xbf16>, vector<4x2xbf16>, vector<4x4xbf16>, vector<4x2xbf16>, vector<4x4xbf16>, vector<4x7xbf16> -> vector<4x36xbf16>
    %cst_9 = arith.constant 0.000000e+00 : bf16
    %16 = vector.broadcast %cst_9 : bf16 to vector<4x7xbf16>
    %cst_10 = arith.constant 0.000000e+00 : bf16
    %17 = vector.broadcast %cst_10 : bf16 to vector<4x2xbf16>
    %18 = vector.extract_strided_slice %5 {offsets = [0, 0], sizes = [4, 4], strides = [1, 1]} : vector<4x16xbf16> to vector<4x4xbf16>
    %19 = vector.extract_strided_slice %5 {offsets = [0, 4], sizes = [4, 4], strides = [1, 1]} : vector<4x16xbf16> to vector<4x4xbf16>
    %20 = vector.extract_strided_slice %5 {offsets = [0, 8], sizes = [4, 4], strides = [1, 1]} : vector<4x16xbf16> to vector<4x4xbf16>
    %21 = vector.extract_strided_slice %5 {offsets = [0, 12], sizes = [4, 4], strides = [1, 1]} : vector<4x16xbf16> to vector<4x4xbf16>
    %22 = tpu.concatenate %16, %18, %17, %19, %17, %20, %17, %21, %16 in 1 : vector<4x7xbf16>, vector<4x4xbf16>, vector<4x2xbf16>, vector<4x4xbf16>, vector<4x2xbf16>, vector<4x4xbf16>, vector<4x2xbf16>, vector<4x4xbf16>, vector<4x7xbf16> -> vector<4x36xbf16>
    %c0_11 = arith.constant 0 : index
    %c0_12 = arith.constant 0 : index
    %23 = vector.load %arg4[%c0_11, %c0_12] : memref<32x36xbf16, #tpu.memory_space<vmem>>, vector<32x36xbf16>
    %24 = vector.extract_strided_slice %15 {offsets = [0, 0], sizes = [4, 22], strides = [1, 1]} : vector<4x36xbf16> to vector<4x22xbf16>
    %25 = vector.extract_strided_slice %15 {offsets = [0, 1], sizes = [4, 22], strides = [1, 1]} : vector<4x36xbf16> to vector<4x22xbf16>
    %26 = vector.extract_strided_slice %15 {offsets = [0, 2], sizes = [4, 22], strides = [1, 1]} : vector<4x36xbf16> to vector<4x22xbf16>
    %27 = vector.extract_strided_slice %15 {offsets = [0, 6], sizes = [4, 22], strides = [1, 1]} : vector<4x36xbf16> to vector<4x22xbf16>
    %28 = vector.extract_strided_slice %15 {offsets = [0, 7], sizes = [4, 22], strides = [1, 1]} : vector<4x36xbf16> to vector<4x22xbf16>
    %29 = vector.extract_strided_slice %15 {offsets = [0, 8], sizes = [4, 22], strides = [1, 1]} : vector<4x36xbf16> to vector<4x22xbf16>
    %30 = vector.extract_strided_slice %15 {offsets = [0, 12], sizes = [4, 22], strides = [1, 1]} : vector<4x36xbf16> to vector<4x22xbf16>
    %31 = vector.extract_strided_slice %15 {offsets = [0, 13], sizes = [4, 22], strides = [1, 1]} : vector<4x36xbf16> to vector<4x22xbf16>
    %32 = vector.extract_strided_slice %15 {offsets = [0, 14], sizes = [4, 22], strides = [1, 1]} : vector<4x36xbf16> to vector<4x22xbf16>
    %33 = tpu.concatenate %24, %25, %26, %27, %28, %29, %30, %31, %32 in 0 : vector<4x22xbf16>, vector<4x22xbf16>, vector<4x22xbf16>, vector<4x22xbf16>, vector<4x22xbf16>, vector<4x22xbf16>, vector<4x22xbf16>, vector<4x22xbf16>, vector<4x22xbf16> -> vector<36x22xbf16>
    %cst_13 = arith.constant dense<0.000000e+00> : vector<32x22xf32>
    %34 = tpu.matmul %23, %33, %cst_13 {dimension_numbers = #tpu.dot_dimension_numbers<[1], [0], [0], [1], [0, 0, 1, 1], [], []>} : vector<32x36xbf16>, vector<36x22xbf16>, vector<32x22xf32> -> vector<32x22xf32>
    %c0_14 = arith.constant 0 : index
    %c0_15 = arith.constant 0 : index
    %35 = vector.load %arg5[%c0_14, %c0_15] : memref<32x36xbf16, #tpu.memory_space<vmem>>, vector<32x36xbf16>
    %36 = vector.extract_strided_slice %22 {offsets = [0, 0], sizes = [4, 22], strides = [1, 1]} : vector<4x36xbf16> to vector<4x22xbf16>
    %37 = vector.extract_strided_slice %22 {offsets = [0, 1], sizes = [4, 22], strides = [1, 1]} : vector<4x36xbf16> to vector<4x22xbf16>
    %38 = vector.extract_strided_slice %22 {offsets = [0, 2], sizes = [4, 22], strides = [1, 1]} : vector<4x36xbf16> to vector<4x22xbf16>
    %39 = vector.extract_strided_slice %22 {offsets = [0, 6], sizes = [4, 22], strides = [1, 1]} : vector<4x36xbf16> to vector<4x22xbf16>
    %40 = vector.extract_strided_slice %22 {offsets = [0, 7], sizes = [4, 22], strides = [1, 1]} : vector<4x36xbf16> to vector<4x22xbf16>
    %41 = vector.extract_strided_slice %22 {offsets = [0, 8], sizes = [4, 22], strides = [1, 1]} : vector<4x36xbf16> to vector<4x22xbf16>
    %42 = vector.extract_strided_slice %22 {offsets = [0, 12], sizes = [4, 22], strides = [1, 1]} : vector<4x36xbf16> to vector<4x22xbf16>
    %43 = vector.extract_strided_slice %22 {offsets = [0, 13], sizes = [4, 22], strides = [1, 1]} : vector<4x36xbf16> to vector<4x22xbf16>
    %44 = vector.extract_strided_slice %22 {offsets = [0, 14], sizes = [4, 22], strides = [1, 1]} : vector<4x36xbf16> to vector<4x22xbf16>
    %45 = tpu.concatenate %36, %37, %38, %39, %40, %41, %42, %43, %44 in 0 : vector<4x22xbf16>, vector<4x22xbf16>, vector<4x22xbf16>, vector<4x22xbf16>, vector<4x22xbf16>, vector<4x22xbf16>, vector<4x22xbf16>, vector<4x22xbf16>, vector<4x22xbf16> -> vector<36x22xbf16>
    %cst_16 = arith.constant dense<0.000000e+00> : vector<32x22xf32>
    %46 = tpu.matmul %35, %45, %cst_16 {dimension_numbers = #tpu.dot_dimension_numbers<[1], [0], [0], [1], [0, 0, 1, 1], [], []>} : vector<32x36xbf16>, vector<36x22xbf16>, vector<32x22xf32> -> vector<32x22xf32>
    %47 = arith.addf %34, %46 : vector<32x22xf32>
    %c0_17 = arith.constant 0 : index
    %c0_18 = arith.constant 0 : index
    %48 = vector.load %arg6[%c0_17, %c0_18] : memref<32x1xf32, #tpu.memory_space<vmem>>, vector<32x1xf32>
    %49 = vector.broadcast %48 : vector<32x1xf32> to vector<32x22xf32>
    %50 = arith.addf %47, %49 : vector<32x22xf32>
    %cst_19 = arith.constant 0.000000e+00 : f32
    %51 = vector.broadcast %cst_19 : f32 to vector<32x22xf32>
    %52 = arith.maximumf %50, %51 : vector<32x22xf32>
    %53 = arith.truncf %52 : vector<32x22xf32> to vector<32x22xbf16>
    %c0_20 = arith.constant 0 : index
    %c0_21 = arith.constant 0 : index
    %54 = vector.load %arg7[%c0_20, %c0_21] : memref<4x20xbf16, #tpu.memory_space<vmem>>, vector<4x20xbf16>
    %cst_22 = arith.constant 0.000000e+00 : bf16
    %55 = vector.broadcast %cst_22 : bf16 to vector<8x10xbf16>
    %56 = vector.extract_strided_slice %53 {offsets = [0, 0], sizes = [32, 4], strides = [1, 1]} : vector<32x22xbf16> to vector<32x4xbf16>
    %cst_23 = arith.constant dense<0.000000e+00> : vector<32x20xf32>
    %57 = tpu.matmul %56, %54, %cst_23 {dimension_numbers = #tpu.dot_dimension_numbers<[1], [0], [0], [1], [0, 0, 1, 1], [], []>} : vector<32x4xbf16>, vector<4x20xbf16>, vector<32x20xf32> -> vector<32x20xf32>
    %58 = vector.extract_strided_slice %57 {offsets = [0, 0], sizes = [8, 10], strides = [1, 1]} : vector<32x20xf32> to vector<8x10xf32>
    %59 = vector.extract_strided_slice %57 {offsets = [8, 10], sizes = [8, 10], strides = [1, 1]} : vector<32x20xf32> to vector<8x10xf32>
    %60 = arith.addf %58, %59 : vector<8x10xf32>
    %61 = arith.truncf %60 : vector<8x10xf32> to vector<8x10xbf16>
    %62 = vector.extract_strided_slice %57 {offsets = [16, 0], sizes = [8, 10], strides = [1, 1]} : vector<32x20xf32> to vector<8x10xf32>
    %63 = vector.extract_strided_slice %57 {offsets = [24, 10], sizes = [8, 10], strides = [1, 1]} : vector<32x20xf32> to vector<8x10xf32>
    %64 = arith.addf %62, %63 : vector<8x10xf32>
    %65 = arith.truncf %64 : vector<8x10xf32> to vector<8x10xbf16>
    %66 = vector.extract_strided_slice %53 {offsets = [0, 6], sizes = [32, 4], strides = [1, 1]} : vector<32x22xbf16> to vector<32x4xbf16>
    %cst_24 = arith.constant dense<0.000000e+00> : vector<32x20xf32>
    %67 = tpu.matmul %66, %54, %cst_24 {dimension_numbers = #tpu.dot_dimension_numbers<[1], [0], [0], [1], [0, 0, 1, 1], [], []>} : vector<32x4xbf16>, vector<4x20xbf16>, vector<32x20xf32> -> vector<32x20xf32>
    %68 = vector.extract_strided_slice %67 {offsets = [0, 0], sizes = [8, 10], strides = [1, 1]} : vector<32x20xf32> to vector<8x10xf32>
    %69 = vector.extract_strided_slice %67 {offsets = [8, 10], sizes = [8, 10], strides = [1, 1]} : vector<32x20xf32> to vector<8x10xf32>
    %70 = arith.addf %68, %69 : vector<8x10xf32>
    %71 = arith.truncf %70 : vector<8x10xf32> to vector<8x10xbf16>
    %72 = vector.extract_strided_slice %67 {offsets = [16, 0], sizes = [8, 10], strides = [1, 1]} : vector<32x20xf32> to vector<8x10xf32>
    %73 = vector.extract_strided_slice %67 {offsets = [24, 10], sizes = [8, 10], strides = [1, 1]} : vector<32x20xf32> to vector<8x10xf32>
    %74 = arith.addf %72, %73 : vector<8x10xf32>
    %75 = arith.truncf %74 : vector<8x10xf32> to vector<8x10xbf16>
    %76 = vector.extract_strided_slice %53 {offsets = [0, 12], sizes = [32, 4], strides = [1, 1]} : vector<32x22xbf16> to vector<32x4xbf16>
    %cst_25 = arith.constant dense<0.000000e+00> : vector<32x20xf32>
    %77 = tpu.matmul %76, %54, %cst_25 {dimension_numbers = #tpu.dot_dimension_numbers<[1], [0], [0], [1], [0, 0, 1, 1], [], []>} : vector<32x4xbf16>, vector<4x20xbf16>, vector<32x20xf32> -> vector<32x20xf32>
    %78 = vector.extract_strided_slice %77 {offsets = [0, 0], sizes = [8, 10], strides = [1, 1]} : vector<32x20xf32> to vector<8x10xf32>
    %79 = vector.extract_strided_slice %77 {offsets = [8, 10], sizes = [8, 10], strides = [1, 1]} : vector<32x20xf32> to vector<8x10xf32>
    %80 = arith.addf %78, %79 : vector<8x10xf32>
    %81 = arith.truncf %80 : vector<8x10xf32> to vector<8x10xbf16>
    %82 = vector.extract_strided_slice %77 {offsets = [16, 0], sizes = [8, 10], strides = [1, 1]} : vector<32x20xf32> to vector<8x10xf32>
    %83 = vector.extract_strided_slice %77 {offsets = [24, 10], sizes = [8, 10], strides = [1, 1]} : vector<32x20xf32> to vector<8x10xf32>
    %84 = arith.addf %82, %83 : vector<8x10xf32>
    %85 = arith.truncf %84 : vector<8x10xf32> to vector<8x10xbf16>
    %86 = vector.extract_strided_slice %53 {offsets = [0, 18], sizes = [32, 4], strides = [1, 1]} : vector<32x22xbf16> to vector<32x4xbf16>
    %cst_26 = arith.constant dense<0.000000e+00> : vector<32x20xf32>
    %87 = tpu.matmul %86, %54, %cst_26 {dimension_numbers = #tpu.dot_dimension_numbers<[1], [0], [0], [1], [0, 0, 1, 1], [], []>} : vector<32x4xbf16>, vector<4x20xbf16>, vector<32x20xf32> -> vector<32x20xf32>
    %88 = vector.extract_strided_slice %87 {offsets = [0, 0], sizes = [8, 10], strides = [1, 1]} : vector<32x20xf32> to vector<8x10xf32>
    %89 = vector.extract_strided_slice %87 {offsets = [8, 10], sizes = [8, 10], strides = [1, 1]} : vector<32x20xf32> to vector<8x10xf32>
    %90 = arith.addf %88, %89 : vector<8x10xf32>
    %91 = arith.truncf %90 : vector<8x10xf32> to vector<8x10xbf16>
    %92 = vector.extract_strided_slice %87 {offsets = [16, 0], sizes = [8, 10], strides = [1, 1]} : vector<32x20xf32> to vector<8x10xf32>
    %93 = vector.extract_strided_slice %87 {offsets = [24, 10], sizes = [8, 10], strides = [1, 1]} : vector<32x20xf32> to vector<8x10xf32>
    %94 = arith.addf %92, %93 : vector<8x10xf32>
    %95 = arith.truncf %94 : vector<8x10xf32> to vector<8x10xbf16>
    %96 = tpu.concatenate %55, %61, %65, %71, %75, %81, %85, %91, %95, %55 in 1 : vector<8x10xbf16>, vector<8x10xbf16>, vector<8x10xbf16>, vector<8x10xbf16>, vector<8x10xbf16>, vector<8x10xbf16>, vector<8x10xbf16>, vector<8x10xbf16>, vector<8x10xbf16>, vector<8x10xbf16> -> vector<8x100xbf16>
    %c0_27 = arith.constant 0 : index
    %c0_28 = arith.constant 0 : index
    %97 = vector.load %arg8[%c0_27, %c0_28] : memref<32x72xbf16, #tpu.memory_space<vmem>>, vector<32x72xbf16>
    %98 = vector.extract_strided_slice %96 {offsets = [0, 0], sizes = [8, 78], strides = [1, 1]} : vector<8x100xbf16> to vector<8x78xbf16>
    %99 = vector.extract_strided_slice %96 {offsets = [0, 1], sizes = [8, 78], strides = [1, 1]} : vector<8x100xbf16> to vector<8x78xbf16>
    %100 = vector.extract_strided_slice %96 {offsets = [0, 2], sizes = [8, 78], strides = [1, 1]} : vector<8x100xbf16> to vector<8x78xbf16>
    %101 = vector.extract_strided_slice %96 {offsets = [0, 10], sizes = [8, 78], strides = [1, 1]} : vector<8x100xbf16> to vector<8x78xbf16>
    %102 = vector.extract_strided_slice %96 {offsets = [0, 11], sizes = [8, 78], strides = [1, 1]} : vector<8x100xbf16> to vector<8x78xbf16>
    %103 = vector.extract_strided_slice %96 {offsets = [0, 12], sizes = [8, 78], strides = [1, 1]} : vector<8x100xbf16> to vector<8x78xbf16>
    %104 = vector.extract_strided_slice %96 {offsets = [0, 20], sizes = [8, 78], strides = [1, 1]} : vector<8x100xbf16> to vector<8x78xbf16>
    %105 = vector.extract_strided_slice %96 {offsets = [0, 21], sizes = [8, 78], strides = [1, 1]} : vector<8x100xbf16> to vector<8x78xbf16>
    %106 = vector.extract_strided_slice %96 {offsets = [0, 22], sizes = [8, 78], strides = [1, 1]} : vector<8x100xbf16> to vector<8x78xbf16>
    %107 = tpu.concatenate %98, %99, %100, %101, %102, %103, %104, %105, %106 in 0 : vector<8x78xbf16>, vector<8x78xbf16>, vector<8x78xbf16>, vector<8x78xbf16>, vector<8x78xbf16>, vector<8x78xbf16>, vector<8x78xbf16>, vector<8x78xbf16>, vector<8x78xbf16> -> vector<72x78xbf16>
    %cst_29 = arith.constant dense<0.000000e+00> : vector<32x78xf32>
    %108 = tpu.matmul %97, %107, %cst_29 {dimension_numbers = #tpu.dot_dimension_numbers<[1], [0], [0], [1], [0, 0, 1, 1], [], []>} : vector<32x72xbf16>, vector<72x78xbf16>, vector<32x78xf32> -> vector<32x78xf32>
    %c0_30 = arith.constant 0 : index
    %c0_31 = arith.constant 0 : index
    %109 = vector.load %arg9[%c0_30, %c0_31] : memref<32x1xf32, #tpu.memory_space<vmem>>, vector<32x1xf32>
    %110 = vector.broadcast %109 : vector<32x1xf32> to vector<32x78xf32>
    %111 = arith.addf %108, %110 : vector<32x78xf32>
    %cst_32 = arith.constant 0.000000e+00 : f32
    %112 = vector.broadcast %cst_32 : f32 to vector<32x78xf32>
    %113 = arith.maximumf %111, %112 : vector<32x78xf32>
    %114 = arith.truncf %113 : vector<32x78xf32> to vector<32x78xbf16>
    %c0_33 = arith.constant 0 : index
    %c0_34 = arith.constant 0 : index
    %115 = vector.load %arg10[%c0_33, %c0_34] : memref<8x36xbf16, #tpu.memory_space<vmem>>, vector<8x36xbf16>
    %cst_35 = arith.constant 0.000000e+00 : bf16
    %116 = vector.broadcast %cst_35 : bf16 to vector<8x18xbf16>
    %117 = vector.extract_strided_slice %114 {offsets = [0, 0], sizes = [32, 8], strides = [1, 1]} : vector<32x78xbf16> to vector<32x8xbf16>
    %cst_36 = arith.constant dense<0.000000e+00> : vector<32x36xf32>
    %118 = tpu.matmul %117, %115, %cst_36 {dimension_numbers = #tpu.dot_dimension_numbers<[1], [0], [0], [1], [0, 0, 1, 1], [], []>} : vector<32x8xbf16>, vector<8x36xbf16>, vector<32x36xf32> -> vector<32x36xf32>
    %119 = vector.extract_strided_slice %118 {offsets = [0, 0], sizes = [8, 18], strides = [1, 1]} : vector<32x36xf32> to vector<8x18xf32>
    %120 = vector.extract_strided_slice %118 {offsets = [8, 18], sizes = [8, 18], strides = [1, 1]} : vector<32x36xf32> to vector<8x18xf32>
    %121 = arith.addf %119, %120 : vector<8x18xf32>
    %122 = arith.truncf %121 : vector<8x18xf32> to vector<8x18xbf16>
    %123 = vector.extract_strided_slice %118 {offsets = [16, 0], sizes = [8, 18], strides = [1, 1]} : vector<32x36xf32> to vector<8x18xf32>
    %124 = vector.extract_strided_slice %118 {offsets = [24, 18], sizes = [8, 18], strides = [1, 1]} : vector<32x36xf32> to vector<8x18xf32>
    %125 = arith.addf %123, %124 : vector<8x18xf32>
    %126 = arith.truncf %125 : vector<8x18xf32> to vector<8x18xbf16>
    %127 = vector.extract_strided_slice %114 {offsets = [0, 10], sizes = [32, 8], strides = [1, 1]} : vector<32x78xbf16> to vector<32x8xbf16>
    %cst_37 = arith.constant dense<0.000000e+00> : vector<32x36xf32>
    %128 = tpu.matmul %127, %115, %cst_37 {dimension_numbers = #tpu.dot_dimension_numbers<[1], [0], [0], [1], [0, 0, 1, 1], [], []>} : vector<32x8xbf16>, vector<8x36xbf16>, vector<32x36xf32> -> vector<32x36xf32>
    %129 = vector.extract_strided_slice %128 {offsets = [0, 0], sizes = [8, 18], strides = [1, 1]} : vector<32x36xf32> to vector<8x18xf32>
    %130 = vector.extract_strided_slice %128 {offsets = [8, 18], sizes = [8, 18], strides = [1, 1]} : vector<32x36xf32> to vector<8x18xf32>
    %131 = arith.addf %129, %130 : vector<8x18xf32>
    %132 = arith.truncf %131 : vector<8x18xf32> to vector<8x18xbf16>
    %133 = vector.extract_strided_slice %128 {offsets = [16, 0], sizes = [8, 18], strides = [1, 1]} : vector<32x36xf32> to vector<8x18xf32>
    %134 = vector.extract_strided_slice %128 {offsets = [24, 18], sizes = [8, 18], strides = [1, 1]} : vector<32x36xf32> to vector<8x18xf32>
    %135 = arith.addf %133, %134 : vector<8x18xf32>
    %136 = arith.truncf %135 : vector<8x18xf32> to vector<8x18xbf16>
    %137 = vector.extract_strided_slice %114 {offsets = [0, 20], sizes = [32, 8], strides = [1, 1]} : vector<32x78xbf16> to vector<32x8xbf16>
    %cst_38 = arith.constant dense<0.000000e+00> : vector<32x36xf32>
    %138 = tpu.matmul %137, %115, %cst_38 {dimension_numbers = #tpu.dot_dimension_numbers<[1], [0], [0], [1], [0, 0, 1, 1], [], []>} : vector<32x8xbf16>, vector<8x36xbf16>, vector<32x36xf32> -> vector<32x36xf32>
    %139 = vector.extract_strided_slice %138 {offsets = [0, 0], sizes = [8, 18], strides = [1, 1]} : vector<32x36xf32> to vector<8x18xf32>
    %140 = vector.extract_strided_slice %138 {offsets = [8, 18], sizes = [8, 18], strides = [1, 1]} : vector<32x36xf32> to vector<8x18xf32>
    %141 = arith.addf %139, %140 : vector<8x18xf32>
    %142 = arith.truncf %141 : vector<8x18xf32> to vector<8x18xbf16>
    %143 = vector.extract_strided_slice %138 {offsets = [16, 0], sizes = [8, 18], strides = [1, 1]} : vector<32x36xf32> to vector<8x18xf32>
    %144 = vector.extract_strided_slice %138 {offsets = [24, 18], sizes = [8, 18], strides = [1, 1]} : vector<32x36xf32> to vector<8x18xf32>
    %145 = arith.addf %143, %144 : vector<8x18xf32>
    %146 = arith.truncf %145 : vector<8x18xf32> to vector<8x18xbf16>
    %147 = vector.extract_strided_slice %114 {offsets = [0, 30], sizes = [32, 8], strides = [1, 1]} : vector<32x78xbf16> to vector<32x8xbf16>
    %cst_39 = arith.constant dense<0.000000e+00> : vector<32x36xf32>
    %148 = tpu.matmul %147, %115, %cst_39 {dimension_numbers = #tpu.dot_dimension_numbers<[1], [0], [0], [1], [0, 0, 1, 1], [], []>} : vector<32x8xbf16>, vector<8x36xbf16>, vector<32x36xf32> -> vector<32x36xf32>
    %149 = vector.extract_strided_slice %148 {offsets = [0, 0], sizes = [8, 18], strides = [1, 1]} : vector<32x36xf32> to vector<8x18xf32>
    %150 = vector.extract_strided_slice %148 {offsets = [8, 18], sizes = [8, 18], strides = [1, 1]} : vector<32x36xf32> to vector<8x18xf32>
    %151 = arith.addf %149, %150 : vector<8x18xf32>
    %152 = arith.truncf %151 : vector<8x18xf32> to vector<8x18xbf16>
    %153 = vector.extract_strided_slice %148 {offsets = [16, 0], sizes = [8, 18], strides = [1, 1]} : vector<32x36xf32> to vector<8x18xf32>
    %154 = vector.extract_strided_slice %148 {offsets = [24, 18], sizes = [8, 18], strides = [1, 1]} : vector<32x36xf32> to vector<8x18xf32>
    %155 = arith.addf %153, %154 : vector<8x18xf32>
    %156 = arith.truncf %155 : vector<8x18xf32> to vector<8x18xbf16>
    %157 = vector.extract_strided_slice %114 {offsets = [0, 40], sizes = [32, 8], strides = [1, 1]} : vector<32x78xbf16> to vector<32x8xbf16>
    %cst_40 = arith.constant dense<0.000000e+00> : vector<32x36xf32>
    %158 = tpu.matmul %157, %115, %cst_40 {dimension_numbers = #tpu.dot_dimension_numbers<[1], [0], [0], [1], [0, 0, 1, 1], [], []>} : vector<32x8xbf16>, vector<8x36xbf16>, vector<32x36xf32> -> vector<32x36xf32>
    %159 = vector.extract_strided_slice %158 {offsets = [0, 0], sizes = [8, 18], strides = [1, 1]} : vector<32x36xf32> to vector<8x18xf32>
    %160 = vector.extract_strided_slice %158 {offsets = [8, 18], sizes = [8, 18], strides = [1, 1]} : vector<32x36xf32> to vector<8x18xf32>
    %161 = arith.addf %159, %160 : vector<8x18xf32>
    %162 = arith.truncf %161 : vector<8x18xf32> to vector<8x18xbf16>
    %163 = vector.extract_strided_slice %158 {offsets = [16, 0], sizes = [8, 18], strides = [1, 1]} : vector<32x36xf32> to vector<8x18xf32>
    %164 = vector.extract_strided_slice %158 {offsets = [24, 18], sizes = [8, 18], strides = [1, 1]} : vector<32x36xf32> to vector<8x18xf32>
    %165 = arith.addf %163, %164 : vector<8x18xf32>
    %166 = arith.truncf %165 : vector<8x18xf32> to vector<8x18xbf16>
    %167 = vector.extract_strided_slice %114 {offsets = [0, 50], sizes = [32, 8], strides = [1, 1]} : vector<32x78xbf16> to vector<32x8xbf16>
    %cst_41 = arith.constant dense<0.000000e+00> : vector<32x36xf32>
    %168 = tpu.matmul %167, %115, %cst_41 {dimension_numbers = #tpu.dot_dimension_numbers<[1], [0], [0], [1], [0, 0, 1, 1], [], []>} : vector<32x8xbf16>, vector<8x36xbf16>, vector<32x36xf32> -> vector<32x36xf32>
    %169 = vector.extract_strided_slice %168 {offsets = [0, 0], sizes = [8, 18], strides = [1, 1]} : vector<32x36xf32> to vector<8x18xf32>
    %170 = vector.extract_strided_slice %168 {offsets = [8, 18], sizes = [8, 18], strides = [1, 1]} : vector<32x36xf32> to vector<8x18xf32>
    %171 = arith.addf %169, %170 : vector<8x18xf32>
    %172 = arith.truncf %171 : vector<8x18xf32> to vector<8x18xbf16>
    %173 = vector.extract_strided_slice %168 {offsets = [16, 0], sizes = [8, 18], strides = [1, 1]} : vector<32x36xf32> to vector<8x18xf32>
    %174 = vector.extract_strided_slice %168 {offsets = [24, 18], sizes = [8, 18], strides = [1, 1]} : vector<32x36xf32> to vector<8x18xf32>
    %175 = arith.addf %173, %174 : vector<8x18xf32>
    %176 = arith.truncf %175 : vector<8x18xf32> to vector<8x18xbf16>
    %177 = vector.extract_strided_slice %114 {offsets = [0, 60], sizes = [32, 8], strides = [1, 1]} : vector<32x78xbf16> to vector<32x8xbf16>
    %cst_42 = arith.constant dense<0.000000e+00> : vector<32x36xf32>
    %178 = tpu.matmul %177, %115, %cst_42 {dimension_numbers = #tpu.dot_dimension_numbers<[1], [0], [0], [1], [0, 0, 1, 1], [], []>} : vector<32x8xbf16>, vector<8x36xbf16>, vector<32x36xf32> -> vector<32x36xf32>
    %179 = vector.extract_strided_slice %178 {offsets = [0, 0], sizes = [8, 18], strides = [1, 1]} : vector<32x36xf32> to vector<8x18xf32>
    %180 = vector.extract_strided_slice %178 {offsets = [8, 18], sizes = [8, 18], strides = [1, 1]} : vector<32x36xf32> to vector<8x18xf32>
    %181 = arith.addf %179, %180 : vector<8x18xf32>
    %182 = arith.truncf %181 : vector<8x18xf32> to vector<8x18xbf16>
    %183 = vector.extract_strided_slice %178 {offsets = [16, 0], sizes = [8, 18], strides = [1, 1]} : vector<32x36xf32> to vector<8x18xf32>
    %184 = vector.extract_strided_slice %178 {offsets = [24, 18], sizes = [8, 18], strides = [1, 1]} : vector<32x36xf32> to vector<8x18xf32>
    %185 = arith.addf %183, %184 : vector<8x18xf32>
    %186 = arith.truncf %185 : vector<8x18xf32> to vector<8x18xbf16>
    %187 = vector.extract_strided_slice %114 {offsets = [0, 70], sizes = [32, 8], strides = [1, 1]} : vector<32x78xbf16> to vector<32x8xbf16>
    %cst_43 = arith.constant dense<0.000000e+00> : vector<32x36xf32>
    %188 = tpu.matmul %187, %115, %cst_43 {dimension_numbers = #tpu.dot_dimension_numbers<[1], [0], [0], [1], [0, 0, 1, 1], [], []>} : vector<32x8xbf16>, vector<8x36xbf16>, vector<32x36xf32> -> vector<32x36xf32>
    %189 = vector.extract_strided_slice %188 {offsets = [0, 0], sizes = [8, 18], strides = [1, 1]} : vector<32x36xf32> to vector<8x18xf32>
    %190 = vector.extract_strided_slice %188 {offsets = [8, 18], sizes = [8, 18], strides = [1, 1]} : vector<32x36xf32> to vector<8x18xf32>
    %191 = arith.addf %189, %190 : vector<8x18xf32>
    %192 = arith.truncf %191 : vector<8x18xf32> to vector<8x18xbf16>
    %193 = vector.extract_strided_slice %188 {offsets = [16, 0], sizes = [8, 18], strides = [1, 1]} : vector<32x36xf32> to vector<8x18xf32>
    %194 = vector.extract_strided_slice %188 {offsets = [24, 18], sizes = [8, 18], strides = [1, 1]} : vector<32x36xf32> to vector<8x18xf32>
    %195 = arith.addf %193, %194 : vector<8x18xf32>
    %196 = arith.truncf %195 : vector<8x18xf32> to vector<8x18xbf16>
    %197 = tpu.concatenate %116, %122, %126, %132, %136, %142, %146, %152, %156, %162, %166, %172, %176, %182, %186, %192 in 1 : vector<8x18xbf16>, vector<8x18xbf16>, vector<8x18xbf16>, vector<8x18xbf16>, vector<8x18xbf16>, vector<8x18xbf16>, vector<8x18xbf16>, vector<8x18xbf16>, vector<8x18xbf16>, vector<8x18xbf16>, vector<8x18xbf16>, vector<8x18xbf16>, vector<8x18xbf16>, vector<8x18xbf16>, vector<8x18xbf16>, vector<8x18xbf16> -> vector<8x288xbf16>
    %198 = tpu.concatenate %196, %116 in 1 : vector<8x18xbf16>, vector<8x18xbf16> -> vector<8x36xbf16>
    %199 = tpu.concatenate %197, %198 in 1 : vector<8x288xbf16>, vector<8x36xbf16> -> vector<8x324xbf16>
    %cst_44 = arith.constant 0.000000e+00 : bf16
    %200 = vector.broadcast %cst_44 : bf16 to vector<4x19xbf16>
    %cst_45 = arith.constant 0.000000e+00 : bf16
    %201 = vector.broadcast %cst_45 : bf16 to vector<4x2xbf16>
    %202 = vector.extract_strided_slice %8 {offsets = [0, 0], sizes = [4, 16], strides = [1, 1]} : vector<4x256xbf16> to vector<4x16xbf16>
    %203 = vector.extract_strided_slice %8 {offsets = [0, 16], sizes = [4, 16], strides = [1, 1]} : vector<4x256xbf16> to vector<4x16xbf16>
    %204 = vector.extract_strided_slice %8 {offsets = [0, 32], sizes = [4, 16], strides = [1, 1]} : vector<4x256xbf16> to vector<4x16xbf16>
    %205 = vector.extract_strided_slice %8 {offsets = [0, 48], sizes = [4, 16], strides = [1, 1]} : vector<4x256xbf16> to vector<4x16xbf16>
    %206 = vector.extract_strided_slice %8 {offsets = [0, 64], sizes = [4, 16], strides = [1, 1]} : vector<4x256xbf16> to vector<4x16xbf16>
    %207 = vector.extract_strided_slice %8 {offsets = [0, 80], sizes = [4, 16], strides = [1, 1]} : vector<4x256xbf16> to vector<4x16xbf16>
    %208 = vector.extract_strided_slice %8 {offsets = [0, 96], sizes = [4, 16], strides = [1, 1]} : vector<4x256xbf16> to vector<4x16xbf16>
    %209 = vector.extract_strided_slice %8 {offsets = [0, 112], sizes = [4, 16], strides = [1, 1]} : vector<4x256xbf16> to vector<4x16xbf16>
    %210 = vector.extract_strided_slice %8 {offsets = [0, 128], sizes = [4, 16], strides = [1, 1]} : vector<4x256xbf16> to vector<4x16xbf16>
    %211 = vector.extract_strided_slice %8 {offsets = [0, 144], sizes = [4, 16], strides = [1, 1]} : vector<4x256xbf16> to vector<4x16xbf16>
    %212 = vector.extract_strided_slice %8 {offsets = [0, 160], sizes = [4, 16], strides = [1, 1]} : vector<4x256xbf16> to vector<4x16xbf16>
    %213 = vector.extract_strided_slice %8 {offsets = [0, 176], sizes = [4, 16], strides = [1, 1]} : vector<4x256xbf16> to vector<4x16xbf16>
    %214 = vector.extract_strided_slice %8 {offsets = [0, 192], sizes = [4, 16], strides = [1, 1]} : vector<4x256xbf16> to vector<4x16xbf16>
    %215 = vector.extract_strided_slice %8 {offsets = [0, 208], sizes = [4, 16], strides = [1, 1]} : vector<4x256xbf16> to vector<4x16xbf16>
    %216 = vector.extract_strided_slice %8 {offsets = [0, 224], sizes = [4, 16], strides = [1, 1]} : vector<4x256xbf16> to vector<4x16xbf16>
    %217 = vector.extract_strided_slice %8 {offsets = [0, 240], sizes = [4, 16], strides = [1, 1]} : vector<4x256xbf16> to vector<4x16xbf16>
    %218 = tpu.concatenate %200, %202, %201, %203, %201, %204, %201, %205, %201, %206, %201, %207, %201, %208, %201, %209 in 1 : vector<4x19xbf16>, vector<4x16xbf16>, vector<4x2xbf16>, vector<4x16xbf16>, vector<4x2xbf16>, vector<4x16xbf16>, vector<4x2xbf16>, vector<4x16xbf16>, vector<4x2xbf16>, vector<4x16xbf16>, vector<4x2xbf16>, vector<4x16xbf16>, vector<4x2xbf16>, vector<4x16xbf16>, vector<4x2xbf16>, vector<4x16xbf16> -> vector<4x161xbf16>
    %219 = tpu.concatenate %201, %210, %201, %211, %201, %212, %201, %213, %201, %214, %201, %215, %201, %216, %201, %217 in 1 : vector<4x2xbf16>, vector<4x16xbf16>, vector<4x2xbf16>, vector<4x16xbf16>, vector<4x2xbf16>, vector<4x16xbf16>, vector<4x2xbf16>, vector<4x16xbf16>, vector<4x2xbf16>, vector<4x16xbf16>, vector<4x2xbf16>, vector<4x16xbf16>, vector<4x2xbf16>, vector<4x16xbf16>, vector<4x2xbf16>, vector<4x16xbf16> -> vector<4x144xbf16>
    %220 = tpu.concatenate %218, %219, %200 in 1 : vector<4x161xbf16>, vector<4x144xbf16>, vector<4x19xbf16> -> vector<4x324xbf16>
    %c0_46 = arith.constant 0 : index
    %c0_47 = arith.constant 0 : index
    %221 = vector.load %arg11[%c0_46, %c0_47] : memref<8x72xbf16, #tpu.memory_space<vmem>>, vector<8x72xbf16>
    %222 = vector.extract_strided_slice %199 {offsets = [0, 0], sizes = [8, 286], strides = [1, 1]} : vector<8x324xbf16> to vector<8x286xbf16>
    %223 = vector.extract_strided_slice %199 {offsets = [0, 1], sizes = [8, 286], strides = [1, 1]} : vector<8x324xbf16> to vector<8x286xbf16>
    %224 = vector.extract_strided_slice %199 {offsets = [0, 2], sizes = [8, 286], strides = [1, 1]} : vector<8x324xbf16> to vector<8x286xbf16>
    %225 = vector.extract_strided_slice %199 {offsets = [0, 18], sizes = [8, 286], strides = [1, 1]} : vector<8x324xbf16> to vector<8x286xbf16>
    %226 = vector.extract_strided_slice %199 {offsets = [0, 19], sizes = [8, 286], strides = [1, 1]} : vector<8x324xbf16> to vector<8x286xbf16>
    %227 = vector.extract_strided_slice %199 {offsets = [0, 20], sizes = [8, 286], strides = [1, 1]} : vector<8x324xbf16> to vector<8x286xbf16>
    %228 = vector.extract_strided_slice %199 {offsets = [0, 36], sizes = [8, 286], strides = [1, 1]} : vector<8x324xbf16> to vector<8x286xbf16>
    %229 = vector.extract_strided_slice %199 {offsets = [0, 37], sizes = [8, 286], strides = [1, 1]} : vector<8x324xbf16> to vector<8x286xbf16>
    %230 = vector.extract_strided_slice %199 {offsets = [0, 38], sizes = [8, 286], strides = [1, 1]} : vector<8x324xbf16> to vector<8x286xbf16>
    %231 = tpu.concatenate %222, %223, %224, %225, %226, %227, %228, %229, %230 in 0 : vector<8x286xbf16>, vector<8x286xbf16>, vector<8x286xbf16>, vector<8x286xbf16>, vector<8x286xbf16>, vector<8x286xbf16>, vector<8x286xbf16>, vector<8x286xbf16>, vector<8x286xbf16> -> vector<72x286xbf16>
    %cst_48 = arith.constant dense<0.000000e+00> : vector<8x286xf32>
    %232 = tpu.matmul %221, %231, %cst_48 {dimension_numbers = #tpu.dot_dimension_numbers<[1], [0], [0], [1], [0, 0, 1, 1], [], []>} : vector<8x72xbf16>, vector<72x286xbf16>, vector<8x286xf32> -> vector<8x286xf32>
    %c0_49 = arith.constant 0 : index
    %c0_50 = arith.constant 0 : index
    %233 = vector.load %arg12[%c0_49, %c0_50] : memref<8x36xbf16, #tpu.memory_space<vmem>>, vector<8x36xbf16>
    %234 = vector.extract_strided_slice %220 {offsets = [0, 0], sizes = [4, 286], strides = [1, 1]} : vector<4x324xbf16> to vector<4x286xbf16>
    %235 = vector.extract_strided_slice %220 {offsets = [0, 1], sizes = [4, 286], strides = [1, 1]} : vector<4x324xbf16> to vector<4x286xbf16>
    %236 = vector.extract_strided_slice %220 {offsets = [0, 2], sizes = [4, 286], strides = [1, 1]} : vector<4x324xbf16> to vector<4x286xbf16>
    %237 = vector.extract_strided_slice %220 {offsets = [0, 18], sizes = [4, 286], strides = [1, 1]} : vector<4x324xbf16> to vector<4x286xbf16>
    %238 = vector.extract_strided_slice %220 {offsets = [0, 19], sizes = [4, 286], strides = [1, 1]} : vector<4x324xbf16> to vector<4x286xbf16>
    %239 = vector.extract_strided_slice %220 {offsets = [0, 20], sizes = [4, 286], strides = [1, 1]} : vector<4x324xbf16> to vector<4x286xbf16>
    %240 = vector.extract_strided_slice %220 {offsets = [0, 36], sizes = [4, 286], strides = [1, 1]} : vector<4x324xbf16> to vector<4x286xbf16>
    %241 = vector.extract_strided_slice %220 {offsets = [0, 37], sizes = [4, 286], strides = [1, 1]} : vector<4x324xbf16> to vector<4x286xbf16>
    %242 = vector.extract_strided_slice %220 {offsets = [0, 38], sizes = [4, 286], strides = [1, 1]} : vector<4x324xbf16> to vector<4x286xbf16>
    %243 = tpu.concatenate %234, %235, %236, %237, %238, %239, %240, %241, %242 in 0 : vector<4x286xbf16>, vector<4x286xbf16>, vector<4x286xbf16>, vector<4x286xbf16>, vector<4x286xbf16>, vector<4x286xbf16>, vector<4x286xbf16>, vector<4x286xbf16>, vector<4x286xbf16> -> vector<36x286xbf16>
    %cst_51 = arith.constant dense<0.000000e+00> : vector<8x286xf32>
    %244 = tpu.matmul %233, %243, %cst_51 {dimension_numbers = #tpu.dot_dimension_numbers<[1], [0], [0], [1], [0, 0, 1, 1], [], []>} : vector<8x36xbf16>, vector<36x286xbf16>, vector<8x286xf32> -> vector<8x286xf32>
    %245 = arith.addf %232, %244 : vector<8x286xf32>
    %c0_52 = arith.constant 0 : index
    %c0_53 = arith.constant 0 : index
    %246 = vector.load %arg13[%c0_52, %c0_53] : memref<8x1xf32, #tpu.memory_space<vmem>>, vector<8x1xf32>
    %247 = vector.broadcast %246 : vector<8x1xf32> to vector<8x286xf32>
    %248 = arith.addf %245, %247 : vector<8x286xf32>
    %cst_54 = arith.constant 0.000000e+00 : f32
    %249 = vector.broadcast %cst_54 : f32 to vector<8x286xf32>
    %250 = arith.maximumf %248, %249 : vector<8x286xf32>
    %c0_55 = arith.constant 0 : index
    %c0_56 = arith.constant 0 : index
    %251 = vector.load %arg14[%c0_55, %c0_56] : memref<1x286xf32, #tpu.memory_space<vmem>>, vector<1x286xf32>
    %252 = vector.broadcast %251 : vector<1x286xf32> to vector<8x286xf32>
    %253 = arith.mulf %250, %252 : vector<8x286xf32>
    %cst_57 = arith.constant 0.000000e+00 : bf16
    %254 = vector.broadcast %cst_57 : bf16 to vector<8x19xbf16>
    %255 = arith.truncf %253 : vector<8x286xf32> to vector<8x286xbf16>
    %256 = tpu.concatenate %254, %255, %254 in 1 : vector<8x19xbf16>, vector<8x286xbf16>, vector<8x19xbf16> -> vector<8x324xbf16>
    %c0_58 = arith.constant 0 : index
    %c0_59 = arith.constant 0 : index
    %257 = vector.load %arg15[%c0_58, %c0_59] : memref<16x72xbf16, #tpu.memory_space<vmem>>, vector<16x72xbf16>
    %258 = vector.extract_strided_slice %256 {offsets = [0, 0], sizes = [8, 286], strides = [1, 1]} : vector<8x324xbf16> to vector<8x286xbf16>
    %259 = vector.extract_strided_slice %256 {offsets = [0, 1], sizes = [8, 286], strides = [1, 1]} : vector<8x324xbf16> to vector<8x286xbf16>
    %260 = vector.extract_strided_slice %256 {offsets = [0, 2], sizes = [8, 286], strides = [1, 1]} : vector<8x324xbf16> to vector<8x286xbf16>
    %261 = vector.extract_strided_slice %256 {offsets = [0, 18], sizes = [8, 286], strides = [1, 1]} : vector<8x324xbf16> to vector<8x286xbf16>
    %262 = vector.extract_strided_slice %256 {offsets = [0, 19], sizes = [8, 286], strides = [1, 1]} : vector<8x324xbf16> to vector<8x286xbf16>
    %263 = vector.extract_strided_slice %256 {offsets = [0, 20], sizes = [8, 286], strides = [1, 1]} : vector<8x324xbf16> to vector<8x286xbf16>
    %264 = vector.extract_strided_slice %256 {offsets = [0, 36], sizes = [8, 286], strides = [1, 1]} : vector<8x324xbf16> to vector<8x286xbf16>
    %265 = vector.extract_strided_slice %256 {offsets = [0, 37], sizes = [8, 286], strides = [1, 1]} : vector<8x324xbf16> to vector<8x286xbf16>
    %266 = vector.extract_strided_slice %256 {offsets = [0, 38], sizes = [8, 286], strides = [1, 1]} : vector<8x324xbf16> to vector<8x286xbf16>
    %267 = tpu.concatenate %258, %259, %260, %261, %262, %263, %264, %265, %266 in 0 : vector<8x286xbf16>, vector<8x286xbf16>, vector<8x286xbf16>, vector<8x286xbf16>, vector<8x286xbf16>, vector<8x286xbf16>, vector<8x286xbf16>, vector<8x286xbf16>, vector<8x286xbf16> -> vector<72x286xbf16>
    %cst_60 = arith.constant dense<0.000000e+00> : vector<16x286xf32>
    %268 = tpu.matmul %257, %267, %cst_60 {dimension_numbers = #tpu.dot_dimension_numbers<[1], [0], [0], [1], [0, 0, 1, 1], [], []>} : vector<16x72xbf16>, vector<72x286xbf16>, vector<16x286xf32> -> vector<16x286xf32>
    %c0_61 = arith.constant 0 : index
    %c0_62 = arith.constant 0 : index
    %269 = vector.load %arg16[%c0_61, %c0_62] : memref<16x1xf32, #tpu.memory_space<vmem>>, vector<16x1xf32>
    %270 = vector.broadcast %269 : vector<16x1xf32> to vector<16x286xf32>
    %271 = arith.addf %268, %270 : vector<16x286xf32>
    %272 = vector.extract_strided_slice %271 {offsets = [0, 0], sizes = [16, 16], strides = [1, 1]} : vector<16x286xf32> to vector<16x16xf32>
    %273 = vector.extract_strided_slice %271 {offsets = [0, 18], sizes = [16, 16], strides = [1, 1]} : vector<16x286xf32> to vector<16x16xf32>
    %274 = vector.extract_strided_slice %271 {offsets = [0, 36], sizes = [16, 16], strides = [1, 1]} : vector<16x286xf32> to vector<16x16xf32>
    %275 = vector.extract_strided_slice %271 {offsets = [0, 54], sizes = [16, 16], strides = [1, 1]} : vector<16x286xf32> to vector<16x16xf32>
    %276 = vector.extract_strided_slice %271 {offsets = [0, 72], sizes = [16, 16], strides = [1, 1]} : vector<16x286xf32> to vector<16x16xf32>
    %277 = vector.extract_strided_slice %271 {offsets = [0, 90], sizes = [16, 16], strides = [1, 1]} : vector<16x286xf32> to vector<16x16xf32>
    %278 = vector.extract_strided_slice %271 {offsets = [0, 108], sizes = [16, 16], strides = [1, 1]} : vector<16x286xf32> to vector<16x16xf32>
    %279 = vector.extract_strided_slice %271 {offsets = [0, 126], sizes = [16, 16], strides = [1, 1]} : vector<16x286xf32> to vector<16x16xf32>
    %280 = vector.extract_strided_slice %271 {offsets = [0, 144], sizes = [16, 16], strides = [1, 1]} : vector<16x286xf32> to vector<16x16xf32>
    %281 = vector.extract_strided_slice %271 {offsets = [0, 162], sizes = [16, 16], strides = [1, 1]} : vector<16x286xf32> to vector<16x16xf32>
    %282 = vector.extract_strided_slice %271 {offsets = [0, 180], sizes = [16, 16], strides = [1, 1]} : vector<16x286xf32> to vector<16x16xf32>
    %283 = vector.extract_strided_slice %271 {offsets = [0, 198], sizes = [16, 16], strides = [1, 1]} : vector<16x286xf32> to vector<16x16xf32>
    %284 = vector.extract_strided_slice %271 {offsets = [0, 216], sizes = [16, 16], strides = [1, 1]} : vector<16x286xf32> to vector<16x16xf32>
    %285 = vector.extract_strided_slice %271 {offsets = [0, 234], sizes = [16, 16], strides = [1, 1]} : vector<16x286xf32> to vector<16x16xf32>
    %286 = vector.extract_strided_slice %271 {offsets = [0, 252], sizes = [16, 16], strides = [1, 1]} : vector<16x286xf32> to vector<16x16xf32>
    %287 = vector.extract_strided_slice %271 {offsets = [0, 270], sizes = [16, 16], strides = [1, 1]} : vector<16x286xf32> to vector<16x16xf32>
    %288 = tpu.concatenate %272, %273, %274, %275, %276, %277, %278, %279, %280, %281, %282, %283, %284, %285, %286, %287 in 1 : vector<16x16xf32>, vector<16x16xf32>, vector<16x16xf32>, vector<16x16xf32>, vector<16x16xf32>, vector<16x16xf32>, vector<16x16xf32>, vector<16x16xf32>, vector<16x16xf32>, vector<16x16xf32>, vector<16x16xf32>, vector<16x16xf32>, vector<16x16xf32>, vector<16x16xf32>, vector<16x16xf32>, vector<16x16xf32> -> vector<16x256xf32>
    %289 = vector.extract_strided_slice %288 {offsets = [0, 0], sizes = [8, 256], strides = [1, 1]} : vector<16x256xf32> to vector<8x256xf32>
    %c0_63 = arith.constant 0 : index
    %c0_64 = arith.constant 0 : index
    %c0_65 = arith.constant 0 : index
    %290 = vector.load %arg17[%c0_63, %c0_64, %c0_65] : memref<1x8x256xf32, #tpu.memory_space<vmem>>, vector<1x8x256xf32>
    %291 = vector.shape_cast %290 : vector<1x8x256xf32> to vector<8x256xf32>
    %292 = vector.shape_cast %289 : vector<8x256xf32> to vector<1x8x256xf32>
    tpu.vector_store %arg17[%c0_63, %c0_64, %c0_65], %292 {strides = array<i32>} : memref<1x8x256xf32, #tpu.memory_space<vmem>>, vector<1x8x256xf32>,
    %293 = vector.extract_strided_slice %288 {offsets = [8, 0], sizes = [8, 256], strides = [1, 1]} : vector<16x256xf32> to vector<8x256xf32>
    %cst_66 = arith.constant 1.100000e-01 : f32
    %294 = vector.broadcast %cst_66 : f32 to vector<8x256xf32>
    %295 = arith.maximumf %293, %294 : vector<8x256xf32>
    %c0_67 = arith.constant 0 : index
    %c0_68 = arith.constant 0 : index
    %c0_69 = arith.constant 0 : index
    %296 = vector.load %arg18[%c0_67, %c0_68, %c0_69] : memref<1x8x256xf32, #tpu.memory_space<vmem>>, vector<1x8x256xf32>
    %297 = vector.shape_cast %296 : vector<1x8x256xf32> to vector<8x256xf32>
    %298 = vector.shape_cast %295 : vector<8x256xf32> to vector<1x8x256xf32>
    tpu.vector_store %arg18[%c0_67, %c0_68, %c0_69], %298 {strides = array<i32>} : memref<1x8x256xf32, #tpu.memory_space<vmem>>, vector<1x8x256xf32>,
    return
  }
  func.func @transform_0(%arg0: i32) -> (i32, i32, i32) {
    %c0_i32 = arith.constant 0 : i32
    %c0_i32_0 = arith.constant 0 : i32
    %c0_i32_1 = arith.constant 0 : i32
    return %arg0, %c0_i32, %c0_i32_0 : i32, i32, i32
  }
  func.func @transform_1(%arg0: i32) -> (i32, i32, i32) {
    %c0_i32 = arith.constant 0 : i32
    %c0_i32_0 = arith.constant 0 : i32
    %c0_i32_1 = arith.constant 0 : i32
    return %arg0, %c0_i32, %c0_i32_0 : i32, i32, i32
  }
  func.func @transform_2(%arg0: i32) -> (i32, i32, i32) {
    %c0_i32 = arith.constant 0 : i32
    %c0_i32_0 = arith.constant 0 : i32
    %c0_i32_1 = arith.constant 0 : i32
    return %arg0, %c0_i32, %c0_i32_0 : i32, i32, i32
  }
  func.func @transform_3(%arg0: i32) -> (i32, i32) {
    %c0_i32 = arith.constant 0 : i32
    %c0_i32_0 = arith.constant 0 : i32
    %c0_i32_1 = arith.constant 0 : i32
    return %c0_i32, %c0_i32_0 : i32, i32
  }
  func.func @transform_4(%arg0: i32) -> (i32, i32) {
    %c0_i32 = arith.constant 0 : i32
    %c0_i32_0 = arith.constant 0 : i32
    %c0_i32_1 = arith.constant 0 : i32
    return %c0_i32, %c0_i32_0 : i32, i32
  }
  func.func @transform_5(%arg0: i32) -> (i32, i32) {
    %c0_i32 = arith.constant 0 : i32
    %c0_i32_0 = arith.constant 0 : i32
    %c0_i32_1 = arith.constant 0 : i32
    return %c0_i32, %c0_i32_0 : i32, i32
  }
  func.func @transform_6(%arg0: i32) -> (i32, i32) {
    %c0_i32 = arith.constant 0 : i32
    %c0_i32_0 = arith.constant 0 : i32
    %c0_i32_1 = arith.constant 0 : i32
    return %c0_i32, %c0_i32_0 : i32, i32
  }
  func.func @transform_7(%arg0: i32) -> (i32, i32) {
    %c0_i32 = arith.constant 0 : i32
    %c0_i32_0 = arith.constant 0 : i32
    %c0_i32_1 = arith.constant 0 : i32
    return %c0_i32, %c0_i32_0 : i32, i32
  }
  func.func @transform_8(%arg0: i32) -> (i32, i32) {
    %c0_i32 = arith.constant 0 : i32
    %c0_i32_0 = arith.constant 0 : i32
    %c0_i32_1 = arith.constant 0 : i32
    return %c0_i32, %c0_i32_0 : i32, i32
  }
  func.func @transform_9(%arg0: i32) -> (i32, i32) {
    %c0_i32 = arith.constant 0 : i32
    %c0_i32_0 = arith.constant 0 : i32
    %c0_i32_1 = arith.constant 0 : i32
    return %c0_i32, %c0_i32_0 : i32, i32
  }
  func.func @transform_10(%arg0: i32) -> (i32, i32) {
    %c0_i32 = arith.constant 0 : i32
    %c0_i32_0 = arith.constant 0 : i32
    %c0_i32_1 = arith.constant 0 : i32
    return %c0_i32, %c0_i32_0 : i32, i32
  }
  func.func @transform_11(%arg0: i32) -> (i32, i32) {
    %c0_i32 = arith.constant 0 : i32
    %c0_i32_0 = arith.constant 0 : i32
    %c0_i32_1 = arith.constant 0 : i32
    return %c0_i32, %c0_i32_0 : i32, i32
  }
  func.func @transform_12(%arg0: i32) -> (i32, i32) {
    %c0_i32 = arith.constant 0 : i32
    %c0_i32_0 = arith.constant 0 : i32
    %c0_i32_1 = arith.constant 0 : i32
    return %c0_i32, %c0_i32_0 : i32, i32
  }
  func.func @transform_13(%arg0: i32) -> (i32, i32) {
    %c0_i32 = arith.constant 0 : i32
    %c0_i32_0 = arith.constant 0 : i32
    %c0_i32_1 = arith.constant 0 : i32
    return %c0_i32, %c0_i32_0 : i32, i32
  }
  func.func @transform_14(%arg0: i32) -> (i32, i32) {
    %c0_i32 = arith.constant 0 : i32
    %c0_i32_0 = arith.constant 0 : i32
    %c0_i32_1 = arith.constant 0 : i32
    return %c0_i32, %c0_i32_0 : i32, i32
  }
  func.func @transform_15(%arg0: i32) -> (i32, i32) {
    %c0_i32 = arith.constant 0 : i32
    %c0_i32_0 = arith.constant 0 : i32
    %c0_i32_1 = arith.constant 0 : i32
    return %c0_i32, %c0_i32_0 : i32, i32
  }
  func.func @transform_16(%arg0: i32) -> (i32, i32, i32) {
    %c0_i32 = arith.constant 0 : i32
    %c0_i32_0 = arith.constant 0 : i32
    %c0_i32_1 = arith.constant 0 : i32
    return %arg0, %c0_i32, %c0_i32_0 : i32, i32, i32
  }
  func.func @transform_17(%arg0: i32) -> (i32, i32, i32) {
    %c0_i32 = arith.constant 0 : i32
    %c0_i32_0 = arith.constant 0 : i32
    %c0_i32_1 = arith.constant 0 : i32
    return %arg0, %c0_i32, %c0_i32_0 : i32, i32, i32
  }
}

</mosaic_0001>

<llo_original>
// kernel: hyper_cond_decoder.1
$region0: #{hyper_cond_decoder.1}
  #allocation0 [shape = 'u32[]', space=smem, size = 0x4, offset = 0x4, fixed_abs, tag = 'smem constant byte address 0x4 - core index']
  #allocation1 [shape = 'u32[144,128]{1,0:T(1,128)}', space=vmem, size = 0x12000, scoped, tag = 'internal scratch']
  %s0 = inlined_call_operand.hbm [shape: f32[2,4,16], index: 0, kind: input, shape index: {}]
  %s1 = inlined_call_operand.hbm [shape: f32[2,4,16], index: 1, kind: input, shape index: {}]
  %s2 = inlined_call_operand.hbm [shape: f32[2,4,256], index: 2, kind: input, shape index: {}]
  %s3 = inlined_call_operand.hbm [shape: bf16[32,36], index: 3, kind: input, shape index: {}]
  %s4 = inlined_call_operand.hbm [shape: bf16[32,36], index: 4, kind: input, shape index: {}]
  %s5 = inlined_call_operand.hbm [shape: f32[32,1], index: 5, kind: input, shape index: {}]
  %s6 = inlined_call_operand.hbm [shape: bf16[4,20], index: 6, kind: input, shape index: {}]
  %s7 = inlined_call_operand.hbm [shape: bf16[32,72], index: 7, kind: input, shape index: {}]
  %s8 = inlined_call_operand.hbm [shape: f32[32,1], index: 8, kind: input, shape index: {}]
  %s9 = inlined_call_operand.hbm [shape: bf16[8,36], index: 9, kind: input, shape index: {}]
  %s10 = inlined_call_operand.hbm [shape: bf16[8,72], index: 10, kind: input, shape index: {}]
  %s11 = inlined_call_operand.hbm [shape: bf16[8,36], index: 11, kind: input, shape index: {}]
  %s12 = inlined_call_operand.hbm [shape: f32[8,1], index: 12, kind: input, shape index: {}]
  %s13 = inlined_call_operand.hbm [shape: f32[1,286], index: 13, kind: input, shape index: {}]
  %s14 = inlined_call_operand.hbm [shape: bf16[16,72], index: 14, kind: input, shape index: {}]
  %s15 = inlined_call_operand.hbm [shape: f32[16,1], index: 15, kind: input, shape index: {}]
  %s16 = inlined_call_operand.hbm [shape: f32[2,8,256], index: 16, kind: output, shape index: {0}]
  %s17 = inlined_call_operand.hbm [shape: f32[2,8,256], index: 17, kind: output, shape index: {1}]
  %18 = xla_tuple %s16, %s17
  %s19 = sld [smem:[#allocation0]]
  $region169: #{hyper_cond_decoder.1} parent=0
    _
  %s21 = ssub.s32 1, %s19
  %s22 = scalar_select 0, %s21, %s19
  $region1: #{hyper_cond_decoder.1} parent=0
    #allocation2 [shape = 'u8[4096]{0}', space=vmem, size = 0x1000, scoped, tag = 'input window, operand 0']
    #allocation3 [shape = 's32[2]{0}', space=sflag, size = 0x8, scoped, tag = 'scoped memory for hyper_cond_decoder.1']
    #allocation4 [shape = 's32[2]{0}', space=sflag, size = 0x8, scoped, tag = 'scoped memory for hyper_cond_decoder.1']
    #allocation5 [shape = 'u8[4096]{0}', space=vmem, size = 0x1000, scoped, tag = 'input window, operand 1']
    #allocation6 [shape = 's32[2]{0}', space=sflag, size = 0x8, scoped, tag = 'scoped memory for hyper_cond_decoder.1']
    #allocation7 [shape = 'u8[8192]{0}', space=vmem, size = 0x2000, scoped, tag = 'input window, operand 2']
    #allocation8 [shape = 'u8[8192]{0}', space=vmem, size = 0x2000, scoped, tag = 'input window, operand 3, single buffered']
    #allocation9 [shape = 's32[1]{0}', space=sflag, size = 0x4, scoped, tag = 'scoped memory for hyper_cond_decoder.1']
    #allocation10 [shape = 'u8[8192]{0}', space=vmem, size = 0x2000, scoped, tag = 'input window, operand 4, single buffered']
    #allocation11 [shape = 'u8[16384]{0}', space=vmem, size = 0x4000, scoped, tag = 'input window, operand 5, single buffered']
    #allocation12 [shape = 's32[1]{0}', space=sflag, size = 0x4, scoped, tag = 'scoped memory for hyper_cond_decoder.1']
    #allocation13 [shape = 'u8[1024]{0}', space=vmem, size = 0x400, scoped, tag = 'input window, operand 6, single buffered']
    #allocation14 [shape = 'u8[8192]{0}', space=vmem, size = 0x2000, scoped, tag = 'input window, operand 7, single buffered']
    #allocation15 [shape = 's32[1]{0}', space=sflag, size = 0x4, scoped, tag = 'scoped memory for hyper_cond_decoder.1']
    #allocation16 [shape = 'u8[16384]{0}', space=vmem, size = 0x4000, scoped, tag = 'input window, operand 8, single buffered']
    #allocation17 [shape = 'u8[2048]{0}', space=vmem, size = 0x800, scoped, tag = 'input window, operand 9, single buffered']
    #allocation18 [shape = 's32[1]{0}', space=sflag, size = 0x4, scoped, tag = 'scoped memory for hyper_cond_decoder.1']
    #allocation19 [shape = 'u8[2048]{0}', space=vmem, size = 0x800, scoped, tag = 'input window, operand 10, single buffered']
    #allocation20 [shape = 'u8[2048]{0}', space=vmem, size = 0x800, scoped, tag = 'input window, operand 11, single buffered']
    #allocation21 [shape = 's32[1]{0}', space=sflag, size = 0x4, scoped, tag = 'scoped memory for hyper_cond_decoder.1']
    #allocation22 [shape = 'u8[4096]{0}', space=vmem, size = 0x1000, scoped, tag = 'input window, operand 12, single buffered']
    #allocation23 [shape = 'u8[1536]{0}', space=vmem, size = 0x800, scoped, tag = 'input window, operand 13, single buffered']
    #allocation24 [shape = 's32[1]{0}', space=sflag, size = 0x4, scoped, tag = 'scoped memory for hyper_cond_decoder.1']
    #allocation25 [shape = 'u8[4096]{0}', space=vmem, size = 0x1000, scoped, tag = 'input window, operand 14, single buffered']
    #allocation26 [shape = 'u8[8192]{0}', space=vmem, size = 0x2000, scoped, tag = 'input window, operand 15, single buffered']
    #allocation27 [shape = 's32[1]{0}', space=sflag, size = 0x4, scoped, tag = 'scoped memory for hyper_cond_decoder.1']
    #allocation28 [shape = 'u8[16384]{0}', space=vmem, size = 0x4000, scoped, tag = 'output window, operand 0']
    #allocation29 [shape = 'u8[16384]{0}', space=vmem, size = 0x4000, scoped, tag = 'output window, operand 1']
    #allocation30 [shape = 's32[2]{0}', space=sflag, size = 0x8, scoped, tag = 'scoped memory for hyper_cond_decoder.1']
    %23 = vsyncpa [#allocation3], 0
    %s24 = scalar_lea.sflag [#allocation3], 1
    %25 = vsyncpa %s24, 0
    %26 = vsyncpa [#allocation6], 0
    %s27 = scalar_lea.sflag [#allocation6], 1
    %28 = vsyncpa %s27, 0
    %29 = vsyncpa [#allocation9], 0
    %30 = vsyncpa [#allocation12], 0
    %31 = vsyncpa [#allocation15], 0
    %32 = vsyncpa [#allocation18], 0
    %33 = vsyncpa [#allocation21], 0
    %34 = vsyncpa [#allocation24], 0
    %35 = vsyncpa [#allocation27], 0
    %36 = vsyncpa [#allocation4], 0
    %s37 = scalar_lea.sflag [#allocation4], 1
    %38 = vsyncpa %s37, 0
    %39 = vsyncpa [#allocation30], 0
    %s40 = scalar_lea.sflag [#allocation30], 1
    %41 = vsyncpa %s40, 0
    loop: start=0, step=1, limit=4
    $region2: #{hyper_cond_decoder.1} parent=1 // loop_pre_header
      _
    $region3: #{hyper_cond_decoder.1} parent=1 // loop_header
      %s43 = sphi 0, %s47
      %p44 = scmp.ge.s32.totalorder %s43, 4
      %s53 = sphi 0, %s55
      %s56 = sphi 0, %s53
      %s57 = sphi 0, %s56
      %s73 = sphi 0, %s57
      %s79 = sphi 0, %s81
      %s82 = sphi 0, %s79
      %s83 = sphi 0, %s82
      %s99 = sphi 0, %s83
      %s105 = sphi 0, %s107
      %s108 = sphi 0, %s105
      %s109 = sphi 0, %s108
      %s125 = sphi 0, %s109
      %s129 = sphi 0, %s129
      %s131 = sphi 0, %s129
      %s132 = sphi 0, %s131
      %s146 = sphi 0, %s132
      %s150 = sphi 0, %s150
      %s152 = sphi 0, %s150
      %s153 = sphi 0, %s152
      %s167 = sphi 0, %s153
      %s171 = sphi 0, %s171
      %s173 = sphi 0, %s171
      %s174 = sphi 0, %s173
      %s188 = sphi 0, %s174
      %s192 = sphi 0, %s192
      %s194 = sphi 0, %s192
      %s195 = sphi 0, %s194
      %s209 = sphi 0, %s195
      %s213 = sphi 0, %s213
      %s215 = sphi 0, %s213
      %s216 = sphi 0, %s215
      %s230 = sphi 0, %s216
      %s234 = sphi 0, %s234
      %s236 = sphi 0, %s234
      %s237 = sphi 0, %s236
      %s251 = sphi 0, %s237
      %s255 = sphi 0, %s255
      %s257 = sphi 0, %s255
      %s258 = sphi 0, %s257
      %s272 = sphi 0, %s258
      %s276 = sphi 0, %s276
      %s278 = sphi 0, %s276
      %s279 = sphi 0, %s278
      %s293 = sphi 0, %s279
      %s297 = sphi 0, %s297
      %s299 = sphi 0, %s297
      %s300 = sphi 0, %s299
      %s314 = sphi 0, %s300
      %s318 = sphi 0, %s318
      %s320 = sphi 0, %s318
      %s321 = sphi 0, %s320
      %s335 = sphi 0, %s321
      %s339 = sphi 0, %s339
      %s341 = sphi 0, %s339
      %s342 = sphi 0, %s341
      %s356 = sphi 0, %s342
      %s360 = sphi 0, %s360
      %s362 = sphi 0, %s360
      %s363 = sphi 0, %s362
      %s377 = sphi 0, %s363
      %s381 = sphi 0, %s381
      %s383 = sphi 0, %s381
      %s384 = sphi 0, %s383
      %s398 = sphi 0, %s384
      %s404 = sphi 0, %s406
      %s407 = sphi 0, %s404
      %s408 = sphi 0, %s407
      %s424 = sphi 0, %s408
      %s430 = sphi 0, %s432
      %s433 = sphi 0, %s430
      %s434 = sphi 0, %s433
      %s450 = sphi 0, %s434
    $region4: #{hyper_cond_decoder.1} parent=1 // loop_header_branch
      %46 = sbr.rel (%p44) target = $region8
    $region5: #{hyper_cond_decoder.1} parent=1 // loop_body
      %s48 = ssub.s32 %s43, 1
      %s49 = ssub.s32 %s43, 2
      %s50 = sadd.s32 %s43, 1
      %s51 = ssub.s32 %s43, %s50
      %p52 = scmp.eq.s32.totalorder %s51, 0
      %s54 = sadd.s32 %s53, 1
      %s55 = scalar_select %p52, %s53, %s54
      %p58 = pneg %p52
      %p59 = scmp.eq.s32.totalorder %s43, 1
      %p60 = por %p58, %p59
      %p61 = scmp.ne.s32.totalorder %s53, %s56
      %p62 = scmp.eq.s32.totalorder %s43, 0
      %p63 = por %p61, %p62
      %p64 = scmp.ne.s32.totalorder %s53, %s56
      %p65 = scmp.eq.s32.totalorder %s48, 1
      %p66 = por %p64, %p65
      %p67 = scmp.ne.s32.totalorder %s56, %s57
      %p68 = scmp.eq.s32.totalorder %s48, 0
      %p69 = por %p67, %p68
      %p70 = scmp.ne.s32.totalorder %s56, %s57
      %p71 = scmp.eq.s32.totalorder %s49, 1
      %p72 = por %p70, %p71
      %p74 = scmp.ne.s32.totalorder %s57, %s73
      %p75 = scmp.eq.s32.totalorder %s49, 0
      %p76 = por %p74, %p75
      %s77 = ssub.s32 %s43, %s50
      %p78 = scmp.eq.s32.totalorder %s77, 0
      %s80 = sadd.s32 %s79, 1
      %s81 = scalar_select %p78, %s79, %s80
      %p84 = pneg %p78
      %p85 = scmp.eq.s32.totalorder %s43, 1
      %p86 = por %p84, %p85
      %p87 = scmp.ne.s32.totalorder %s79, %s82
      %p88 = scmp.eq.s32.totalorder %s43, 0
      %p89 = por %p87, %p88
      %p90 = scmp.ne.s32.totalorder %s79, %s82
      %p91 = scmp.eq.s32.totalorder %s48, 1
      %p92 = por %p90, %p91
      %p93 = scmp.ne.s32.totalorder %s82, %s83
      %p94 = scmp.eq.s32.totalorder %s48, 0
      %p95 = por %p93, %p94
      %p96 = scmp.ne.s32.totalorder %s82, %s83
      %p97 = scmp.eq.s32.totalorder %s49, 1
      %p98 = por %p96, %p97
      %p100 = scmp.ne.s32.totalorder %s83, %s99
      %p101 = scmp.eq.s32.totalorder %s49, 0
      %p102 = por %p100, %p101
      %s103 = ssub.s32 %s43, %s50
      %p104 = scmp.eq.s32.totalorder %s103, 0
      %s106 = sadd.s32 %s105, 1
      %s107 = scalar_select %p104, %s105, %s106
      %p110 = pneg %p104
      %p111 = scmp.eq.s32.totalorder %s43, 1
      %p112 = por %p110, %p111
      %p113 = scmp.ne.s32.totalorder %s105, %s108
      %p114 = scmp.eq.s32.totalorder %s43, 0
      %p115 = por %p113, %p114
      %p116 = scmp.ne.s32.totalorder %s105, %s108
      %p117 = scmp.eq.s32.totalorder %s48, 1
      %p118 = por %p116, %p117
      %p119 = scmp.ne.s32.totalorder %s108, %s109
      %p120 = scmp.eq.s32.totalorder %s48, 0
      %p121 = por %p119, %p120
      %p122 = scmp.ne.s32.totalorder %s108, %s109
      %p123 = scmp.eq.s32.totalorder %s49, 1
      %p124 = por %p122, %p123
      %p126 = scmp.ne.s32.totalorder %s109, %s125
      %p127 = scmp.eq.s32.totalorder %s49, 0
      %p128 = por %p126, %p127
      %s130 = sadd.s32 %s129, 1
      %p133 = scmp.eq.s32.totalorder %s43, 1
      %p134 = scmp.ne.s32.totalorder %s129, %s131
      %p135 = scmp.eq.s32.totalorder %s43, 0
      %p136 = por %p134, %p135
      %p137 = scmp.ne.s32.totalorder %s129, %s131
      %p138 = scmp.eq.s32.totalorder %s48, 1
      %p139 = por %p137, %p138
      %p140 = scmp.ne.s32.totalorder %s131, %s132
      %p141 = scmp.eq.s32.totalorder %s48, 0
      %p142 = por %p140, %p141
      %p143 = scmp.ne.s32.totalorder %s131, %s132
      %p144 = scmp.eq.s32.totalorder %s49, 1
      %p145 = por %p143, %p144
      %p147 = scmp.ne.s32.totalorder %s132, %s146
      %p148 = scmp.eq.s32.totalorder %s49, 0
      %p149 = por %p147, %p148
      %s151 = sadd.s32 %s150, 1
      %p154 = scmp.eq.s32.totalorder %s43, 1
      %p155 = scmp.ne.s32.totalorder %s150, %s152
      %p156 = scmp.eq.s32.totalorder %s43, 0
      %p157 = por %p155, %p156
      %p158 = scmp.ne.s32.totalorder %s150, %s152
      %p159 = scmp.eq.s32.totalorder %s48, 1
      %p160 = por %p158, %p159
      %p161 = scmp.ne.s32.totalorder %s152, %s153
      %p162 = scmp.eq.s32.totalorder %s48, 0
      %p163 = por %p161, %p162
      %p164 = scmp.ne.s32.totalorder %s152, %s153
      %p165 = scmp.eq.s32.totalorder %s49, 1
      %p166 = por %p164, %p165
      %p168 = scmp.ne.s32.totalorder %s153, %s167
      %p169 = scmp.eq.s32.totalorder %s49, 0
      %p170 = por %p168, %p169
      %s172 = sadd.s32 %s171, 1
      %p175 = scmp.eq.s32.totalorder %s43, 1
      %p176 = scmp.ne.s32.totalorder %s171, %s173
      %p177 = scmp.eq.s32.totalorder %s43, 0
      %p178 = por %p176, %p177
      %p179 = scmp.ne.s32.totalorder %s171, %s173
      %p180 = scmp.eq.s32.totalorder %s48, 1
      %p181 = por %p179, %p180
      %p182 = scmp.ne.s32.totalorder %s173, %s174
      %p183 = scmp.eq.s32.totalorder %s48, 0
      %p184 = por %p182, %p183
      %p185 = scmp.ne.s32.totalorder %s173, %s174
      %p186 = scmp.eq.s32.totalorder %s49, 1
      %p187 = por %p185, %p186
      %p189 = scmp.ne.s32.totalorder %s174, %s188
      %p190 = scmp.eq.s32.totalorder %s49, 0
      %p191 = por %p189, %p190
      %s193 = sadd.s32 %s192, 1
      %p196 = scmp.eq.s32.totalorder %s43, 1
      %p197 = scmp.ne.s32.totalorder %s192, %s194
      %p198 = scmp.eq.s32.totalorder %s43, 0
      %p199 = por %p197, %p198
      %p200 = scmp.ne.s32.totalorder %s192, %s194
      %p201 = scmp.eq.s32.totalorder %s48, 1
      %p202 = por %p200, %p201
      %p203 = scmp.ne.s32.totalorder %s194, %s195
      %p204 = scmp.eq.s32.totalorder %s48, 0
      %p205 = por %p203, %p204
      %p206 = scmp.ne.s32.totalorder %s194, %s195
      %p207 = scmp.eq.s32.totalorder %s49, 1
      %p208 = por %p206, %p207
      %p210 = scmp.ne.s32.totalorder %s195, %s209
      %p211 = scmp.eq.s32.totalorder %s49, 0
      %p212 = por %p210, %p211
      %s214 = sadd.s32 %s213, 1
      %p217 = scmp.eq.s32.totalorder %s43, 1
      %p218 = scmp.ne.s32.totalorder %s213, %s215
      %p219 = scmp.eq.s32.totalorder %s43, 0
      %p220 = por %p218, %p219
      %p221 = scmp.ne.s32.totalorder %s213, %s215
      %p222 = scmp.eq.s32.totalorder %s48, 1
      %p223 = por %p221, %p222
      %p224 = scmp.ne.s32.totalorder %s215, %s216
      %p225 = scmp.eq.s32.totalorder %s48, 0
      %p226 = por %p224, %p225
      %p227 = scmp.ne.s32.totalorder %s215, %s216
      %p228 = scmp.eq.s32.totalorder %s49, 1
      %p229 = por %p227, %p228
      %p231 = scmp.ne.s32.totalorder %s216, %s230
      %p232 = scmp.eq.s32.totalorder %s49, 0
      %p233 = por %p231, %p232
      %s235 = sadd.s32 %s234, 1
      %p238 = scmp.eq.s32.totalorder %s43, 1
      %p239 = scmp.ne.s32.totalorder %s234, %s236
      %p240 = scmp.eq.s32.totalorder %s43, 0
      %p241 = por %p239, %p240
      %p242 = scmp.ne.s32.totalorder %s234, %s236
      %p243 = scmp.eq.s32.totalorder %s48, 1
      %p244 = por %p242, %p243
      %p245 = scmp.ne.s32.totalorder %s236, %s237
      %p246 = scmp.eq.s32.totalorder %s48, 0
      %p247 = por %p245, %p246
      %p248 = scmp.ne.s32.totalorder %s236, %s237
      %p249 = scmp.eq.s32.totalorder %s49, 1
      %p250 = por %p248, %p249
      %p252 = scmp.ne.s32.totalorder %s237, %s251
      %p253 = scmp.eq.s32.totalorder %s49, 0
      %p254 = por %p252, %p253
      %s256 = sadd.s32 %s255, 1
      %p259 = scmp.eq.s32.totalorder %s43, 1
      %p260 = scmp.ne.s32.totalorder %s255, %s257
      %p261 = scmp.eq.s32.totalorder %s43, 0
      %p262 = por %p260, %p261
      %p263 = scmp.ne.s32.totalorder %s255, %s257
      %p264 = scmp.eq.s32.totalorder %s48, 1
      %p265 = por %p263, %p264
      %p266 = scmp.ne.s32.totalorder %s257, %s258
      %p267 = scmp.eq.s32.totalorder %s48, 0
      %p268 = por %p266, %p267
      %p269 = scmp.ne.s32.totalorder %s257, %s258
      %p270 = scmp.eq.s32.totalorder %s49, 1
      %p271 = por %p269, %p270
      %p273 = scmp.ne.s32.totalorder %s258, %s272
      %p274 = scmp.eq.s32.totalorder %s49, 0
      %p275 = por %p273, %p274
      %s277 = sadd.s32 %s276, 1
      %p280 = scmp.eq.s32.totalorder %s43, 1
      %p281 = scmp.ne.s32.totalorder %s276, %s278
      %p282 = scmp.eq.s32.totalorder %s43, 0
      %p283 = por %p281, %p282
      %p284 = scmp.ne.s32.totalorder %s276, %s278
      %p285 = scmp.eq.s32.totalorder %s48, 1
      %p286 = por %p284, %p285
      %p287 = scmp.ne.s32.totalorder %s278, %s279
      %p288 = scmp.eq.s32.totalorder %s48, 0
      %p289 = por %p287, %p288
      %p290 = scmp.ne.s32.totalorder %s278, %s279
      %p291 = scmp.eq.s32.totalorder %s49, 1
      %p292 = por %p290, %p291
      %p294 = scmp.ne.s32.totalorder %s279, %s293
      %p295 = scmp.eq.s32.totalorder %s49, 0
      %p296 = por %p294, %p295
      %s298 = sadd.s32 %s297, 1
      %p301 = scmp.eq.s32.totalorder %s43, 1
      %p302 = scmp.ne.s32.totalorder %s297, %s299
      %p303 = scmp.eq.s32.totalorder %s43, 0
      %p304 = por %p302, %p303
      %p305 = scmp.ne.s32.totalorder %s297, %s299
      %p306 = scmp.eq.s32.totalorder %s48, 1
      %p307 = por %p305, %p306
      %p308 = scmp.ne.s32.totalorder %s299, %s300
      %p309 = scmp.eq.s32.totalorder %s48, 0
      %p310 = por %p308, %p309
      %p311 = scmp.ne.s32.totalorder %s299, %s300
      %p312 = scmp.eq.s32.totalorder %s49, 1
      %p313 = por %p311, %p312
      %p315 = scmp.ne.s32.totalorder %s300, %s314
      %p316 = scmp.eq.s32.totalorder %s49, 0
      %p317 = por %p315, %p316
      %s319 = sadd.s32 %s318, 1
      %p322 = scmp.eq.s32.totalorder %s43, 1
      %p323 = scmp.ne.s32.totalorder %s318, %s320
      %p324 = scmp.eq.s32.totalorder %s43, 0
      %p325 = por %p323, %p324
      %p326 = scmp.ne.s32.totalorder %s318, %s320
      %p327 = scmp.eq.s32.totalorder %s48, 1
      %p328 = por %p326, %p327
      %p329 = scmp.ne.s32.totalorder %s320, %s321
      %p330 = scmp.eq.s32.totalorder %s48, 0
      %p331 = por %p329, %p330
      %p332 = scmp.ne.s32.totalorder %s320, %s321
      %p333 = scmp.eq.s32.totalorder %s49, 1
      %p334 = por %p332, %p333
      %p336 = scmp.ne.s32.totalorder %s321, %s335
      %p337 = scmp.eq.s32.totalorder %s49, 0
      %p338 = por %p336, %p337
      %s340 = sadd.s32 %s339, 1
      %p343 = scmp.eq.s32.totalorder %s43, 1
      %p344 = scmp.ne.s32.totalorder %s339, %s341
      %p345 = scmp.eq.s32.totalorder %s43, 0
      %p346 = por %p344, %p345
      %p347 = scmp.ne.s32.totalorder %s339, %s341
      %p348 = scmp.eq.s32.totalorder %s48, 1
      %p349 = por %p347, %p348
      %p350 = scmp.ne.s32.totalorder %s341, %s342
      %p351 = scmp.eq.s32.totalorder %s48, 0
      %p352 = por %p350, %p351
      %p353 = scmp.ne.s32.totalorder %s341, %s342
      %p354 = scmp.eq.s32.totalorder %s49, 1
      %p355 = por %p353, %p354
      %p357 = scmp.ne.s32.totalorder %s342, %s356
      %p358 = scmp.eq.s32.totalorder %s49, 0
      %p359 = por %p357, %p358
      %s361 = sadd.s32 %s360, 1
      %p364 = scmp.eq.s32.totalorder %s43, 1
      %p365 = scmp.ne.s32.totalorder %s360, %s362
      %p366 = scmp.eq.s32.totalorder %s43, 0
      %p367 = por %p365, %p366
      %p368 = scmp.ne.s32.totalorder %s360, %s362
      %p369 = scmp.eq.s32.totalorder %s48, 1
      %p370 = por %p368, %p369
      %p371 = scmp.ne.s32.totalorder %s362, %s363
      %p372 = scmp.eq.s32.totalorder %s48, 0
      %p373 = por %p371, %p372
      %p374 = scmp.ne.s32.totalorder %s362, %s363
      %p375 = scmp.eq.s32.totalorder %s49, 1
      %p376 = por %p374, %p375
      %p378 = scmp.ne.s32.totalorder %s363, %s377
      %p379 = scmp.eq.s32.totalorder %s49, 0
      %p380 = por %p378, %p379
      %s382 = sadd.s32 %s381, 1
      %p385 = scmp.eq.s32.totalorder %s43, 1
      %p386 = scmp.ne.s32.totalorder %s381, %s383
      %p387 = scmp.eq.s32.totalorder %s43, 0
      %p388 = por %p386, %p387
      %p389 = scmp.ne.s32.totalorder %s381, %s383
      %p390 = scmp.eq.s32.totalorder %s48, 1
      %p391 = por %p389, %p390
      %p392 = scmp.ne.s32.totalorder %s383, %s384
      %p393 = scmp.eq.s32.totalorder %s48, 0
      %p394 = por %p392, %p393
      %p395 = scmp.ne.s32.totalorder %s383, %s384
      %p396 = scmp.eq.s32.totalorder %s49, 1
      %p397 = por %p395, %p396
      %p399 = scmp.ne.s32.totalorder %s384, %s398
      %p400 = scmp.eq.s32.totalorder %s49, 0
      %p401 = por %p399, %p400
      %s402 = ssub.s32 %s43, %s50
      %p403 = scmp.eq.s32.totalorder %s402, 0
      %s405 = sadd.s32 %s404, 1
      %s406 = scalar_select %p403, %s404, %s405
      %p409 = pneg %p403
      %p410 = scmp.eq.s32.totalorder %s43, 1
      %p411 = por %p409, %p410
      %p412 = scmp.ne.s32.totalorder %s404, %s407
      %p413 = scmp.eq.s32.totalorder %s43, 0
      %p414 = por %p412, %p413
      %p415 = scmp.ne.s32.totalorder %s404, %s407
      %p416 = scmp.eq.s32.totalorder %s48, 1
      %p417 = por %p415, %p416
      %p418 = scmp.ne.s32.totalorder %s407, %s408
      %p419 = scmp.eq.s32.totalorder %s48, 0
      %p420 = por %p418, %p419
      %p421 = scmp.ne.s32.totalorder %s407, %s408
      %p422 = scmp.eq.s32.totalorder %s49, 1
      %p423 = por %p421, %p422
      %p425 = scmp.ne.s32.totalorder %s408, %s424
      %p426 = scmp.eq.s32.totalorder %s49, 0
      %p427 = por %p425, %p426
      %s428 = ssub.s32 %s43, %s50
      %p429 = scmp.eq.s32.totalorder %s428, 0
      %s431 = sadd.s32 %s430, 1
      %s432 = scalar_select %p429, %s430, %s431
      %p435 = pneg %p429
      %p436 = scmp.eq.s32.totalorder %s43, 1
      %p437 = por %p435, %p436
      %p438 = scmp.ne.s32.totalorder %s430, %s433
      %p439 = scmp.eq.s32.totalorder %s43, 0
      %p440 = por %p438, %p439
      %p441 = scmp.ne.s32.totalorder %s430, %s433
      %p442 = scmp.eq.s32.totalorder %s48, 1
      %p443 = por %p441, %p442
      %p444 = scmp.ne.s32.totalorder %s433, %s434
      %p445 = scmp.eq.s32.totalorder %s48, 0
      %p446 = por %p444, %p445
      %p447 = scmp.ne.s32.totalorder %s433, %s434
      %p448 = scmp.eq.s32.totalorder %s49, 1
      %p449 = por %p447, %p448
      %p451 = scmp.ne.s32.totalorder %s434, %s450
      %p452 = scmp.eq.s32.totalorder %s49, 0
      %p453 = por %p451, %p452
      %p454 = scmp.le.s32.totalorder 1, %s43
      %p455 = scmp.lt.s32.totalorder %s43, 3
      %p456 = pnand %p454, %p455
      %p457 = pneg %p456
      // Predicated region
      $region9: #{hyper_cond_decoder.1} parent=5 // pred_check
        _
      $region10: #{hyper_cond_decoder.1} parent=5 // pred_check_branch
        %459 = sbr.rel (%p456) target = $region12
      $region11: #{hyper_cond_decoder.1} parent=5 // pred_region
        %s460 = ssub.s32 %s43, 1
        // Predicated region
        $region13: #{hyper_cond_decoder.1} parent=11 // pred_check
          %p461 = pneg %p142
        $region14: #{hyper_cond_decoder.1} parent=11 // pred_check_branch
          %463 = sbr.rel (%p461) target = $region16
        $region15: #{hyper_cond_decoder.1} parent=11 // pred_region
          %s465 = ssub.s32 256, 256
          %466 = vsyncadd [#allocation9], %s465
          %s467 = sshll.u32 [#allocation8], 4
          %s468 = int_to_ptr.vmem [resolvable:$true] %s467
          %473 = dma.hbm_to_vmem [thread:$0]  %s3, 256, %s468, [#allocation9], 64, 64, 4
        $region16: #{hyper_cond_decoder.1} parent=11 // pred_fallthru
          _
        // Predicated region
        $region17: #{hyper_cond_decoder.1} parent=11 // pred_check
          %p474 = pneg %p163
        $region18: #{hyper_cond_decoder.1} parent=11 // pred_check_branch
          %476 = sbr.rel (%p474) target = $region20
        $region19: #{hyper_cond_decoder.1} parent=11 // pred_region
          %s478 = ssub.s32 256, 256
          %479 = vsyncadd [#allocation9], %s478
          %s480 = sshll.u32 [#allocation10], 4
          %s481 = int_to_ptr.vmem [resolvable:$true] %s480
          %486 = dma.hbm_to_vmem [thread:$0]  %s4, 256, %s481, [#allocation9], 64, 64, 4
        $region20: #{hyper_cond_decoder.1} parent=11 // pred_fallthru
          _
        // Predicated region
        $region21: #{hyper_cond_decoder.1} parent=11 // pred_check
          %p487 = pneg %p184
        $region22: #{hyper_cond_decoder.1} parent=11 // pred_check_branch
          %489 = sbr.rel (%p487) target = $region24
        $region23: #{hyper_cond_decoder.1} parent=11 // pred_region
          %s491 = ssub.s32 512, 512
          %492 = vsyncadd [#allocation12], %s491
          %s493 = sshll.u32 [#allocation11], 4
          %s494 = int_to_ptr.vmem [resolvable:$true] %s493
          %499 = dma.hbm_to_vmem [thread:$0]  %s5, 512, %s494, [#allocation12], 128, 128, 8
        $region24: #{hyper_cond_decoder.1} parent=11 // pred_fallthru
          _
        // Predicated region
        $region25: #{hyper_cond_decoder.1} parent=11 // pred_check
          %p500 = pneg %p205
        $region26: #{hyper_cond_decoder.1} parent=11 // pred_check_branch
          %502 = sbr.rel (%p500) target = $region28
        $region27: #{hyper_cond_decoder.1} parent=11 // pred_region
          %s504 = ssub.s32 32, 32
          %505 = vsyncadd [#allocation12], %s504
          %s507 = sshll.u32 [#allocation13], 4
          %s508 = int_to_ptr.vmem [resolvable:$true] %s507
          %510 = dma.hbm_to_vmem [thread:$0]  %s6, 32, %s508, [#allocation12]
        $region28: #{hyper_cond_decoder.1} parent=11 // pred_fallthru
          _
        // Predicated region
        $region29: #{hyper_cond_decoder.1} parent=11 // pred_check
          %p511 = pneg %p226
        $region30: #{hyper_cond_decoder.1} parent=11 // pred_check_branch
          %513 = sbr.rel (%p511) target = $region32
        $region31: #{hyper_cond_decoder.1} parent=11 // pred_region
          %s515 = ssub.s32 256, 256
          %516 = vsyncadd [#allocation15], %s515
          %s517 = sshll.u32 [#allocation14], 4
          %s518 = int_to_ptr.vmem [resolvable:$true] %s517
          %523 = dma.hbm_to_vmem [thread:$0]  %s7, 256, %s518, [#allocation15], 64, 64, 4
        $region32: #{hyper_cond_decoder.1} parent=11 // pred_fallthru
          _
        // Predicated region
        $region33: #{hyper_cond_decoder.1} parent=11 // pred_check
          %p524 = pneg %p247
        $region34: #{hyper_cond_decoder.1} parent=11 // pred_check_branch
          %526 = sbr.rel (%p524) target = $region36
        $region35: #{hyper_cond_decoder.1} parent=11 // pred_region
          %s528 = ssub.s32 512, 512
          %529 = vsyncadd [#allocation15], %s528
          %s530 = sshll.u32 [#allocation16], 4
          %s531 = int_to_ptr.vmem [resolvable:$true] %s530
          %536 = dma.hbm_to_vmem [thread:$0]  %s8, 512, %s531, [#allocation15], 128, 128, 8
        $region36: #{hyper_cond_decoder.1} parent=11 // pred_fallthru
          _
        // Predicated region
        $region37: #{hyper_cond_decoder.1} parent=11 // pred_check
          %p537 = pneg %p268
        $region38: #{hyper_cond_decoder.1} parent=11 // pred_check_branch
          %539 = sbr.rel (%p537) target = $region40
        $region39: #{hyper_cond_decoder.1} parent=11 // pred_region
          %s541 = ssub.s32 64, 64
          %542 = vsyncadd [#allocation18], %s541
          %s544 = sshll.u32 [#allocation17], 4
          %s545 = int_to_ptr.vmem [resolvable:$true] %s544
          %547 = dma.hbm_to_vmem [thread:$0]  %s9, 64, %s545, [#allocation18]
        $region40: #{hyper_cond_decoder.1} parent=11 // pred_fallthru
          _
        // Predicated region
        $region41: #{hyper_cond_decoder.1} parent=11 // pred_check
          %p548 = pneg %p289
        $region42: #{hyper_cond_decoder.1} parent=11 // pred_check_branch
          %550 = sbr.rel (%p548) target = $region44
        $region43: #{hyper_cond_decoder.1} parent=11 // pred_region
          %s552 = ssub.s32 64, 64
          %553 = vsyncadd [#allocation18], %s552
          %s555 = sshll.u32 [#allocation19], 4
          %s556 = int_to_ptr.vmem [resolvable:$true] %s555
          %558 = dma.hbm_to_vmem [thread:$0]  %s10, 64, %s556, [#allocation18]
        $region44: #{hyper_cond_decoder.1} parent=11 // pred_fallthru
          _
        // Predicated region
        $region45: #{hyper_cond_decoder.1} parent=11 // pred_check
          %p559 = pneg %p310
        $region46: #{hyper_cond_decoder.1} parent=11 // pred_check_branch
          %561 = sbr.rel (%p559) target = $region48
        $region47: #{hyper_cond_decoder.1} parent=11 // pred_region
          %s563 = ssub.s32 64, 64
          %564 = vsyncadd [#allocation21], %s563
          %s566 = sshll.u32 [#allocation20], 4
          %s567 = int_to_ptr.vmem [resolvable:$true] %s566
          %569 = dma.hbm_to_vmem [thread:$0]  %s11, 64, %s567, [#allocation21]
        $region48: #{hyper_cond_decoder.1} parent=11 // pred_fallthru
          _
        // Predicated region
        $region49: #{hyper_cond_decoder.1} parent=11 // pred_check
          %p570 = pneg %p331
        $region50: #{hyper_cond_decoder.1} parent=11 // pred_check_branch
          %572 = sbr.rel (%p570) target = $region52
        $region51: #{hyper_cond_decoder.1} parent=11 // pred_region
          %s574 = ssub.s32 128, 128
          %575 = vsyncadd [#allocation21], %s574
          %s577 = sshll.u32 [#allocation22], 4
          %s578 = int_to_ptr.vmem [resolvable:$true] %s577
          %580 = dma.hbm_to_vmem [thread:$0]  %s12, 128, %s578, [#allocation21]
        $region52: #{hyper_cond_decoder.1} parent=11 // pred_fallthru
          _
        // Predicated region
        $region53: #{hyper_cond_decoder.1} parent=11 // pred_check
          %p581 = pneg %p352
        $region54: #{hyper_cond_decoder.1} parent=11 // pred_check_branch
          %583 = sbr.rel (%p581) target = $region56
        $region55: #{hyper_cond_decoder.1} parent=11 // pred_region
          %s585 = ssub.s32 48, 48
          %586 = vsyncadd [#allocation24], %s585
          %s588 = sshll.u32 [#allocation23], 4
          %s589 = int_to_ptr.vmem [resolvable:$true] %s588
          %591 = dma.hbm_to_vmem [thread:$0]  %s13, 48, %s589, [#allocation24]
        $region56: #{hyper_cond_decoder.1} parent=11 // pred_fallthru
          _
        // Predicated region
        $region57: #{hyper_cond_decoder.1} parent=11 // pred_check
          %p592 = pneg %p373
        $region58: #{hyper_cond_decoder.1} parent=11 // pred_check_branch
          %594 = sbr.rel (%p592) target = $region60
        $region59: #{hyper_cond_decoder.1} parent=11 // pred_region
          %s596 = ssub.s32 128, 128
          %597 = vsyncadd [#allocation24], %s596
          %s598 = sshll.u32 [#allocation25], 4
          %s599 = int_to_ptr.vmem [resolvable:$true] %s598
          %604 = dma.hbm_to_vmem [thread:$0]  %s14, 128, %s599, [#allocation24], 64, 64, 4
        $region60: #{hyper_cond_decoder.1} parent=11 // pred_fallthru
          _
        // Predicated region
        $region61: #{hyper_cond_decoder.1} parent=11 // pred_check
          %p605 = pneg %p394
        $region62: #{hyper_cond_decoder.1} parent=11 // pred_check_branch
          %607 = sbr.rel (%p605) target = $region64
        $region63: #{hyper_cond_decoder.1} parent=11 // pred_region
          %s609 = ssub.s32 256, 256
          %610 = vsyncadd [#allocation27], %s609
          %s611 = sshll.u32 [#allocation26], 4
          %s612 = int_to_ptr.vmem [resolvable:$true] %s611
          %617 = dma.hbm_to_vmem [thread:$0]  %s15, 256, %s612, [#allocation27], 128, 128, 8
        $region64: #{hyper_cond_decoder.1} parent=11 // pred_fallthru
          _
      $region12: #{hyper_cond_decoder.1} parent=5 // pred_fallthru
        _
      %p618 = scmp.lt.s32.totalorder %s43, 2
      // Predicated region
      $region65: #{hyper_cond_decoder.1} parent=5 // pred_check
        %p619 = pneg %p618
      $region66: #{hyper_cond_decoder.1} parent=5 // pred_check_branch
        %621 = sbr.rel (%p619) target = $region68
      $region67: #{hyper_cond_decoder.1} parent=5 // pred_region
        // Predicated region
        $region69: #{hyper_cond_decoder.1} parent=67 // pred_check
          %p622 = pneg %p63
        $region70: #{hyper_cond_decoder.1} parent=67 // pred_check_branch
          %624 = sbr.rel (%p622) target = $region72
        $region71: #{hyper_cond_decoder.1} parent=67 // pred_region
          %s625 = sand.u32 %s53, 1
          %s626 = scalar_lea.sflag [#allocation3], %s625
          %s627 = sand.u32 %s53, 1
          %s628 = smul.addr %s627, 4
          %s629 = scalar_lea.vmem [#allocation2], %s628
          %s631 = ssub.s32 64, 64
          %632 = vsyncadd %s626, %s631
          %s633 = smul.addr %s43, 64
          %s634 = scalar_lea.hbm %s0, %s633
          %s636 = sshll.u32 %s629, 4
          %s637 = int_to_ptr.vmem [resolvable:$true] %s636
          %639 = dma.hbm_to_vmem [thread:$0]  %s634, 64, %s637, %s626
        $region72: #{hyper_cond_decoder.1} parent=67 // pred_fallthru
          _
        // Predicated region
        $region73: #{hyper_cond_decoder.1} parent=67 // pred_check
          %p640 = pneg %p89
        $region74: #{hyper_cond_decoder.1} parent=67 // pred_check_branch
          %642 = sbr.rel (%p640) target = $region76
        $region75: #{hyper_cond_decoder.1} parent=67 // pred_region
          %s643 = sand.u32 %s43, 1
          %s644 = scalar_lea.sflag [#allocation6], %s643
          %s645 = sand.u32 %s79, 1
          %s646 = smul.addr %s645, 4
          %s647 = scalar_lea.vmem [#allocation5], %s646
          %s649 = ssub.s32 64, 64
          %650 = vsyncadd %s644, %s649
          %s651 = smul.addr %s43, 64
          %s652 = scalar_lea.hbm %s1, %s651
          %s654 = sshll.u32 %s647, 4
          %s655 = int_to_ptr.vmem [resolvable:$true] %s654
          %657 = dma.hbm_to_vmem [thread:$0]  %s652, 64, %s655, %s644
        $region76: #{hyper_cond_decoder.1} parent=67 // pred_fallthru
          _
        // Predicated region
        $region77: #{hyper_cond_decoder.1} parent=67 // pred_check
          %p658 = pneg %p115
        $region78: #{hyper_cond_decoder.1} parent=67 // pred_check_branch
          %660 = sbr.rel (%p658) target = $region80
        $region79: #{hyper_cond_decoder.1} parent=67 // pred_region
          %s661 = sand.u32 %s43, 1
          %s662 = scalar_lea.sflag [#allocation6], %s661
          %s663 = sand.u32 %s105, 1
          %s664 = smul.addr %s663, 8
          %s665 = scalar_lea.vmem [#allocation7], %s664
          %s667 = ssub.s32 128, 128
          %668 = vsyncadd %s662, %s667
          %s669 = smul.addr %s43, 2
          %s670 = smul.addr %s669, 64
          %s671 = scalar_lea.hbm %s2, %s670
          %s673 = sshll.u32 %s665, 4
          %s674 = int_to_ptr.vmem [resolvable:$true] %s673
          %676 = dma.hbm_to_vmem [thread:$0]  %s671, 128, %s674, %s662
        $region80: #{hyper_cond_decoder.1} parent=67 // pred_fallthru
          _
      $region68: #{hyper_cond_decoder.1} parent=5 // pred_fallthru
        _
      %p677 = scmp.le.s32.totalorder 1, %s43
      %p678 = scmp.lt.s32.totalorder %s43, 3
      %p679 = pnand %p677, %p678
      %p680 = pneg %p679
      // Predicated region
      $region81: #{hyper_cond_decoder.1} parent=5 // pred_check
        _
      $region82: #{hyper_cond_decoder.1} parent=5 // pred_check_branch
        %682 = sbr.rel (%p679) target = $region84
      $region83: #{hyper_cond_decoder.1} parent=5 // pred_region
        %s683 = ssub.s32 %s43, 1
        %s684 = sand.u32 %s56, 1
        %s685 = scalar_lea.sflag [#allocation3], %s684
        %s686 = sand.u32 %s56, 1
        %s687 = smul.addr %s686, 4
        %s688 = scalar_lea.vmem [#allocation2], %s687
        // Predicated region
        $region85: #{hyper_cond_decoder.1} parent=83 // pred_check
          %p689 = pneg %p69
        $region86: #{hyper_cond_decoder.1} parent=83 // pred_check_branch
          %691 = sbr.rel (%p689) target = $region88
        $region87: #{hyper_cond_decoder.1} parent=83 // pred_region
          %692 = dma.done %s685, 64
        $region88: #{hyper_cond_decoder.1} parent=83 // pred_fallthru
          _
        %s693 = sand.u32 %s48, 1
        %s694 = scalar_lea.sflag [#allocation6], %s693
        %s695 = sand.u32 %s82, 1
        %s696 = smul.addr %s695, 4
        %s697 = scalar_lea.vmem [#allocation5], %s696
        // Predicated region
        $region89: #{hyper_cond_decoder.1} parent=83 // pred_check
          %p698 = pneg %p95
        $region90: #{hyper_cond_decoder.1} parent=83 // pred_check_branch
          %700 = sbr.rel (%p698) target = $region92
        $region91: #{hyper_cond_decoder.1} parent=83 // pred_region
          %701 = dma.done %s694, 64
        $region92: #{hyper_cond_decoder.1} parent=83 // pred_fallthru
          _
        %s702 = sand.u32 %s48, 1
        %s703 = scalar_lea.sflag [#allocation6], %s702
        %s704 = sand.u32 %s108, 1
        %s705 = smul.addr %s704, 8
        %s706 = scalar_lea.vmem [#allocation7], %s705
        // Predicated region
        $region93: #{hyper_cond_decoder.1} parent=83 // pred_check
          %p707 = pneg %p121
        $region94: #{hyper_cond_decoder.1} parent=83 // pred_check_branch
          %709 = sbr.rel (%p707) target = $region96
        $region95: #{hyper_cond_decoder.1} parent=83 // pred_region
          %710 = dma.done %s703, 128
        $region96: #{hyper_cond_decoder.1} parent=83 // pred_fallthru
          _
        // Predicated region
        $region97: #{hyper_cond_decoder.1} parent=83 // pred_check
          %p711 = pneg %p142
        $region98: #{hyper_cond_decoder.1} parent=83 // pred_check_branch
          %713 = sbr.rel (%p711) target = $region100
        $region99: #{hyper_cond_decoder.1} parent=83 // pred_region
          %714 = dma.done [#allocation9], 256
        $region100: #{hyper_cond_decoder.1} parent=83 // pred_fallthru
          _
        // Predicated region
        $region101: #{hyper_cond_decoder.1} parent=83 // pred_check
          %p715 = pneg %p163
        $region102: #{hyper_cond_decoder.1} parent=83 // pred_check_branch
          %717 = sbr.rel (%p715) target = $region104
        $region103: #{hyper_cond_decoder.1} parent=83 // pred_region
          %718 = dma.done [#allocation9], 256
        $region104: #{hyper_cond_decoder.1} parent=83 // pred_fallthru
          _
        // Predicated region
        $region105: #{hyper_cond_decoder.1} parent=83 // pred_check
          %p719 = pneg %p184
        $region106: #{hyper_cond_decoder.1} parent=83 // pred_check_branch
          %721 = sbr.rel (%p719) target = $region108
        $region107: #{hyper_cond_decoder.1} parent=83 // pred_region
          %722 = dma.done [#allocation12], 512
        $region108: #{hyper_cond_decoder.1} parent=83 // pred_fallthru
          _
        // Predicated region
        $region109: #{hyper_cond_decoder.1} parent=83 // pred_check
          %p723 = pneg %p205
        $region110: #{hyper_cond_decoder.1} parent=83 // pred_check_branch
          %725 = sbr.rel (%p723) target = $region112
        $region111: #{hyper_cond_decoder.1} parent=83 // pred_region
          %726 = dma.done [#allocation12], 32
        $region112: #{hyper_cond_decoder.1} parent=83 // pred_fallthru
          _
        // Predicated region
        $region113: #{hyper_cond_decoder.1} parent=83 // pred_check
          %p727 = pneg %p226
        $region114: #{hyper_cond_decoder.1} parent=83 // pred_check_branch
          %729 = sbr.rel (%p727) target = $region116
        $region115: #{hyper_cond_decoder.1} parent=83 // pred_region
          %730 = dma.done [#allocation15], 256
        $region116: #{hyper_cond_decoder.1} parent=83 // pred_fallthru
          _
        // Predicated region
        $region117: #{hyper_cond_decoder.1} parent=83 // pred_check
          %p731 = pneg %p247
        $region118: #{hyper_cond_decoder.1} parent=83 // pred_check_branch
          %733 = sbr.rel (%p731) target = $region120
        $region119: #{hyper_cond_decoder.1} parent=83 // pred_region
          %734 = dma.done [#allocation15], 512
        $region120: #{hyper_cond_decoder.1} parent=83 // pred_fallthru
          _
        // Predicated region
        $region121: #{hyper_cond_decoder.1} parent=83 // pred_check
          %p735 = pneg %p268
        $region122: #{hyper_cond_decoder.1} parent=83 // pred_check_branch
          %737 = sbr.rel (%p735) target = $region124
        $region123: #{hyper_cond_decoder.1} parent=83 // pred_region
          %738 = dma.done [#allocation18], 64
        $region124: #{hyper_cond_decoder.1} parent=83 // pred_fallthru
          _
        // Predicated region
        $region125: #{hyper_cond_decoder.1} parent=83 // pred_check
          %p739 = pneg %p289
        $region126: #{hyper_cond_decoder.1} parent=83 // pred_check_branch
          %741 = sbr.rel (%p739) target = $region128
        $region127: #{hyper_cond_decoder.1} parent=83 // pred_region
          %742 = dma.done [#allocation18], 64
        $region128: #{hyper_cond_decoder.1} parent=83 // pred_fallthru
          _
        // Predicated region
        $region129: #{hyper_cond_decoder.1} parent=83 // pred_check
          %p743 = pneg %p310
        $region130: #{hyper_cond_decoder.1} parent=83 // pred_check_branch
          %745 = sbr.rel (%p743) target = $region132
        $region131: #{hyper_cond_decoder.1} parent=83 // pred_region
          %746 = dma.done [#allocation21], 64
        $region132: #{hyper_cond_decoder.1} parent=83 // pred_fallthru
          _
        // Predicated region
        $region133: #{hyper_cond_decoder.1} parent=83 // pred_check
          %p747 = pneg %p331
        $region134: #{hyper_cond_decoder.1} parent=83 // pred_check_branch
          %749 = sbr.rel (%p747) target = $region136
        $region135: #{hyper_cond_decoder.1} parent=83 // pred_region
          %750 = dma.done [#allocation21], 128
        $region136: #{hyper_cond_decoder.1} parent=83 // pred_fallthru
          _
        // Predicated region
        $region137: #{hyper_cond_decoder.1} parent=83 // pred_check
          %p751 = pneg %p352
        $region138: #{hyper_cond_decoder.1} parent=83 // pred_check_branch
          %753 = sbr.rel (%p751) target = $region140
        $region139: #{hyper_cond_decoder.1} parent=83 // pred_region
          %754 = dma.done [#allocation24], 48
        $region140: #{hyper_cond_decoder.1} parent=83 // pred_fallthru
          _
        // Predicated region
        $region141: #{hyper_cond_decoder.1} parent=83 // pred_check
          %p755 = pneg %p373
        $region142: #{hyper_cond_decoder.1} parent=83 // pred_check_branch
          %757 = sbr.rel (%p755) target = $region144
        $region143: #{hyper_cond_decoder.1} parent=83 // pred_region
          %758 = dma.done [#allocation24], 128
        $region144: #{hyper_cond_decoder.1} parent=83 // pred_fallthru
          _
        // Predicated region
        $region145: #{hyper_cond_decoder.1} parent=83 // pred_check
          %p759 = pneg %p394
        $region146: #{hyper_cond_decoder.1} parent=83 // pred_check_branch
          %761 = sbr.rel (%p759) target = $region148
        $region147: #{hyper_cond_decoder.1} parent=83 // pred_region
          %762 = dma.done [#allocation27], 256
        $region148: #{hyper_cond_decoder.1} parent=83 // pred_fallthru
          _
        %s763 = sand.u32 %s56, 1
        %s764 = scalar_lea.sflag [#allocation3], %s763
        %s765 = sand.u32 %s56, 1
        %s766 = smul.addr %s765, 4
        %s767 = scalar_lea.vmem [#allocation2], %s766
        %p768 = pneg %p69
        %p769 = pneg %p66
        %s770 = sand.u32 %s48, 1
        %s771 = scalar_lea.sflag [#allocation6], %s770
        %s772 = sand.u32 %s82, 1
        %s773 = smul.addr %s772, 4
        %s774 = scalar_lea.vmem [#allocation5], %s773
        %p775 = pneg %p95
        %p776 = pneg %p92
        %s777 = sand.u32 %s48, 1
        %s778 = scalar_lea.sflag [#allocation6], %s777
        %s779 = sand.u32 %s108, 1
        %s780 = smul.addr %s779, 8
        %s781 = scalar_lea.vmem [#allocation7], %s780
        %p782 = pneg %p121
        %p783 = pneg %p118
        %p784 = pneg %p142
        %p785 = pneg %p139
        %p786 = pneg %p163
        %p787 = pneg %p160
        %p788 = pneg %p184
        %p789 = pneg %p181
        %p790 = pneg %p205
        %p791 = pneg %p202
        %p792 = pneg %p226
        %p793 = pneg %p223
        %p794 = pneg %p247
        %p795 = pneg %p244
        %p796 = pneg %p268
        %p797 = pneg %p265
        %p798 = pneg %p289
        %p799 = pneg %p286
        %p800 = pneg %p310
        %p801 = pneg %p307
        %p802 = pneg %p331
        %p803 = pneg %p328
        %p804 = pneg %p352
        %p805 = pneg %p349
        %p806 = pneg %p373
        %p807 = pneg %p370
        %p808 = pneg %p394
        %p809 = pneg %p391
        %p810 = pneg %p420
        %p811 = pneg %p417
        %s812 = sand.u32 %s407, 1
        %s813 = scalar_lea.sflag [#allocation4], %s812
        %s814 = sand.u32 %s407, 1
        %s815 = smul.addr %s814, 16
        %s816 = scalar_lea.vmem [#allocation28], %s815
        %p817 = pneg %p446
        %p818 = pneg %p443
        %s819 = sand.u32 %s433, 1
        %s820 = scalar_lea.sflag [#allocation30], %s819
        %s821 = sand.u32 %s433, 1
        %s822 = smul.addr %s821, 16
        %s823 = scalar_lea.vmem [#allocation29], %s822
        %v825 = vld [vmem:[%s688] sm:$0xf]
        %v826 = vpack.c.bf16 %v825, %v825
        %v827 = vld [vmem:[%s697] sm:$0xf]
        %v828 = vpack.c.bf16 %v827, %v827
        %v829 = vld [vmem:[%s706] sm:$0xff]
        %v831 = vcombine.high %v829, %v829
        %v833 = vpack.c.bf16 %v829, %v829
        %v834 = vpack.c.bf16 %v831, %v831
        %836 = vrot.lane.b32.xlu0 %v826, 7
        %v837 = vpop.permute.xlu0 %836
        %838 = vrot.lane.b32.xlu0 %v826, 9
        %v839 = vpop.permute.xlu0 %838
        %840 = vrot.lane.b32.xlu0 %v826, 11
        %v841 = vpop.permute.xlu0 %840
        %842 = vrot.lane.b32.xlu0 %v826, 13
        %v843 = vpop.permute.xlu0 %842
        %vm844 = vcmask 56320
        %v847 = vsel %vm844, 0, %v837
        %vm848 = vcmask 89088
        %v849 = vsel %vm848, %v847, 0
        %vm850 = vcmask 105472
        %v852 = vsel %vm850, %v849, %v839
        %vm853 = vcmask 138240
        %v854 = vsel %vm853, %v852, 0
        %vm855 = vcmask 154624
        %v857 = vsel %vm855, %v854, %v841
        %vm858 = vcmask 187392
        %v859 = vsel %vm858, %v857, 0
        %vm860 = vcmask 203776
        %v862 = vsel %vm860, %v859, %v843
        %vm863 = vcmask 236544
        %v864 = vsel %vm863, %v862, 0
        %866 = vrot.lane.b32.xlu0 %v828, 7
        %v867 = vpop.permute.xlu0 %866
        %868 = vrot.lane.b32.xlu0 %v828, 9
        %v869 = vpop.permute.xlu0 %868
        %870 = vrot.lane.b32.xlu0 %v828, 11
        %v871 = vpop.permute.xlu0 %870
        %872 = vrot.lane.b32.xlu0 %v828, 13
        %v873 = vpop.permute.xlu0 %872
        %v875 = vsel %vm844, 0, %v867
        %v876 = vsel %vm848, %v875, 0
        %v878 = vsel %vm850, %v876, %v869
        %v879 = vsel %vm853, %v878, 0
        %v881 = vsel %vm855, %v879, %v871
        %v882 = vsel %vm858, %v881, 0
        %v884 = vsel %vm860, %v882, %v873
        %v885 = vsel %vm863, %v884, 0
        %v886 = vld [vmem:[#allocation8] sm:$0xf]
        %v887 = vld [vmem:[#allocation8 + $0x4] sm:$0xf]
        %v888 = vld [vmem:[#allocation8 + $0x8] sm:$0xf]
        %v889 = vld [vmem:[#allocation8 + $0xc] sm:$0xf]
        %v891 = vrot.slane %v864, 6
        %892 = vrot.lane.b32.xlu0 %v891, 127
        %v893 = vpop.permute.xlu0 %892
        %v894 = vrot.slane %v864, 4
        %895 = vrot.lane.b32.xlu0 %v894, 126
        %v896 = vpop.permute.xlu0 %895
        %v897 = vrot.slane %v864, 2
        %898 = vrot.lane.b32.xlu0 %v897, 122
        %v899 = vpop.permute.xlu0 %898
        %900 = vrot.lane.b32.xlu0 %v864, 121
        %v901 = vpop.permute.xlu0 %900
        %902 = vrot.lane.b32.xlu0 %v891, 120
        %v903 = vpop.permute.xlu0 %902
        %904 = vrot.lane.b32.xlu0 %v894, 116
        %v905 = vpop.permute.xlu0 %904
        %906 = vrot.lane.b32.xlu0 %v897, 115
        %v907 = vpop.permute.xlu0 %906
        %908 = vrot.lane.b32.xlu0 %v864, 114
        %v909 = vpop.permute.xlu0 %908
        %vm910 = vcmask 1041408
        %v912 = vsel %vm910, %v864, %v893
        %vm913 = vcmask 1043456
        %v915 = vsel %vm913, %v912, %v896
        %vm916 = vcmask 1045504
        %v918 = vsel %vm916, %v915, %v899
        %v922 = vsel %vm910, %v901, %v903
        %v924 = vsel %vm913, %v922, %v905
        %v926 = vsel %vm916, %v924, %v907
        %v928 = vld [vmem:[#allocation10] sm:$0xf]
        %v929 = vld [vmem:[#allocation10 + $0x4] sm:$0xf]
        %v930 = vld [vmem:[#allocation10 + $0x8] sm:$0xf]
        %v931 = vld [vmem:[#allocation10 + $0xc] sm:$0xf]
        %v933 = vrot.slane %v885, 6
        %934 = vrot.lane.b32.xlu0 %v933, 127
        %v935 = vpop.permute.xlu0 %934
        %v936 = vrot.slane %v885, 4
        %937 = vrot.lane.b32.xlu0 %v936, 126
        %v938 = vpop.permute.xlu0 %937
        %v939 = vrot.slane %v885, 2
        %940 = vrot.lane.b32.xlu0 %v939, 122
        %v941 = vpop.permute.xlu0 %940
        %942 = vrot.lane.b32.xlu0 %v885, 121
        %v943 = vpop.permute.xlu0 %942
        %944 = vrot.lane.b32.xlu0 %v933, 120
        %v945 = vpop.permute.xlu0 %944
        %946 = vrot.lane.b32.xlu0 %v936, 116
        %v947 = vpop.permute.xlu0 %946
        %948 = vrot.lane.b32.xlu0 %v939, 115
        %v949 = vpop.permute.xlu0 %948
        %950 = vrot.lane.b32.xlu0 %v885, 114
        %v951 = vpop.permute.xlu0 %950
        %v953 = vsel %vm910, %v885, %v935
        %v955 = vsel %vm913, %v953, %v938
        %v957 = vsel %vm916, %v955, %v941
        %v961 = vsel %vm910, %v943, %v945
        %v963 = vsel %vm913, %v961, %v947
        %v965 = vsel %vm916, %v963, %v949
        %v971 = vunpack.c.l.b16 %v928
        %v972 = vunpack.c.l.b16 %v929
        %v973 = vunpack.c.l.b16 %v930
        %v974 = vunpack.c.l.b16 %v931
        %v975 = vpack.c.b16 %v972, %v971
        %v976 = vpack.c.b16 %v974, %v973
        %vm977 = vcmask 293888
        %v979 = vsel %vm977, %v975, 0
        %v982 = vsel %vm977, %v976, 0
        %v985 = vsel %vm910, %v951, 0
        %987 = vmatprep.subr.bf16.mxu0 0
        %988 = vmatpush1.bf16.msra.mxu0 %v957
        %989 = vmatprep.subr.bf16.mxu0 0
        %990 = vmatpush1.bf16.msra.mxu0 %v965
        %991 = vmatprep.subr.bf16.mxu0 0
        %992 = vmatpush1.bf16.msra.mxu0 %v985
        %993 = vmatprep.subr.bf16.mxu0 0
        %994 = vmatpush1.bf16.msra.mxu0 0
        %995 = vmatprep.subr.bf16.mxu0 0
        %996 = vmatpush1.bf16.msra.mxu0 0
        %997 = vmatprep.subr.bf16.mxu0 0
        %998 = vmatpush1.bf16.msra.mxu0 0
        %999 = vmatprep.subr.bf16.mxu0 0
        %1000 = vmatpush1.bf16.msra.mxu0 0
        %1001 = vmatprep.subr.bf16.mxu0 0
        %1002 = vmatpush1.bf16.msra.mxu0 0
        %1003 = vmatprep.subr.bf16.mxu0 0
        %1004 = vmatpush1.bf16.msra.mxu0 0
        %1005 = vmatprep.subr.bf16.mxu0 0
        %1006 = vmatpush1.bf16.msra.mxu0 0
        %1007 = vmatprep.subr.bf16.mxu0 0
        %1008 = vmatpush1.bf16.msra.mxu0 0
        %1009 = vmatprep.subr.bf16.mxu0 0
        %1010 = vmatpush1.bf16.msra.mxu0 0
        %1011 = vmatprep.subr.bf16.mxu0 0
        %1012 = vmatpush1.bf16.msra.mxu0 0
        %1013 = vmatprep.subr.bf16.mxu0 0
        %1014 = vmatpush1.bf16.msra.mxu0 0
        %1015 = vmatprep.subr.bf16.mxu0 0
        %1016 = vmatpush1.bf16.msra.mxu0 0
        %1017 = vmatprep.subr.bf16.mxu0 0
        %1018 = vmatpush1.bf16.msra.mxu0 0
        %1019 = vmatprep.mubr.bf16.mxu0 0
        %1020 = vmatmul.mubr.bf16.gmra.mrb[0].mxu0 %v979
        %v1021 = vpop.f32.mrb[0].mxu0
        %v1022 = vadd.f32 0.0, %v1021
        %v1023 = vpop.f32.mrb[0].mxu0
        %v1024 = vpop.f32.mrb[0].mxu0
        %v1025 = vadd.f32 0.0, %v1024
        %v1026 = vpop.f32.mrb[0].mxu0
        %1027 = vmatprep.mubr.bf16.mxu0 0
        %1028 = vmatmul.mubr.bf16.gmra.mrb[0].mxu0 %v982
        %v1029 = vpop.f32.mrb[0].mxu0
        %v1030 = vadd.f32 0.0, %v1029
        %v1031 = vpop.f32.mrb[0].mxu0
        %v1032 = vpop.f32.mrb[0].mxu0
        %v1033 = vadd.f32 0.0, %v1032
        %v1034 = vpop.f32.mrb[0].mxu0
        %1035 = vdwg.mxu0
        %v1040 = vunpack.c.l.b16 %v886
        %v1041 = vunpack.c.l.b16 %v887
        %v1042 = vunpack.c.l.b16 %v888
        %v1043 = vunpack.c.l.b16 %v889
        %v1044 = vpack.c.b16 %v1041, %v1040
        %v1045 = vpack.c.b16 %v1043, %v1042
        %v1047 = vsel %vm977, %v1044, 0
        %v1050 = vsel %vm977, %v1045, 0
        %v1053 = vsel %vm910, %v909, 0
        %1055 = vmatprep.subr.bf16.mxu0 0
        %1056 = vmatpush1.bf16.msra.mxu0 %v918
        %1057 = vmatprep.subr.bf16.mxu0 0
        %1058 = vmatpush1.bf16.msra.mxu0 %v926
        %1059 = vmatprep.subr.bf16.mxu0 0
        %1060 = vmatpush1.bf16.msra.mxu0 %v1053
        %1061 = vmatprep.subr.bf16.mxu0 0
        %1062 = vmatpush1.bf16.msra.mxu0 0
        %1063 = vmatprep.subr.bf16.mxu0 0
        %1064 = vmatpush1.bf16.msra.mxu0 0
        %1065 = vmatprep.subr.bf16.mxu0 0
        %1066 = vmatpush1.bf16.msra.mxu0 0
        %1067 = vmatprep.subr.bf16.mxu0 0
        %1068 = vmatpush1.bf16.msra.mxu0 0
        %1069 = vmatprep.subr.bf16.mxu0 0
        %1070 = vmatpush1.bf16.msra.mxu0 0
        %1071 = vmatprep.subr.bf16.mxu0 0
        %1072 = vmatpush1.bf16.msra.mxu0 0
        %1073 = vmatprep.subr.bf16.mxu0 0
        %1074 = vmatpush1.bf16.msra.mxu0 0
        %1075 = vmatprep.subr.bf16.mxu0 0
        %1076 = vmatpush1.bf16.msra.mxu0 0
        %1077 = vmatprep.subr.bf16.mxu0 0
        %1078 = vmatpush1.bf16.msra.mxu0 0
        %1079 = vmatprep.subr.bf16.mxu0 0
        %1080 = vmatpush1.bf16.msra.mxu0 0
        %1081 = vmatprep.subr.bf16.mxu0 0
        %1082 = vmatpush1.bf16.msra.mxu0 0
        %1083 = vmatprep.subr.bf16.mxu0 0
        %1084 = vmatpush1.bf16.msra.mxu0 0
        %1085 = vmatprep.subr.bf16.mxu0 0
        %1086 = vmatpush1.bf16.msra.mxu0 0
        %1087 = vmatprep.mubr.bf16.mxu0 0
        %1088 = vmatmul.mubr.bf16.gmra.mrb[0].mxu0 %v1047
        %v1089 = vpop.f32.mrb[0].mxu0
        %v1090 = vadd.f32 %v1022, %v1089
        %v1091 = vpop.f32.mrb[0].mxu0
        %v1092 = vpop.f32.mrb[0].mxu0
        %v1093 = vadd.f32 %v1025, %v1092
        %v1094 = vpop.f32.mrb[0].mxu0
        %1095 = vmatprep.mubr.bf16.mxu0 0
        %1096 = vmatmul.mubr.bf16.gmra.mrb[0].mxu0 %v1050
        %v1097 = vpop.f32.mrb[0].mxu0
        %v1098 = vadd.f32 %v1030, %v1097
        %v1099 = vpop.f32.mrb[0].mxu0
        %v1100 = vpop.f32.mrb[0].mxu0
        %v1101 = vadd.f32 %v1033, %v1100
        %v1102 = vpop.f32.mrb[0].mxu0
        %1103 = vdwg.mxu0
        %v1104 = vld [vmem:[#allocation11] sm:$0xff]
        %v1105 = vld [vmem:[#allocation11 + $0x8] sm:$0xff]
        %v1106 = vld [vmem:[#allocation11 + $0x10] sm:$0xff]
        %v1107 = vld [vmem:[#allocation11 + $0x18] sm:$0xff]
        %1109 = vset.pattern.permute.xlu0 0
        %1110 = vperm.xlu0 %1109, %v1104
        %v1111 = vpop.permute.xlu0 %1110
        %1114 = vset.pattern.permute.xlu0 0
        %1115 = vperm.xlu0 %1114, %v1105
        %v1116 = vpop.permute.xlu0 %1115
        %1119 = vset.pattern.permute.xlu0 0
        %1120 = vperm.xlu0 %1119, %v1106
        %v1121 = vpop.permute.xlu0 %1120
        %1124 = vset.pattern.permute.xlu0 0
        %1125 = vperm.xlu0 %1124, %v1107
        %v1126 = vpop.permute.xlu0 %1125
        %v1128 = vadd.f32 %v1090, %v1111
        %v1129 = vadd.f32 %v1093, %v1116
        %v1130 = vadd.f32 %v1098, %v1121
        %v1131 = vadd.f32 %v1101, %v1126
        %v1132 = vmax.f32 %v1128, 0.0
        %v1133 = vmax.f32 %v1129, 0.0
        %v1134 = vmax.f32 %v1130, 0.0
        %v1135 = vmax.f32 %v1131, 0.0
        %v1136 = vpack.c.bf16 %v1133, %v1132
        %v1137 = vpack.c.bf16 %v1135, %v1134
        %v1138 = vld [vmem:[#allocation13] sm:$0x3]
        %vm1139 = vcmask 31744
        %v1141 = vsel %vm1139, %v1136, 0
        %v1144 = vsel %vm1139, %v1137, 0
        %v1147 = vsel %vm910, %v1138, 0
        %1149 = vmatprep.subr.bf16.mxu0 0
        %1150 = vmatpush1.bf16.msra.mxu0 %v1147
        %1151 = vmatprep.subr.bf16.mxu0 0
        %1152 = vmatpush1.bf16.msra.mxu0 0
        %1153 = vmatprep.subr.bf16.mxu0 0
        %1154 = vmatpush1.bf16.msra.mxu0 0
        %1155 = vmatprep.subr.bf16.mxu0 0
        %1156 = vmatpush1.bf16.msra.mxu0 0
        %1157 = vmatprep.subr.bf16.mxu0 0
        %1158 = vmatpush1.bf16.msra.mxu0 0
        %1159 = vmatprep.subr.bf16.mxu0 0
        %1160 = vmatpush1.bf16.msra.mxu0 0
        %1161 = vmatprep.subr.bf16.mxu0 0
        %1162 = vmatpush1.bf16.msra.mxu0 0
        %1163 = vmatprep.subr.bf16.mxu0 0
        %1164 = vmatpush1.bf16.msra.mxu0 0
        %1165 = vmatprep.subr.bf16.mxu0 0
        %1166 = vmatpush1.bf16.msra.mxu0 0
        %1167 = vmatprep.subr.bf16.mxu0 0
        %1168 = vmatpush1.bf16.msra.mxu0 0
        %1169 = vmatprep.subr.bf16.mxu0 0
        %1170 = vmatpush1.bf16.msra.mxu0 0
        %1171 = vmatprep.subr.bf16.mxu0 0
        %1172 = vmatpush1.bf16.msra.mxu0 0
        %1173 = vmatprep.subr.bf16.mxu0 0
        %1174 = vmatpush1.bf16.msra.mxu0 0
        %1175 = vmatprep.subr.bf16.mxu0 0
        %1176 = vmatpush1.bf16.msra.mxu0 0
        %1177 = vmatprep.subr.bf16.mxu0 0
        %1178 = vmatpush1.bf16.msra.mxu0 0
        %1179 = vmatprep.subr.bf16.mxu0 0
        %1180 = vmatpush1.bf16.msra.mxu0 0
        %1181 = vmatprep.mubr.bf16.mxu0 0
        %1182 = vmatmul.mubr.bf16.gmra.mrb[0].mxu0 %v1141
        %v1183 = vpop.f32.mrb[0].mxu0
        %v1184 = vadd.f32 0.0, %v1183
        %v1185 = vpop.f32.mrb[0].mxu0
        %v1186 = vpop.f32.mrb[0].mxu0
        %v1187 = vadd.f32 0.0, %v1186
        %v1188 = vpop.f32.mrb[0].mxu0
        %1189 = vmatprep.mubr.bf16.mxu0 0
        %1190 = vmatmul.mubr.bf16.gmra.mrb[0].mxu0 %v1144
        %v1191 = vpop.f32.mrb[0].mxu0
        %v1192 = vadd.f32 0.0, %v1191
        %v1193 = vpop.f32.mrb[0].mxu0
        %v1194 = vpop.f32.mrb[0].mxu0
        %v1195 = vadd.f32 0.0, %v1194
        %v1196 = vpop.f32.mrb[0].mxu0
        %1197 = vdwg.mxu0
        %1199 = vrot.lane.b32.xlu0 %v1187, 118
        %v1200 = vpop.permute.xlu0 %1199
        %v1202 = vadd.f32 %v1184, %v1200
        %v1203 = vpack.c.bf16 %v1202, %v1202
        %1205 = vrot.lane.b32.xlu0 %v1195, 118
        %v1206 = vpop.permute.xlu0 %1205
        %v1208 = vadd.f32 %v1192, %v1206
        %v1209 = vpack.c.bf16 %v1208, %v1208
        %1212 = vrot.lane.b32.xlu0 %v1136, 122
        %v1213 = vpop.permute.xlu0 %1212
        %1214 = vrot.lane.b32.xlu0 %v1137, 122
        %v1215 = vpop.permute.xlu0 %1214
        %v1217 = vsel %vm1139, %v1213, 0
        %v1220 = vsel %vm1139, %v1215, 0
        %1222 = vmatprep.subr.bf16.mxu0 0
        %1223 = vmatpush1.bf16.msra.mxu0 %v1147
        %1224 = vmatprep.subr.bf16.mxu0 0
        %1225 = vmatpush1.bf16.msra.mxu0 0
        %1226 = vmatprep.subr.bf16.mxu0 0
        %1227 = vmatpush1.bf16.msra.mxu0 0
        %1228 = vmatprep.subr.bf16.mxu0 0
        %1229 = vmatpush1.bf16.msra.mxu0 0
        %1230 = vmatprep.subr.bf16.mxu0 0
        %1231 = vmatpush1.bf16.msra.mxu0 0
        %1232 = vmatprep.subr.bf16.mxu0 0
        %1233 = vmatpush1.bf16.msra.mxu0 0
        %1234 = vmatprep.subr.bf16.mxu0 0
        %1235 = vmatpush1.bf16.msra.mxu0 0
        %1236 = vmatprep.subr.bf16.mxu0 0
        %1237 = vmatpush1.bf16.msra.mxu0 0
        %1238 = vmatprep.subr.bf16.mxu0 0
        %1239 = vmatpush1.bf16.msra.mxu0 0
        %1240 = vmatprep.subr.bf16.mxu0 0
        %1241 = vmatpush1.bf16.msra.mxu0 0
        %1242 = vmatprep.subr.bf16.mxu0 0
        %1243 = vmatpush1.bf16.msra.mxu0 0
        %1244 = vmatprep.subr.bf16.mxu0 0
        %1245 = vmatpush1.bf16.msra.mxu0 0
        %1246 = vmatprep.subr.bf16.mxu0 0
        %1247 = vmatpush1.bf16.msra.mxu0 0
        %1248 = vmatprep.subr.bf16.mxu0 0
        %1249 = vmatpush1.bf16.msra.mxu0 0
        %1250 = vmatprep.subr.bf16.mxu0 0
        %1251 = vmatpush1.bf16.msra.mxu0 0
        %1252 = vmatprep.subr.bf16.mxu0 0
        %1253 = vmatpush1.bf16.msra.mxu0 0
        %1254 = vmatprep.mubr.bf16.mxu0 0
        %1255 = vmatmul.mubr.bf16.gmra.mrb[0].mxu0 %v1217
        %v1256 = vpop.f32.mrb[0].mxu0
        %v1257 = vadd.f32 0.0, %v1256
        %v1258 = vpop.f32.mrb[0].mxu0
        %v1259 = vpop.f32.mrb[0].mxu0
        %v1260 = vadd.f32 0.0, %v1259
        %v1261 = vpop.f32.mrb[0].mxu0
        %1262 = vmatprep.mubr.bf16.mxu0 0
        %1263 = vmatmul.mubr.bf16.gmra.mrb[0].mxu0 %v1220
        %v1264 = vpop.f32.mrb[0].mxu0
        %v1265 = vadd.f32 0.0, %v1264
        %v1266 = vpop.f32.mrb[0].mxu0
        %v1267 = vpop.f32.mrb[0].mxu0
        %v1268 = vadd.f32 0.0, %v1267
        %v1269 = vpop.f32.mrb[0].mxu0
        %1270 = vdwg.mxu0
        %1272 = vrot.lane.b32.xlu0 %v1260, 118
        %v1273 = vpop.permute.xlu0 %1272
        %v1275 = vadd.f32 %v1257, %v1273
        %v1276 = vpack.c.bf16 %v1275, %v1275
        %1278 = vrot.lane.b32.xlu0 %v1268, 118
        %v1279 = vpop.permute.xlu0 %1278
        %v1281 = vadd.f32 %v1265, %v1279
        %v1282 = vpack.c.bf16 %v1281, %v1281
        %1283 = vrot.lane.b32.xlu0 %v1136, 116
        %v1284 = vpop.permute.xlu0 %1283
        %1285 = vrot.lane.b32.xlu0 %v1137, 116
        %v1286 = vpop.permute.xlu0 %1285
        %v1288 = vsel %vm1139, %v1284, 0
        %v1291 = vsel %vm1139, %v1286, 0
        %1293 = vmatprep.subr.bf16.mxu0 0
        %1294 = vmatpush1.bf16.msra.mxu0 %v1147
        %1295 = vmatprep.subr.bf16.mxu0 0
        %1296 = vmatpush1.bf16.msra.mxu0 0
        %1297 = vmatprep.subr.bf16.mxu0 0
        %1298 = vmatpush1.bf16.msra.mxu0 0
        %1299 = vmatprep.subr.bf16.mxu0 0
        %1300 = vmatpush1.bf16.msra.mxu0 0
        %1301 = vmatprep.subr.bf16.mxu0 0
        %1302 = vmatpush1.bf16.msra.mxu0 0
        %1303 = vmatprep.subr.bf16.mxu0 0
        %1304 = vmatpush1.bf16.msra.mxu0 0
        %1305 = vmatprep.subr.bf16.mxu0 0
        %1306 = vmatpush1.bf16.msra.mxu0 0
        %1307 = vmatprep.subr.bf16.mxu0 0
        %1308 = vmatpush1.bf16.msra.mxu0 0
        %1309 = vmatprep.subr.bf16.mxu0 0
        %1310 = vmatpush1.bf16.msra.mxu0 0
        %1311 = vmatprep.subr.bf16.mxu0 0
        %1312 = vmatpush1.bf16.msra.mxu0 0
        %1313 = vmatprep.subr.bf16.mxu0 0
        %1314 = vmatpush1.bf16.msra.mxu0 0
        %1315 = vmatprep.subr.bf16.mxu0 0
        %1316 = vmatpush1.bf16.msra.mxu0 0
        %1317 = vmatprep.subr.bf16.mxu0 0
        %1318 = vmatpush1.bf16.msra.mxu0 0
        %1319 = vmatprep.subr.bf16.mxu0 0
        %1320 = vmatpush1.bf16.msra.mxu0 0
        %1321 = vmatprep.subr.bf16.mxu0 0
        %1322 = vmatpush1.bf16.msra.mxu0 0
        %1323 = vmatprep.subr.bf16.mxu0 0
        %1324 = vmatpush1.bf16.msra.mxu0 0
        %1325 = vmatprep.mubr.bf16.mxu0 0
        %1326 = vmatmul.mubr.bf16.gmra.mrb[0].mxu0 %v1288
        %v1327 = vpop.f32.mrb[0].mxu0
        %v1328 = vadd.f32 0.0, %v1327
        %v1329 = vpop.f32.mrb[0].mxu0
        %v1330 = vpop.f32.mrb[0].mxu0
        %v1331 = vadd.f32 0.0, %v1330
        %v1332 = vpop.f32.mrb[0].mxu0
        %1333 = vmatprep.mubr.bf16.mxu0 0
        %1334 = vmatmul.mubr.bf16.gmra.mrb[0].mxu0 %v1291
        %v1335 = vpop.f32.mrb[0].mxu0
        %v1336 = vadd.f32 0.0, %v1335
        %v1337 = vpop.f32.mrb[0].mxu0
        %v1338 = vpop.f32.mrb[0].mxu0
        %v1339 = vadd.f32 0.0, %v1338
        %v1340 = vpop.f32.mrb[0].mxu0
        %1341 = vdwg.mxu0
        %1343 = vrot.lane.b32.xlu0 %v1331, 118
        %v1344 = vpop.permute.xlu0 %1343
        %v1346 = vadd.f32 %v1328, %v1344
        %v1347 = vpack.c.bf16 %v1346, %v1346
        %1349 = vrot.lane.b32.xlu0 %v1339, 118
        %v1350 = vpop.permute.xlu0 %1349
        %v1352 = vadd.f32 %v1336, %v1350
        %v1353 = vpack.c.bf16 %v1352, %v1352
        %1354 = vrot.lane.b32.xlu0 %v1136, 110
        %v1355 = vpop.permute.xlu0 %1354
        %1356 = vrot.lane.b32.xlu0 %v1137, 110
        %v1357 = vpop.permute.xlu0 %1356
        %v1359 = vsel %vm1139, %v1355, 0
        %v1362 = vsel %vm1139, %v1357, 0
        %1364 = vmatprep.subr.bf16.mxu0 0
        %1365 = vmatpush1.bf16.msra.mxu0 %v1147
        %1366 = vmatprep.subr.bf16.mxu0 0
        %1367 = vmatpush1.bf16.msra.mxu0 0
        %1368 = vmatprep.subr.bf16.mxu0 0
        %1369 = vmatpush1.bf16.msra.mxu0 0
        %1370 = vmatprep.subr.bf16.mxu0 0
        %1371 = vmatpush1.bf16.msra.mxu0 0
        %1372 = vmatprep.subr.bf16.mxu0 0
        %1373 = vmatpush1.bf16.msra.mxu0 0
        %1374 = vmatprep.subr.bf16.mxu0 0
        %1375 = vmatpush1.bf16.msra.mxu0 0
        %1376 = vmatprep.subr.bf16.mxu0 0
        %1377 = vmatpush1.bf16.msra.mxu0 0
        %1378 = vmatprep.subr.bf16.mxu0 0
        %1379 = vmatpush1.bf16.msra.mxu0 0
        %1380 = vmatprep.subr.bf16.mxu0 0
        %1381 = vmatpush1.bf16.msra.mxu0 0
        %1382 = vmatprep.subr.bf16.mxu0 0
        %1383 = vmatpush1.bf16.msra.mxu0 0
        %1384 = vmatprep.subr.bf16.mxu0 0
        %1385 = vmatpush1.bf16.msra.mxu0 0
        %1386 = vmatprep.subr.bf16.mxu0 0
        %1387 = vmatpush1.bf16.msra.mxu0 0
        %1388 = vmatprep.subr.bf16.mxu0 0
        %1389 = vmatpush1.bf16.msra.mxu0 0
        %1390 = vmatprep.subr.bf16.mxu0 0
        %1391 = vmatpush1.bf16.msra.mxu0 0
        %1392 = vmatprep.subr.bf16.mxu0 0
        %1393 = vmatpush1.bf16.msra.mxu0 0
        %1394 = vmatprep.subr.bf16.mxu0 0
        %1395 = vmatpush1.bf16.msra.mxu0 0
        %1396 = vmatprep.mubr.bf16.mxu0 0
        %1397 = vmatmul.mubr.bf16.gmra.mrb[0].mxu0 %v1359
        %v1398 = vpop.f32.mrb[0].mxu0
        %v1399 = vadd.f32 0.0, %v1398
        %v1400 = vpop.f32.mrb[0].mxu0
        %v1401 = vpop.f32.mrb[0].mxu0
        %v1402 = vadd.f32 0.0, %v1401
        %v1403 = vpop.f32.mrb[0].mxu0
        %1404 = vmatprep.mubr.bf16.mxu0 0
        %1405 = vmatmul.mubr.bf16.gmra.mrb[0].mxu0 %v1362
        %v1406 = vpop.f32.mrb[0].mxu0
        %v1407 = vadd.f32 0.0, %v1406
        %v1408 = vpop.f32.mrb[0].mxu0
        %v1409 = vpop.f32.mrb[0].mxu0
        %v1410 = vadd.f32 0.0, %v1409
        %v1411 = vpop.f32.mrb[0].mxu0
        %1412 = vdwg.mxu0
        %1414 = vrot.lane.b32.xlu0 %v1402, 118
        %v1415 = vpop.permute.xlu0 %1414
        %v1417 = vadd.f32 %v1399, %v1415
        %v1418 = vpack.c.bf16 %v1417, %v1417
        %1420 = vrot.lane.b32.xlu0 %v1410, 118
        %v1421 = vpop.permute.xlu0 %1420
        %v1423 = vadd.f32 %v1407, %v1421
        %v1424 = vpack.c.bf16 %v1423, %v1423
        %1426 = vrot.lane.b32.xlu0 %v1203, 10
        %v1427 = vpop.permute.xlu0 %1426
        %1429 = vrot.lane.b32.xlu0 %v1209, 20
        %v1430 = vpop.permute.xlu0 %1429
        %1432 = vrot.lane.b32.xlu0 %v1276, 30
        %v1433 = vpop.permute.xlu0 %1432
        %1435 = vrot.lane.b32.xlu0 %v1282, 40
        %v1436 = vpop.permute.xlu0 %1435
        %1438 = vrot.lane.b32.xlu0 %v1347, 50
        %v1439 = vpop.permute.xlu0 %1438
        %1441 = vrot.lane.b32.xlu0 %v1353, 60
        %v1442 = vpop.permute.xlu0 %1441
        %1444 = vrot.lane.b32.xlu0 %v1418, 70
        %v1445 = vpop.permute.xlu0 %1444
        %1447 = vrot.lane.b32.xlu0 %v1424, 80
        %v1448 = vpop.permute.xlu0 %1447
        %vm1449 = vcmask 80896
        %v1451 = vsel %vm1449, 0, %v1427
        %vm1452 = vcmask 162816
        %v1454 = vsel %vm1452, %v1451, %v1430
        %vm1455 = vcmask 244736
        %v1457 = vsel %vm1455, %v1454, %v1433
        %vm1458 = vcmask 326656
        %v1460 = vsel %vm1458, %v1457, %v1436
        %vm1461 = vcmask 408576
        %v1463 = vsel %vm1461, %v1460, %v1439
        %vm1464 = vcmask 490496
        %v1466 = vsel %vm1464, %v1463, %v1442
        %vm1467 = vcmask 572416
        %v1469 = vsel %vm1467, %v1466, %v1445
        %vm1470 = vcmask 654336
        %v1472 = vsel %vm1470, %v1469, %v1448
        %vm1473 = vcmask 736256
        %v1474 = vsel %vm1473, %v1472, 0
        %v1475 = vld [vmem:[#allocation14] sm:$0xf]
        %v1476 = vld [vmem:[#allocation14 + $0x4] sm:$0xf]
        %v1477 = vld [vmem:[#allocation14 + $0x8] sm:$0xf]
        %v1478 = vld [vmem:[#allocation14 + $0xc] sm:$0xf]
        %v1480 = vrot.slane %v1474, 4
        %1481 = vrot.lane.b32.xlu0 %v1480, 127
        %v1482 = vpop.permute.xlu0 %1481
        %1483 = vrot.lane.b32.xlu0 %v1474, 126
        %v1484 = vpop.permute.xlu0 %1483
        %1485 = vrot.lane.b32.xlu0 %v1480, 118
        %v1486 = vpop.permute.xlu0 %1485
        %1487 = vrot.lane.b32.xlu0 %v1474, 117
        %v1488 = vpop.permute.xlu0 %1487
        %1489 = vrot.lane.b32.xlu0 %v1480, 116
        %v1490 = vpop.permute.xlu0 %1489
        %1491 = vrot.lane.b32.xlu0 %v1474, 108
        %v1492 = vpop.permute.xlu0 %1491
        %1493 = vrot.lane.b32.xlu0 %v1480, 107
        %v1494 = vpop.permute.xlu0 %1493
        %1495 = vrot.lane.b32.xlu0 %v1474, 106
        %v1496 = vpop.permute.xlu0 %1495
        %v1498 = vsel %vm913, %v1474, %v1482
        %v1502 = vsel %vm913, %v1484, %v1486
        %v1506 = vsel %vm913, %v1488, %v1490
        %v1510 = vsel %vm913, %v1492, %v1494
        %v1512 = vld [vmem:[#allocation16] sm:$0xff]
        %v1513 = vld [vmem:[#allocation16 + $0x8] sm:$0xff]
        %v1514 = vld [vmem:[#allocation16 + $0x10] sm:$0xff]
        %v1515 = vld [vmem:[#allocation16 + $0x18] sm:$0xff]
        %1517 = vset.pattern.permute.xlu0 0
        %1518 = vperm.xlu0 %1517, %v1512
        %v1519 = vpop.permute.xlu0 %1518
        %1522 = vset.pattern.permute.xlu0 0
        %1523 = vperm.xlu0 %1522, %v1513
        %v1524 = vpop.permute.xlu0 %1523
        %1527 = vset.pattern.permute.xlu0 0
        %1528 = vperm.xlu0 %1527, %v1514
        %v1529 = vpop.permute.xlu0 %1528
        %1532 = vset.pattern.permute.xlu0 0
        %1533 = vperm.xlu0 %1532, %v1515
        %v1534 = vpop.permute.xlu0 %1533
        %v1540 = vunpack.c.l.b16 %v1475
        %v1541 = vunpack.c.l.b16 %v1476
        %v1542 = vunpack.c.l.b16 %v1477
        %v1543 = vunpack.c.l.b16 %v1478
        %v1544 = vpack.c.b16 %v1541, %v1540
        %v1545 = vpack.c.b16 %v1543, %v1542
        %vm1546 = vcmask 588800
        %v1548 = vsel %vm1546, %v1544, 0
        %v1551 = vsel %vm1546, %v1545, 0
        %v1554 = vsel %vm913, %v1496, 0
        %1556 = vmatprep.subr.bf16.mxu0 0
        %1557 = vmatpush1.bf16.msra.mxu0 %v1498
        %1558 = vmatprep.subr.bf16.mxu0 0
        %1559 = vmatpush1.bf16.msra.mxu0 %v1502
        %1560 = vmatprep.subr.bf16.mxu0 0
        %1561 = vmatpush1.bf16.msra.mxu0 %v1506
        %1562 = vmatprep.subr.bf16.mxu0 0
        %1563 = vmatpush1.bf16.msra.mxu0 %v1510
        %1564 = vmatprep.subr.bf16.mxu0 0
        %1565 = vmatpush1.bf16.msra.mxu0 %v1554
        %1566 = vmatprep.subr.bf16.mxu0 0
        %1567 = vmatpush1.bf16.msra.mxu0 0
        %1568 = vmatprep.subr.bf16.mxu0 0
        %1569 = vmatpush1.bf16.msra.mxu0 0
        %1570 = vmatprep.subr.bf16.mxu0 0
        %1571 = vmatpush1.bf16.msra.mxu0 0
        %1572 = vmatprep.subr.bf16.mxu0 0
        %1573 = vmatpush1.bf16.msra.mxu0 0
        %1574 = vmatprep.subr.bf16.mxu0 0
        %1575 = vmatpush1.bf16.msra.mxu0 0
        %1576 = vmatprep.subr.bf16.mxu0 0
        %1577 = vmatpush1.bf16.msra.mxu0 0
        %1578 = vmatprep.subr.bf16.mxu0 0
        %1579 = vmatpush1.bf16.msra.mxu0 0
        %1580 = vmatprep.subr.bf16.mxu0 0
        %1581 = vmatpush1.bf16.msra.mxu0 0
        %1582 = vmatprep.subr.bf16.mxu0 0
        %1583 = vmatpush1.bf16.msra.mxu0 0
        %1584 = vmatprep.subr.bf16.mxu0 0
        %1585 = vmatpush1.bf16.msra.mxu0 0
        %1586 = vmatprep.subr.bf16.mxu0 0
        %1587 = vmatpush1.bf16.msra.mxu0 0
        %1588 = vmatprep.mubr.bf16.mxu0 0
        %1589 = vmatmul.mubr.bf16.gmra.mrb[0].mxu0 %v1548
        %v1590 = vpop.f32.mrb[0].mxu0
        %v1591 = vadd.f32 %v1519, %v1590
        %v1592 = vpop.f32.mrb[0].mxu0
        %v1593 = vpop.f32.mrb[0].mxu0
        %v1594 = vadd.f32 %v1524, %v1593
        %v1595 = vpop.f32.mrb[0].mxu0
        %1596 = vmatprep.mubr.bf16.mxu0 0
        %1597 = vmatmul.mubr.bf16.gmra.mrb[0].mxu0 %v1551
        %v1598 = vpop.f32.mrb[0].mxu0
        %v1599 = vadd.f32 %v1529, %v1598
        %v1600 = vpop.f32.mrb[0].mxu0
        %v1601 = vpop.f32.mrb[0].mxu0
        %v1602 = vadd.f32 %v1534, %v1601
        %v1603 = vpop.f32.mrb[0].mxu0
        %1604 = vdwg.mxu0
        %v1605 = vmax.f32 %v1591, 0.0
        %v1606 = vmax.f32 %v1594, 0.0
        %v1607 = vmax.f32 %v1599, 0.0
        %v1608 = vmax.f32 %v1602, 0.0
        %v1609 = vpack.c.bf16 %v1606, %v1605
        %v1610 = vpack.c.bf16 %v1608, %v1607
        %v1611 = vld [vmem:[#allocation17] sm:$0xf]
        %vm1612 = vcmask 64512
        %v1614 = vsel %vm1612, %v1609, 0
        %v1617 = vsel %vm1612, %v1610, 0
        %v1620 = vsel %vm913, %v1611, 0
        %1622 = vmatprep.subr.bf16.mxu0 0
        %1623 = vmatpush1.bf16.msra.mxu0 %v1620
        %1624 = vmatprep.subr.bf16.mxu0 0
        %1625 = vmatpush1.bf16.msra.mxu0 0
        %1626 = vmatprep.subr.bf16.mxu0 0
        %1627 = vmatpush1.bf16.msra.mxu0 0
        %1628 = vmatprep.subr.bf16.mxu0 0
        %1629 = vmatpush1.bf16.msra.mxu0 0
        %1630 = vmatprep.subr.bf16.mxu0 0
        %1631 = vmatpush1.bf16.msra.mxu0 0
        %1632 = vmatprep.subr.bf16.mxu0 0
        %1633 = vmatpush1.bf16.msra.mxu0 0
        %1634 = vmatprep.subr.bf16.mxu0 0
        %1635 = vmatpush1.bf16.msra.mxu0 0
        %1636 = vmatprep.subr.bf16.mxu0 0
        %1637 = vmatpush1.bf16.msra.mxu0 0
        %1638 = vmatprep.subr.bf16.mxu0 0
        %1639 = vmatpush1.bf16.msra.mxu0 0
        %1640 = vmatprep.subr.bf16.mxu0 0
        %1641 = vmatpush1.bf16.msra.mxu0 0
        %1642 = vmatprep.subr.bf16.mxu0 0
        %1643 = vmatpush1.bf16.msra.mxu0 0
        %1644 = vmatprep.subr.bf16.mxu0 0
        %1645 = vmatpush1.bf16.msra.mxu0 0
        %1646 = vmatprep.subr.bf16.mxu0 0
        %1647 = vmatpush1.bf16.msra.mxu0 0
        %1648 = vmatprep.subr.bf16.mxu0 0
        %1649 = vmatpush1.bf16.msra.mxu0 0
        %1650 = vmatprep.subr.bf16.mxu0 0
        %1651 = vmatpush1.bf16.msra.mxu0 0
        %1652 = vmatprep.subr.bf16.mxu0 0
        %1653 = vmatpush1.bf16.msra.mxu0 0
        %1654 = vmatprep.mubr.bf16.mxu0 0
        %1655 = vmatmul.mubr.bf16.gmra.mrb[0].mxu0 %v1614
        %v1656 = vpop.f32.mrb[0].mxu0
        %v1657 = vadd.f32 0.0, %v1656
        %v1658 = vpop.f32.mrb[0].mxu0
        %v1659 = vpop.f32.mrb[0].mxu0
        %v1660 = vadd.f32 0.0, %v1659
        %v1661 = vpop.f32.mrb[0].mxu0
        %1662 = vmatprep.mubr.bf16.mxu0 0
        %1663 = vmatmul.mubr.bf16.gmra.mrb[0].mxu0 %v1617
        %v1664 = vpop.f32.mrb[0].mxu0
        %v1665 = vadd.f32 0.0, %v1664
        %v1666 = vpop.f32.mrb[0].mxu0
        %v1667 = vpop.f32.mrb[0].mxu0
        %v1668 = vadd.f32 0.0, %v1667
        %v1669 = vpop.f32.mrb[0].mxu0
        %1670 = vdwg.mxu0
        %1672 = vrot.lane.b32.xlu0 %v1660, 110
        %v1673 = vpop.permute.xlu0 %1672
        %v1675 = vadd.f32 %v1657, %v1673
        %v1676 = vpack.c.bf16 %v1675, %v1675
        %1678 = vrot.lane.b32.xlu0 %v1668, 110
        %v1679 = vpop.permute.xlu0 %1678
        %v1681 = vadd.f32 %v1665, %v1679
        %v1682 = vpack.c.bf16 %v1681, %v1681
        %1685 = vrot.lane.b32.xlu0 %v1609, 118
        %v1686 = vpop.permute.xlu0 %1685
        %1687 = vrot.lane.b32.xlu0 %v1610, 118
        %v1688 = vpop.permute.xlu0 %1687
        %v1690 = vsel %vm1612, %v1686, 0
        %v1693 = vsel %vm1612, %v1688, 0
        %1695 = vmatprep.subr.bf16.mxu0 0
        %1696 = vmatpush1.bf16.msra.mxu0 %v1620
        %1697 = vmatprep.subr.bf16.mxu0 0
        %1698 = vmatpush1.bf16.msra.mxu0 0
        %1699 = vmatprep.subr.bf16.mxu0 0
        %1700 = vmatpush1.bf16.msra.mxu0 0
        %1701 = vmatprep.subr.bf16.mxu0 0
        %1702 = vmatpush1.bf16.msra.mxu0 0
        %1703 = vmatprep.subr.bf16.mxu0 0
        %1704 = vmatpush1.bf16.msra.mxu0 0
        %1705 = vmatprep.subr.bf16.mxu0 0
        %1706 = vmatpush1.bf16.msra.mxu0 0
        %1707 = vmatprep.subr.bf16.mxu0 0
        %1708 = vmatpush1.bf16.msra.mxu0 0
        %1709 = vmatprep.subr.bf16.mxu0 0
        %1710 = vmatpush1.bf16.msra.mxu0 0
        %1711 = vmatprep.subr.bf16.mxu0 0
        %1712 = vmatpush1.bf16.msra.mxu0 0
        %1713 = vmatprep.subr.bf16.mxu0 0
        %1714 = vmatpush1.bf16.msra.mxu0 0
        %1715 = vmatprep.subr.bf16.mxu0 0
        %1716 = vmatpush1.bf16.msra.mxu0 0
        %1717 = vmatprep.subr.bf16.mxu0 0
        %1718 = vmatpush1.bf16.msra.mxu0 0
        %1719 = vmatprep.subr.bf16.mxu0 0
        %1720 = vmatpush1.bf16.msra.mxu0 0
        %1721 = vmatprep.subr.bf16.mxu0 0
        %1722 = vmatpush1.bf16.msra.mxu0 0
        %1723 = vmatprep.subr.bf16.mxu0 0
        %1724 = vmatpush1.bf16.msra.mxu0 0
        %1725 = vmatprep.subr.bf16.mxu0 0
        %1726 = vmatpush1.bf16.msra.mxu0 0
        %1727 = vmatprep.mubr.bf16.mxu0 0
        %1728 = vmatmul.mubr.bf16.gmra.mrb[0].mxu0 %v1690
        %v1729 = vpop.f32.mrb[0].mxu0
        %v1730 = vadd.f32 0.0, %v1729
        %v1731 = vpop.f32.mrb[0].mxu0
        %v1732 = vpop.f32.mrb[0].mxu0
        %v1733 = vadd.f32 0.0, %v1732
        %v1734 = vpop.f32.mrb[0].mxu0
        %1735 = vmatprep.mubr.bf16.mxu0 0
        %1736 = vmatmul.mubr.bf16.gmra.mrb[0].mxu0 %v1693
        %v1737 = vpop.f32.mrb[0].mxu0
        %v1738 = vadd.f32 0.0, %v1737
        %v1739 = vpop.f32.mrb[0].mxu0
        %v1740 = vpop.f32.mrb[0].mxu0
        %v1741 = vadd.f32 0.0, %v1740
        %v1742 = vpop.f32.mrb[0].mxu0
        %1743 = vdwg.mxu0
        %1745 = vrot.lane.b32.xlu0 %v1733, 110
        %v1746 = vpop.permute.xlu0 %1745
        %v1748 = vadd.f32 %v1730, %v1746
        %v1749 = vpack.c.bf16 %v1748, %v1748
        %1751 = vrot.lane.b32.xlu0 %v1741, 110
        %v1752 = vpop.permute.xlu0 %1751
        %v1754 = vadd.f32 %v1738, %v1752
        %v1755 = vpack.c.bf16 %v1754, %v1754
        %1756 = vrot.lane.b32.xlu0 %v1609, 108
        %v1757 = vpop.permute.xlu0 %1756
        %1758 = vrot.lane.b32.xlu0 %v1610, 108
        %v1759 = vpop.permute.xlu0 %1758
        %v1761 = vsel %vm1612, %v1757, 0
        %v1764 = vsel %vm1612, %v1759, 0
        %1766 = vmatprep.subr.bf16.mxu0 0
        %1767 = vmatpush1.bf16.msra.mxu0 %v1620
        %1768 = vmatprep.subr.bf16.mxu0 0
        %1769 = vmatpush1.bf16.msra.mxu0 0
        %1770 = vmatprep.subr.bf16.mxu0 0
        %1771 = vmatpush1.bf16.msra.mxu0 0
        %1772 = vmatprep.subr.bf16.mxu0 0
        %1773 = vmatpush1.bf16.msra.mxu0 0
        %1774 = vmatprep.subr.bf16.mxu0 0
        %1775 = vmatpush1.bf16.msra.mxu0 0
        %1776 = vmatprep.subr.bf16.mxu0 0
        %1777 = vmatpush1.bf16.msra.mxu0 0
        %1778 = vmatprep.subr.bf16.mxu0 0
        %1779 = vmatpush1.bf16.msra.mxu0 0
        %1780 = vmatprep.subr.bf16.mxu0 0
        %1781 = vmatpush1.bf16.msra.mxu0 0
        %1782 = vmatprep.subr.bf16.mxu0 0
        %1783 = vmatpush1.bf16.msra.mxu0 0
        %1784 = vmatprep.subr.bf16.mxu0 0
        %1785 = vmatpush1.bf16.msra.mxu0 0
        %1786 = vmatprep.subr.bf16.mxu0 0
        %1787 = vmatpush1.bf16.msra.mxu0 0
        %1788 = vmatprep.subr.bf16.mxu0 0
        %1789 = vmatpush1.bf16.msra.mxu0 0
        %1790 = vmatprep.subr.bf16.mxu0 0
        %1791 = vmatpush1.bf16.msra.mxu0 0
        %1792 = vmatprep.subr.bf16.mxu0 0
        %1793 = vmatpush1.bf16.msra.mxu0 0
        %1794 = vmatprep.subr.bf16.mxu0 0
        %1795 = vmatpush1.bf16.msra.mxu0 0
        %1796 = vmatprep.subr.bf16.mxu0 0
        %1797 = vmatpush1.bf16.msra.mxu0 0
        %1798 = vmatprep.mubr.bf16.mxu0 0
        %1799 = vmatmul.mubr.bf16.gmra.mrb[0].mxu0 %v1761
        %v1800 = vpop.f32.mrb[0].mxu0
        %v1801 = vadd.f32 0.0, %v1800
        %v1802 = vpop.f32.mrb[0].mxu0
        %v1803 = vpop.f32.mrb[0].mxu0
        %v1804 = vadd.f32 0.0, %v1803
        %v1805 = vpop.f32.mrb[0].mxu0
        %1806 = vmatprep.mubr.bf16.mxu0 0
        %1807 = vmatmul.mubr.bf16.gmra.mrb[0].mxu0 %v1764
        %v1808 = vpop.f32.mrb[0].mxu0
        %v1809 = vadd.f32 0.0, %v1808
        %v1810 = vpop.f32.mrb[0].mxu0
        %v1811 = vpop.f32.mrb[0].mxu0
        %v1812 = vadd.f32 0.0, %v1811
        %v1813 = vpop.f32.mrb[0].mxu0
        %1814 = vdwg.mxu0
        %1816 = vrot.lane.b32.xlu0 %v1804, 110
        %v1817 = vpop.permute.xlu0 %1816
        %v1819 = vadd.f32 %v1801, %v1817
        %v1820 = vpack.c.bf16 %v1819, %v1819
        %1822 = vrot.lane.b32.xlu0 %v1812, 110
        %v1823 = vpop.permute.xlu0 %1822
        %v1825 = vadd.f32 %v1809, %v1823
        %v1826 = vpack.c.bf16 %v1825, %v1825
        %1827 = vrot.lane.b32.xlu0 %v1609, 98
        %v1828 = vpop.permute.xlu0 %1827
        %1829 = vrot.lane.b32.xlu0 %v1610, 98
        %v1830 = vpop.permute.xlu0 %1829
        %v1832 = vsel %vm1612, %v1828, 0
        %v1835 = vsel %vm1612, %v1830, 0
        %1837 = vmatprep.subr.bf16.mxu0 0
        %1838 = vmatpush1.bf16.msra.mxu0 %v1620
        %1839 = vmatprep.subr.bf16.mxu0 0
        %1840 = vmatpush1.bf16.msra.mxu0 0
        %1841 = vmatprep.subr.bf16.mxu0 0
        %1842 = vmatpush1.bf16.msra.mxu0 0
        %1843 = vmatprep.subr.bf16.mxu0 0
        %1844 = vmatpush1.bf16.msra.mxu0 0
        %1845 = vmatprep.subr.bf16.mxu0 0
        %1846 = vmatpush1.bf16.msra.mxu0 0
        %1847 = vmatprep.subr.bf16.mxu0 0
        %1848 = vmatpush1.bf16.msra.mxu0 0
        %1849 = vmatprep.subr.bf16.mxu0 0
        %1850 = vmatpush1.bf16.msra.mxu0 0
        %1851 = vmatprep.subr.bf16.mxu0 0
        %1852 = vmatpush1.bf16.msra.mxu0 0
        %1853 = vmatprep.subr.bf16.mxu0 0
        %1854 = vmatpush1.bf16.msra.mxu0 0
        %1855 = vmatprep.subr.bf16.mxu0 0
        %1856 = vmatpush1.bf16.msra.mxu0 0
        %1857 = vmatprep.subr.bf16.mxu0 0
        %1858 = vmatpush1.bf16.msra.mxu0 0
        %1859 = vmatprep.subr.bf16.mxu0 0
        %1860 = vmatpush1.bf16.msra.mxu0 0
        %1861 = vmatprep.subr.bf16.mxu0 0
        %1862 = vmatpush1.bf16.msra.mxu0 0
        %1863 = vmatprep.subr.bf16.mxu0 0
        %1864 = vmatpush1.bf16.msra.mxu0 0
        %1865 = vmatprep.subr.bf16.mxu0 0
        %1866 = vmatpush1.bf16.msra.mxu0 0
        %1867 = vmatprep.subr.bf16.mxu0 0
        %1868 = vmatpush1.bf16.msra.mxu0 0
        %1869 = vmatprep.mubr.bf16.mxu0 0
        %1870 = vmatmul.mubr.bf16.gmra.mrb[0].mxu0 %v1832
        %v1871 = vpop.f32.mrb[0].mxu0
        %v1872 = vadd.f32 0.0, %v1871
        %v1873 = vpop.f32.mrb[0].mxu0
        %v1874 = vpop.f32.mrb[0].mxu0
        %v1875 = vadd.f32 0.0, %v1874
        %v1876 = vpop.f32.mrb[0].mxu0
        %1877 = vmatprep.mubr.bf16.mxu0 0
        %1878 = vmatmul.mubr.bf16.gmra.mrb[0].mxu0 %v1835
        %v1879 = vpop.f32.mrb[0].mxu0
        %v1880 = vadd.f32 0.0, %v1879
        %v1881 = vpop.f32.mrb[0].mxu0
        %v1882 = vpop.f32.mrb[0].mxu0
        %v1883 = vadd.f32 0.0, %v1882
        %v1884 = vpop.f32.mrb[0].mxu0
        %1885 = vdwg.mxu0
        %1887 = vrot.lane.b32.xlu0 %v1875, 110
        %v1888 = vpop.permute.xlu0 %1887
        %v1890 = vadd.f32 %v1872, %v1888
        %v1891 = vpack.c.bf16 %v1890, %v1890
        %1893 = vrot.lane.b32.xlu0 %v1883, 110
        %v1894 = vpop.permute.xlu0 %1893
        %v1896 = vadd.f32 %v1880, %v1894
        %v1897 = vpack.c.bf16 %v1896, %v1896
        %1898 = vrot.lane.b32.xlu0 %v1609, 88
        %v1899 = vpop.permute.xlu0 %1898
        %1900 = vrot.lane.b32.xlu0 %v1610, 88
        %v1901 = vpop.permute.xlu0 %1900
        %v1903 = vsel %vm1612, %v1899, 0
        %v1906 = vsel %vm1612, %v1901, 0
        %1908 = vmatprep.subr.bf16.mxu0 0
        %1909 = vmatpush1.bf16.msra.mxu0 %v1620
        %1910 = vmatprep.subr.bf16.mxu0 0
        %1911 = vmatpush1.bf16.msra.mxu0 0
        %1912 = vmatprep.subr.bf16.mxu0 0
        %1913 = vmatpush1.bf16.msra.mxu0 0
        %1914 = vmatprep.subr.bf16.mxu0 0
        %1915 = vmatpush1.bf16.msra.mxu0 0
        %1916 = vmatprep.subr.bf16.mxu0 0
        %1917 = vmatpush1.bf16.msra.mxu0 0
        %1918 = vmatprep.subr.bf16.mxu0 0
        %1919 = vmatpush1.bf16.msra.mxu0 0
        %1920 = vmatprep.subr.bf16.mxu0 0
        %1921 = vmatpush1.bf16.msra.mxu0 0
        %1922 = vmatprep.subr.bf16.mxu0 0
        %1923 = vmatpush1.bf16.msra.mxu0 0
        %1924 = vmatprep.subr.bf16.mxu0 0
        %1925 = vmatpush1.bf16.msra.mxu0 0
        %1926 = vmatprep.subr.bf16.mxu0 0
        %1927 = vmatpush1.bf16.msra.mxu0 0
        %1928 = vmatprep.subr.bf16.mxu0 0
        %1929 = vmatpush1.bf16.msra.mxu0 0
        %1930 = vmatprep.subr.bf16.mxu0 0
        %1931 = vmatpush1.bf16.msra.mxu0 0
        %1932 = vmatprep.subr.bf16.mxu0 0
        %1933 = vmatpush1.bf16.msra.mxu0 0
        %1934 = vmatprep.subr.bf16.mxu0 0
        %1935 = vmatpush1.bf16.msra.mxu0 0
        %1936 = vmatprep.subr.bf16.mxu0 0
        %1937 = vmatpush1.bf16.msra.mxu0 0
        %1938 = vmatprep.subr.bf16.mxu0 0
        %1939 = vmatpush1.bf16.msra.mxu0 0
        %1940 = vmatprep.mubr.bf16.mxu0 0
        %1941 = vmatmul.mubr.bf16.gmra.mrb[0].mxu0 %v1903
        %v1942 = vpop.f32.mrb[0].mxu0
        %v1943 = vadd.f32 0.0, %v1942
        %v1944 = vpop.f32.mrb[0].mxu0
        %v1945 = vpop.f32.mrb[0].mxu0
        %v1946 = vadd.f32 0.0, %v1945
        %v1947 = vpop.f32.mrb[0].mxu0
        %1948 = vmatprep.mubr.bf16.mxu0 0
        %1949 = vmatmul.mubr.bf16.gmra.mrb[0].mxu0 %v1906
        %v1950 = vpop.f32.mrb[0].mxu0
        %v1951 = vadd.f32 0.0, %v1950
        %v1952 = vpop.f32.mrb[0].mxu0
        %v1953 = vpop.f32.mrb[0].mxu0
        %v1954 = vadd.f32 0.0, %v1953
        %v1955 = vpop.f32.mrb[0].mxu0
        %1956 = vdwg.mxu0
        %1958 = vrot.lane.b32.xlu0 %v1946, 110
        %v1959 = vpop.permute.xlu0 %1958
        %v1961 = vadd.f32 %v1943, %v1959
        %v1962 = vpack.c.bf16 %v1961, %v1961
        %1964 = vrot.lane.b32.xlu0 %v1954, 110
        %v1965 = vpop.permute.xlu0 %1964
        %v1967 = vadd.f32 %v1951, %v1965
        %v1968 = vpack.c.bf16 %v1967, %v1967
        %1969 = vrot.lane.b32.xlu0 %v1609, 78
        %v1970 = vpop.permute.xlu0 %1969
        %1971 = vrot.lane.b32.xlu0 %v1610, 78
        %v1972 = vpop.permute.xlu0 %1971
        %v1974 = vsel %vm1612, %v1970, 0
        %v1977 = vsel %vm1612, %v1972, 0
        %1979 = vmatprep.subr.bf16.mxu0 0
        %1980 = vmatpush1.bf16.msra.mxu0 %v1620
        %1981 = vmatprep.subr.bf16.mxu0 0
        %1982 = vmatpush1.bf16.msra.mxu0 0
        %1983 = vmatprep.subr.bf16.mxu0 0
        %1984 = vmatpush1.bf16.msra.mxu0 0
        %1985 = vmatprep.subr.bf16.mxu0 0
        %1986 = vmatpush1.bf16.msra.mxu0 0
        %1987 = vmatprep.subr.bf16.mxu0 0
        %1988 = vmatpush1.bf16.msra.mxu0 0
        %1989 = vmatprep.subr.bf16.mxu0 0
        %1990 = vmatpush1.bf16.msra.mxu0 0
        %1991 = vmatprep.subr.bf16.mxu0 0
        %1992 = vmatpush1.bf16.msra.mxu0 0
        %1993 = vmatprep.subr.bf16.mxu0 0
        %1994 = vmatpush1.bf16.msra.mxu0 0
        %1995 = vmatprep.subr.bf16.mxu0 0
        %1996 = vmatpush1.bf16.msra.mxu0 0
        %1997 = vmatprep.subr.bf16.mxu0 0
        %1998 = vmatpush1.bf16.msra.mxu0 0
        %1999 = vmatprep.subr.bf16.mxu0 0
        %2000 = vmatpush1.bf16.msra.mxu0 0
        %2001 = vmatprep.subr.bf16.mxu0 0
        %2002 = vmatpush1.bf16.msra.mxu0 0
        %2003 = vmatprep.subr.bf16.mxu0 0
        %2004 = vmatpush1.bf16.msra.mxu0 0
        %2005 = vmatprep.subr.bf16.mxu0 0
        %2006 = vmatpush1.bf16.msra.mxu0 0
        %2007 = vmatprep.subr.bf16.mxu0 0
        %2008 = vmatpush1.bf16.msra.mxu0 0
        %2009 = vmatprep.subr.bf16.mxu0 0
        %2010 = vmatpush1.bf16.msra.mxu0 0
        %2011 = vmatprep.mubr.bf16.mxu0 0
        %2012 = vmatmul.mubr.bf16.gmra.mrb[0].mxu0 %v1974
        %v2013 = vpop.f32.mrb[0].mxu0
        %v2014 = vadd.f32 0.0, %v2013
        %v2015 = vpop.f32.mrb[0].mxu0
        %v2016 = vpop.f32.mrb[0].mxu0
        %v2017 = vadd.f32 0.0, %v2016
        %v2018 = vpop.f32.mrb[0].mxu0
        %2019 = vmatprep.mubr.bf16.mxu0 0
        %2020 = vmatmul.mubr.bf16.gmra.mrb[0].mxu0 %v1977
        %v2021 = vpop.f32.mrb[0].mxu0
        %v2022 = vadd.f32 0.0, %v2021
        %v2023 = vpop.f32.mrb[0].mxu0
        %v2024 = vpop.f32.mrb[0].mxu0
        %v2025 = vadd.f32 0.0, %v2024
        %v2026 = vpop.f32.mrb[0].mxu0
        %2027 = vdwg.mxu0
        %2029 = vrot.lane.b32.xlu0 %v2017, 110
        %v2030 = vpop.permute.xlu0 %2029
        %v2032 = vadd.f32 %v2014, %v2030
        %v2033 = vpack.c.bf16 %v2032, %v2032
        %2035 = vrot.lane.b32.xlu0 %v2025, 110
        %v2036 = vpop.permute.xlu0 %2035
        %v2038 = vadd.f32 %v2022, %v2036
        %v2039 = vpack.c.bf16 %v2038, %v2038
        %2040 = vrot.lane.b32.xlu0 %v1609, 68
        %v2041 = vpop.permute.xlu0 %2040
        %2042 = vrot.lane.b32.xlu0 %v1610, 68
        %v2043 = vpop.permute.xlu0 %2042
        %v2045 = vsel %vm1612, %v2041, 0
        %v2048 = vsel %vm1612, %v2043, 0
        %2050 = vmatprep.subr.bf16.mxu0 0
        %2051 = vmatpush1.bf16.msra.mxu0 %v1620
        %2052 = vmatprep.subr.bf16.mxu0 0
        %2053 = vmatpush1.bf16.msra.mxu0 0
        %2054 = vmatprep.subr.bf16.mxu0 0
        %2055 = vmatpush1.bf16.msra.mxu0 0
        %2056 = vmatprep.subr.bf16.mxu0 0
        %2057 = vmatpush1.bf16.msra.mxu0 0
        %2058 = vmatprep.subr.bf16.mxu0 0
        %2059 = vmatpush1.bf16.msra.mxu0 0
        %2060 = vmatprep.subr.bf16.mxu0 0
        %2061 = vmatpush1.bf16.msra.mxu0 0
        %2062 = vmatprep.subr.bf16.mxu0 0
        %2063 = vmatpush1.bf16.msra.mxu0 0
        %2064 = vmatprep.subr.bf16.mxu0 0
        %2065 = vmatpush1.bf16.msra.mxu0 0
        %2066 = vmatprep.subr.bf16.mxu0 0
        %2067 = vmatpush1.bf16.msra.mxu0 0
        %2068 = vmatprep.subr.bf16.mxu0 0
        %2069 = vmatpush1.bf16.msra.mxu0 0
        %2070 = vmatprep.subr.bf16.mxu0 0
        %2071 = vmatpush1.bf16.msra.mxu0 0
        %2072 = vmatprep.subr.bf16.mxu0 0
        %2073 = vmatpush1.bf16.msra.mxu0 0
        %2074 = vmatprep.subr.bf16.mxu0 0
        %2075 = vmatpush1.bf16.msra.mxu0 0
        %2076 = vmatprep.subr.bf16.mxu0 0
        %2077 = vmatpush1.bf16.msra.mxu0 0
        %2078 = vmatprep.subr.bf16.mxu0 0
        %2079 = vmatpush1.bf16.msra.mxu0 0
        %2080 = vmatprep.subr.bf16.mxu0 0
        %2081 = vmatpush1.bf16.msra.mxu0 0
        %2082 = vmatprep.mubr.bf16.mxu0 0
        %2083 = vmatmul.mubr.bf16.gmra.mrb[0].mxu0 %v2045
        %v2084 = vpop.f32.mrb[0].mxu0
        %v2085 = vadd.f32 0.0, %v2084
        %v2086 = vpop.f32.mrb[0].mxu0
        %v2087 = vpop.f32.mrb[0].mxu0
        %v2088 = vadd.f32 0.0, %v2087
        %v2089 = vpop.f32.mrb[0].mxu0
        %2090 = vmatprep.mubr.bf16.mxu0 0
        %2091 = vmatmul.mubr.bf16.gmra.mrb[0].mxu0 %v2048
        %v2092 = vpop.f32.mrb[0].mxu0
        %v2093 = vadd.f32 0.0, %v2092
        %v2094 = vpop.f32.mrb[0].mxu0
        %v2095 = vpop.f32.mrb[0].mxu0
        %v2096 = vadd.f32 0.0, %v2095
        %v2097 = vpop.f32.mrb[0].mxu0
        %2098 = vdwg.mxu0
        %2100 = vrot.lane.b32.xlu0 %v2088, 110
        %v2101 = vpop.permute.xlu0 %2100
        %v2103 = vadd.f32 %v2085, %v2101
        %v2104 = vpack.c.bf16 %v2103, %v2103
        %2106 = vrot.lane.b32.xlu0 %v2096, 110
        %v2107 = vpop.permute.xlu0 %2106
        %v2109 = vadd.f32 %v2093, %v2107
        %v2110 = vpack.c.bf16 %v2109, %v2109
        %2111 = vrot.lane.b32.xlu0 %v1609, 58
        %v2112 = vpop.permute.xlu0 %2111
        %2113 = vrot.lane.b32.xlu0 %v1610, 58
        %v2114 = vpop.permute.xlu0 %2113
        %v2116 = vsel %vm1612, %v2112, 0
        %v2119 = vsel %vm1612, %v2114, 0
        %2121 = vmatprep.subr.bf16.mxu0 0
        %2122 = vmatpush1.bf16.msra.mxu0 %v1620
        %2123 = vmatprep.subr.bf16.mxu0 0
        %2124 = vmatpush1.bf16.msra.mxu0 0
        %2125 = vmatprep.subr.bf16.mxu0 0
        %2126 = vmatpush1.bf16.msra.mxu0 0
        %2127 = vmatprep.subr.bf16.mxu0 0
        %2128 = vmatpush1.bf16.msra.mxu0 0
        %2129 = vmatprep.subr.bf16.mxu0 0
        %2130 = vmatpush1.bf16.msra.mxu0 0
        %2131 = vmatprep.subr.bf16.mxu0 0
        %2132 = vmatpush1.bf16.msra.mxu0 0
        %2133 = vmatprep.subr.bf16.mxu0 0
        %2134 = vmatpush1.bf16.msra.mxu0 0
        %2135 = vmatprep.subr.bf16.mxu0 0
        %2136 = vmatpush1.bf16.msra.mxu0 0
        %2137 = vmatprep.subr.bf16.mxu0 0
        %2138 = vmatpush1.bf16.msra.mxu0 0
        %2139 = vmatprep.subr.bf16.mxu0 0
        %2140 = vmatpush1.bf16.msra.mxu0 0
        %2141 = vmatprep.subr.bf16.mxu0 0
        %2142 = vmatpush1.bf16.msra.mxu0 0
        %2143 = vmatprep.subr.bf16.mxu0 0
        %2144 = vmatpush1.bf16.msra.mxu0 0
        %2145 = vmatprep.subr.bf16.mxu0 0
        %2146 = vmatpush1.bf16.msra.mxu0 0
        %2147 = vmatprep.subr.bf16.mxu0 0
        %2148 = vmatpush1.bf16.msra.mxu0 0
        %2149 = vmatprep.subr.bf16.mxu0 0
        %2150 = vmatpush1.bf16.msra.mxu0 0
        %2151 = vmatprep.subr.bf16.mxu0 0
        %2152 = vmatpush1.bf16.msra.mxu0 0
        %2153 = vmatprep.mubr.bf16.mxu0 0
        %2154 = vmatmul.mubr.bf16.gmra.mrb[0].mxu0 %v2116
        %v2155 = vpop.f32.mrb[0].mxu0
        %v2156 = vadd.f32 0.0, %v2155
        %v2157 = vpop.f32.mrb[0].mxu0
        %v2158 = vpop.f32.mrb[0].mxu0
        %v2159 = vadd.f32 0.0, %v2158
        %v2160 = vpop.f32.mrb[0].mxu0
        %2161 = vmatprep.mubr.bf16.mxu0 0
        %2162 = vmatmul.mubr.bf16.gmra.mrb[0].mxu0 %v2119
        %v2163 = vpop.f32.mrb[0].mxu0
        %v2164 = vadd.f32 0.0, %v2163
        %v2165 = vpop.f32.mrb[0].mxu0
        %v2166 = vpop.f32.mrb[0].mxu0
        %v2167 = vadd.f32 0.0, %v2166
        %v2168 = vpop.f32.mrb[0].mxu0
        %2169 = vdwg.mxu0
        %2171 = vrot.lane.b32.xlu0 %v2159, 110
        %v2172 = vpop.permute.xlu0 %2171
        %v2174 = vadd.f32 %v2156, %v2172
        %v2175 = vpack.c.bf16 %v2174, %v2174
        %2177 = vrot.lane.b32.xlu0 %v2167, 110
        %v2178 = vpop.permute.xlu0 %2177
        %v2180 = vadd.f32 %v2164, %v2178
        %v2181 = vpack.c.bf16 %v2180, %v2180
        %2183 = vrot.lane.b32.xlu0 %v1676, 18
        %v2184 = vpop.permute.xlu0 %2183
        %2186 = vrot.lane.b32.xlu0 %v1682, 36
        %v2187 = vpop.permute.xlu0 %2186
        %2189 = vrot.lane.b32.xlu0 %v1749, 54
        %v2190 = vpop.permute.xlu0 %2189
        %2192 = vrot.lane.b32.xlu0 %v1755, 72
        %v2193 = vpop.permute.xlu0 %2192
        %2195 = vrot.lane.b32.xlu0 %v1820, 90
        %v2196 = vpop.permute.xlu0 %2195
        %2198 = vrot.lane.b32.xlu0 %v1826, 108
        %v2199 = vpop.permute.xlu0 %2198
        %2201 = vrot.lane.b32.xlu0 %v1891, 126
        %v2202 = vpop.permute.xlu0 %2201
        %2204 = vrot.lane.b32.xlu0 %v1897, 16
        %v2205 = vpop.permute.xlu0 %2204
        %2207 = vrot.lane.b32.xlu0 %v1962, 34
        %v2208 = vpop.permute.xlu0 %2207
        %2210 = vrot.lane.b32.xlu0 %v1968, 52
        %v2211 = vpop.permute.xlu0 %2210
        %2213 = vrot.lane.b32.xlu0 %v2033, 70
        %v2214 = vpop.permute.xlu0 %2213
        %2216 = vrot.lane.b32.xlu0 %v2039, 88
        %v2217 = vpop.permute.xlu0 %2216
        %2219 = vrot.lane.b32.xlu0 %v2104, 106
        %v2220 = vpop.permute.xlu0 %2219
        %2222 = vrot.lane.b32.xlu0 %v2110, 124
        %v2223 = vpop.permute.xlu0 %2222
        %2225 = vrot.lane.b32.xlu0 %v2175, 14
        %v2226 = vpop.permute.xlu0 %2225
        %vm2227 = vcmask 146432
        %v2229 = vsel %vm2227, 0, %v2184
        %v2231 = vsel %vm977, %v2229, %v2187
        %vm2232 = vcmask 441344
        %v2234 = vsel %vm2232, %v2231, %v2190
        %v2236 = vsel %vm1546, %v2234, %v2193
        %v2238 = vsel %vm1473, %v2236, %v2196
        %vm2239 = vcmask 883712
        %v2241 = vsel %vm2239, %v2238, %v2199
        %vm2242 = vcmask 1031168
        %v2244 = vsel %vm2242, %v2241, %v2202
        %vm2245 = vcmask 130048
        %v2247 = vsel %vm2245, %v2202, %v2205
        %vm2248 = vcmask 277504
        %v2250 = vsel %vm2248, %v2247, %v2208
        %vm2251 = vcmask 424960
        %v2253 = vsel %vm2251, %v2250, %v2211
        %v2255 = vsel %vm1467, %v2253, %v2214
        %vm2256 = vcmask 719872
        %v2258 = vsel %vm2256, %v2255, %v2217
        %vm2259 = vcmask 867328
        %v2261 = vsel %vm2259, %v2258, %v2220
        %vm2262 = vcmask 1014784
        %v2264 = vsel %vm2262, %v2261, %v2223
        %vm2265 = vcmask 113664
        %v2267 = vsel %vm2265, %v2223, %v2226
        %v2269 = vsel %vm2227, %v2181, 0
        %2271 = vrot.lane.b32.xlu0 %v2269, 32
        %v2272 = vpop.permute.xlu0 %2271
        %vm2273 = vcmask 261120
        %v2275 = vsel %vm2273, %v2267, %v2272
        %2277 = vrot.lane.b32.xlu0 %v833, 19
        %v2278 = vpop.permute.xlu0 %2277
        %2279 = vrot.lane.b32.xlu0 %v833, 21
        %v2280 = vpop.permute.xlu0 %2279
        %2281 = vrot.lane.b32.xlu0 %v833, 23
        %v2282 = vpop.permute.xlu0 %2281
        %2283 = vrot.lane.b32.xlu0 %v833, 25
        %v2284 = vpop.permute.xlu0 %2283
        %2285 = vrot.lane.b32.xlu0 %v833, 27
        %v2286 = vpop.permute.xlu0 %2285
        %2287 = vrot.lane.b32.xlu0 %v833, 29
        %v2288 = vpop.permute.xlu0 %2287
        %2289 = vrot.lane.b32.xlu0 %v833, 31
        %v2290 = vpop.permute.xlu0 %2289
        %2291 = vrot.lane.b32.xlu0 %v833, 33
        %v2292 = vpop.permute.xlu0 %2291
        %v2294 = vsel %vm855, 0, %v2278
        %vm2295 = vcmask 285696
        %v2296 = vsel %vm2295, %v2294, 0
        %vm2297 = vcmask 302080
        %v2299 = vsel %vm2297, %v2296, %v2280
        %vm2300 = vcmask 433152
        %v2301 = vsel %vm2300, %v2299, 0
        %vm2302 = vcmask 449536
        %v2304 = vsel %vm2302, %v2301, %v2282
        %vm2305 = vcmask 580608
        %v2306 = vsel %vm2305, %v2304, 0
        %vm2307 = vcmask 596992
        %v2309 = vsel %vm2307, %v2306, %v2284
        %vm2310 = vcmask 728064
        %v2311 = vsel %vm2310, %v2309, 0
        %vm2312 = vcmask 744448
        %v2314 = vsel %vm2312, %v2311, %v2286
        %vm2315 = vcmask 875520
        %v2316 = vsel %vm2315, %v2314, 0
        %vm2317 = vcmask 891904
        %v2319 = vsel %vm2317, %v2316, %v2288
        %vm2320 = vcmask 1022976
        %v2321 = vsel %vm2320, %v2319, 0
        %vm2322 = vcmask 1039360
        %v2324 = vsel %vm2322, %v2321, %v2290
        %vm2325 = vcmask 121856
        %v2326 = vsel %vm2325, %v2290, 0
        %v2328 = vsel %vm853, %v2326, %v2292
        %2330 = vrot.lane.b32.xlu0 %v834, 2
        %v2331 = vpop.permute.xlu0 %2330
        %2332 = vrot.lane.b32.xlu0 %v834, 4
        %v2333 = vpop.permute.xlu0 %2332
        %2334 = vrot.lane.b32.xlu0 %v834, 6
        %v2335 = vpop.permute.xlu0 %2334
        %2336 = vrot.lane.b32.xlu0 %v834, 8
        %v2337 = vpop.permute.xlu0 %2336
        %2338 = vrot.lane.b32.xlu0 %v834, 10
        %v2339 = vpop.permute.xlu0 %2338
        %2340 = vrot.lane.b32.xlu0 %v834, 12
        %v2341 = vpop.permute.xlu0 %2340
        %2342 = vrot.lane.b32.xlu0 %v834, 14
        %v2343 = vpop.permute.xlu0 %2342
        %2344 = vrot.lane.b32.xlu0 %v834, 16
        %v2345 = vpop.permute.xlu0 %2344
        %vm2346 = vcmask 15360
        %v2348 = vsel %vm2346, 0, %v2331
        %v2349 = vsel %vm2227, %v2348, 0
        %v2351 = vsel %vm1452, %v2349, %v2333
        %v2352 = vsel %vm977, %v2351, 0
        %vm2353 = vcmask 310272
        %v2355 = vsel %vm2353, %v2352, %v2335
        %v2356 = vsel %vm2232, %v2355, 0
        %vm2357 = vcmask 457728
        %v2359 = vsel %vm2357, %v2356, %v2337
        %v2360 = vsel %vm1546, %v2359, 0
        %vm2361 = vcmask 605184
        %v2363 = vsel %vm2361, %v2360, %v2339
        %v2364 = vsel %vm1473, %v2363, 0
        %vm2365 = vcmask 752640
        %v2367 = vsel %vm2365, %v2364, %v2341
        %v2368 = vsel %vm2239, %v2367, 0
        %vm2369 = vcmask 900096
        %v2371 = vsel %vm2369, %v2368, %v2343
        %v2372 = vsel %vm2242, %v2371, 0
        %2374 = vrot.lane.b32.xlu0 %v2372, 33
        %v2375 = vpop.permute.xlu0 %2374
        %2376 = vrot.lane.b32.xlu0 %v2345, 33
        %v2377 = vpop.permute.xlu0 %2376
        %vm2378 = vcmask 269312
        %v2379 = vsel %vm2378, %v2375, %v2377
        %vm2380 = vcmask 269312
        %v2382 = vsel %vm2380, %v2328, %v2375
        %vm2383 = vcmask 400384
        %v2385 = vsel %vm2383, %v2379, 0
        %v2386 = vld [vmem:[#allocation19] sm:$0xf]
        %v2390 = vrot.slane %v2244, 4
        %v2391 = vrot.slane %v2264, 4
        %v2392 = vrot.slane %v2275, 4
        %2393 = vrot.lane.b32.xlu0 %v2390, 127
        %v2394 = vpop.permute.xlu0 %2393
        %2395 = vrot.lane.b32.xlu0 %v2391, 127
        %v2396 = vpop.permute.xlu0 %2395
        %2397 = vrot.lane.b32.xlu0 %v2392, 127
        %v2398 = vpop.permute.xlu0 %2397
        %vm2399 = vcmask 1039360
        %v2400 = vsel %vm2399, %v2394, %v2396
        %v2401 = vsel %vm2399, %v2396, %v2398
        %2402 = vrot.lane.b32.xlu0 %v2244, 126
        %v2403 = vpop.permute.xlu0 %2402
        %2404 = vrot.lane.b32.xlu0 %v2264, 126
        %v2405 = vpop.permute.xlu0 %2404
        %2406 = vrot.lane.b32.xlu0 %v2275, 126
        %v2407 = vpop.permute.xlu0 %2406
        %vm2408 = vcmask 1031168
        %v2409 = vsel %vm2408, %v2403, %v2405
        %v2410 = vsel %vm2408, %v2405, %v2407
        %2411 = vrot.lane.b32.xlu0 %v2390, 110
        %v2412 = vpop.permute.xlu0 %2411
        %2413 = vrot.lane.b32.xlu0 %v2391, 110
        %v2414 = vpop.permute.xlu0 %2413
        %2415 = vrot.lane.b32.xlu0 %v2392, 110
        %v2416 = vpop.permute.xlu0 %2415
        %vm2417 = vcmask 900096
        %v2418 = vsel %vm2417, %v2412, %v2414
        %v2419 = vsel %vm2417, %v2414, %v2416
        %2420 = vrot.lane.b32.xlu0 %v2244, 109
        %v2421 = vpop.permute.xlu0 %2420
        %2422 = vrot.lane.b32.xlu0 %v2264, 109
        %v2423 = vpop.permute.xlu0 %2422
        %2424 = vrot.lane.b32.xlu0 %v2275, 109
        %v2425 = vpop.permute.xlu0 %2424
        %vm2426 = vcmask 891904
        %v2427 = vsel %vm2426, %v2421, %v2423
        %v2428 = vsel %vm2426, %v2423, %v2425
        %2429 = vrot.lane.b32.xlu0 %v2390, 108
        %v2430 = vpop.permute.xlu0 %2429
        %2431 = vrot.lane.b32.xlu0 %v2391, 108
        %v2432 = vpop.permute.xlu0 %2431
        %2433 = vrot.lane.b32.xlu0 %v2392, 108
        %v2434 = vpop.permute.xlu0 %2433
        %vm2435 = vcmask 883712
        %v2436 = vsel %vm2435, %v2430, %v2432
        %v2437 = vsel %vm2435, %v2432, %v2434
        %2438 = vrot.lane.b32.xlu0 %v2244, 92
        %v2439 = vpop.permute.xlu0 %2438
        %2440 = vrot.lane.b32.xlu0 %v2264, 92
        %v2441 = vpop.permute.xlu0 %2440
        %2442 = vrot.lane.b32.xlu0 %v2275, 92
        %v2443 = vpop.permute.xlu0 %2442
        %vm2444 = vcmask 752640
        %v2445 = vsel %vm2444, %v2439, %v2441
        %v2446 = vsel %vm2444, %v2441, %v2443
        %2447 = vrot.lane.b32.xlu0 %v2390, 91
        %v2448 = vpop.permute.xlu0 %2447
        %2449 = vrot.lane.b32.xlu0 %v2391, 91
        %v2450 = vpop.permute.xlu0 %2449
        %2451 = vrot.lane.b32.xlu0 %v2392, 91
        %v2452 = vpop.permute.xlu0 %2451
        %vm2453 = vcmask 744448
        %v2454 = vsel %vm2453, %v2448, %v2450
        %v2455 = vsel %vm2453, %v2450, %v2452
        %2456 = vrot.lane.b32.xlu0 %v2244, 90
        %v2457 = vpop.permute.xlu0 %2456
        %2458 = vrot.lane.b32.xlu0 %v2264, 90
        %v2459 = vpop.permute.xlu0 %2458
        %2460 = vrot.lane.b32.xlu0 %v2275, 90
        %v2461 = vpop.permute.xlu0 %2460
        %vm2462 = vcmask 736256
        %v2463 = vsel %vm2462, %v2457, %v2459
        %v2464 = vsel %vm2462, %v2459, %v2461
        %v2466 = vsel %vm913, %v2244, %v2400
        %v2469 = vsel %vm913, %v2264, %v2401
        %v2472 = vsel %vm913, %v2275, %v2398
        %v2476 = vsel %vm913, %v2409, %v2418
        %v2480 = vsel %vm913, %v2410, %v2419
        %v2484 = vsel %vm913, %v2407, %v2416
        %v2488 = vsel %vm913, %v2427, %v2436
        %v2492 = vsel %vm913, %v2428, %v2437
        %v2496 = vsel %vm913, %v2425, %v2434
        %v2500 = vsel %vm913, %v2445, %v2454
        %v2504 = vsel %vm913, %v2446, %v2455
        %v2508 = vsel %vm913, %v2443, %v2452
        %v2510 = vld [vmem:[#allocation20] sm:$0xf]
        %v2514 = vrot.slane %v2324, 6
        %v2515 = vrot.slane %v2382, 6
        %v2516 = vrot.slane %v2385, 6
        %2517 = vrot.lane.b32.xlu0 %v2514, 127
        %v2518 = vpop.permute.xlu0 %2517
        %2519 = vrot.lane.b32.xlu0 %v2515, 127
        %v2520 = vpop.permute.xlu0 %2519
        %2521 = vrot.lane.b32.xlu0 %v2516, 127
        %v2522 = vpop.permute.xlu0 %2521
        %v2523 = vsel %vm2399, %v2518, %v2520
        %v2524 = vsel %vm2399, %v2520, %v2522
        %v2525 = vrot.slane %v2324, 4
        %v2526 = vrot.slane %v2382, 4
        %v2527 = vrot.slane %v2385, 4
        %2528 = vrot.lane.b32.xlu0 %v2525, 126
        %v2529 = vpop.permute.xlu0 %2528
        %2530 = vrot.lane.b32.xlu0 %v2526, 126
        %v2531 = vpop.permute.xlu0 %2530
        %2532 = vrot.lane.b32.xlu0 %v2527, 126
        %v2533 = vpop.permute.xlu0 %2532
        %v2534 = vsel %vm2408, %v2529, %v2531
        %v2535 = vsel %vm2408, %v2531, %v2533
        %v2536 = vrot.slane %v2324, 2
        %v2537 = vrot.slane %v2382, 2
        %v2538 = vrot.slane %v2385, 2
        %2539 = vrot.lane.b32.xlu0 %v2536, 110
        %v2540 = vpop.permute.xlu0 %2539
        %2541 = vrot.lane.b32.xlu0 %v2537, 110
        %v2542 = vpop.permute.xlu0 %2541
        %2543 = vrot.lane.b32.xlu0 %v2538, 110
        %v2544 = vpop.permute.xlu0 %2543
        %v2545 = vsel %vm2417, %v2540, %v2542
        %v2546 = vsel %vm2417, %v2542, %v2544
        %2547 = vrot.lane.b32.xlu0 %v2324, 109
        %v2548 = vpop.permute.xlu0 %2547
        %2549 = vrot.lane.b32.xlu0 %v2382, 109
        %v2550 = vpop.permute.xlu0 %2549
        %2551 = vrot.lane.b32.xlu0 %v2385, 109
        %v2552 = vpop.permute.xlu0 %2551
        %v2553 = vsel %vm2426, %v2548, %v2550
        %v2554 = vsel %vm2426, %v2550, %v2552
        %2555 = vrot.lane.b32.xlu0 %v2514, 108
        %v2556 = vpop.permute.xlu0 %2555
        %2557 = vrot.lane.b32.xlu0 %v2515, 108
        %v2558 = vpop.permute.xlu0 %2557
        %2559 = vrot.lane.b32.xlu0 %v2516, 108
        %v2560 = vpop.permute.xlu0 %2559
        %v2561 = vsel %vm2435, %v2556, %v2558
        %v2562 = vsel %vm2435, %v2558, %v2560
        %2563 = vrot.lane.b32.xlu0 %v2525, 92
        %v2564 = vpop.permute.xlu0 %2563
        %2565 = vrot.lane.b32.xlu0 %v2526, 92
        %v2566 = vpop.permute.xlu0 %2565
        %2567 = vrot.lane.b32.xlu0 %v2527, 92
        %v2568 = vpop.permute.xlu0 %2567
        %v2569 = vsel %vm2444, %v2564, %v2566
        %v2570 = vsel %vm2444, %v2566, %v2568
        %2571 = vrot.lane.b32.xlu0 %v2536, 91
        %v2572 = vpop.permute.xlu0 %2571
        %2573 = vrot.lane.b32.xlu0 %v2537, 91
        %v2574 = vpop.permute.xlu0 %2573
        %2575 = vrot.lane.b32.xlu0 %v2538, 91
        %v2576 = vpop.permute.xlu0 %2575
        %v2577 = vsel %vm2453, %v2572, %v2574
        %v2578 = vsel %vm2453, %v2574, %v2576
        %2579 = vrot.lane.b32.xlu0 %v2324, 90
        %v2580 = vpop.permute.xlu0 %2579
        %2581 = vrot.lane.b32.xlu0 %v2382, 90
        %v2582 = vpop.permute.xlu0 %2581
        %2583 = vrot.lane.b32.xlu0 %v2385, 90
        %v2584 = vpop.permute.xlu0 %2583
        %v2585 = vsel %vm2462, %v2580, %v2582
        %v2586 = vsel %vm2462, %v2582, %v2584
        %v2588 = vsel %vm910, %v2324, %v2523
        %v2590 = vsel %vm910, %v2382, %v2524
        %v2592 = vsel %vm910, %v2385, %v2522
        %v2594 = vsel %vm913, %v2588, %v2534
        %v2596 = vsel %vm913, %v2590, %v2535
        %v2598 = vsel %vm913, %v2592, %v2533
        %v2600 = vsel %vm916, %v2594, %v2545
        %v2603 = vsel %vm916, %v2596, %v2546
        %v2606 = vsel %vm916, %v2598, %v2544
        %v2610 = vsel %vm910, %v2553, %v2561
        %v2613 = vsel %vm910, %v2554, %v2562
        %v2616 = vsel %vm910, %v2552, %v2560
        %v2618 = vsel %vm913, %v2610, %v2569
        %v2620 = vsel %vm913, %v2613, %v2570
        %v2622 = vsel %vm913, %v2616, %v2568
        %v2624 = vsel %vm916, %v2618, %v2577
        %v2627 = vsel %vm916, %v2620, %v2578
        %v2630 = vsel %vm916, %v2622, %v2576
        %v2633 = vsel %vm977, %v2510, 0
        %v2636 = vsel %vm910, %v2585, 0
        %v2639 = vsel %vm910, %v2586, 0
        %v2642 = vsel %vm910, %v2584, 0
        %2644 = vmatprep.subr.bf16.mxu0 %v2603
        %2645 = vmatpush1.bf16.msra.mxu0 %v2600
        %2646 = vmatprep.subr.bf16.mxu0 %v2627
        %2647 = vmatpush1.bf16.msra.mxu0 %v2624
        %2648 = vmatprep.subr.bf16.mxu0 %v2639
        %2649 = vmatpush1.bf16.msra.mxu0 %v2636
        %2650 = vmatprep.subr.bf16.mxu0 0
        %2651 = vmatpush1.bf16.msra.mxu0 0
        %2652 = vmatprep.subr.bf16.mxu0 0
        %2653 = vmatpush1.bf16.msra.mxu0 0
        %2654 = vmatprep.subr.bf16.mxu0 0
        %2655 = vmatpush1.bf16.msra.mxu0 0
        %2656 = vmatprep.subr.bf16.mxu0 0
        %2657 = vmatpush1.bf16.msra.mxu0 0
        %2658 = vmatprep.subr.bf16.mxu0 0
        %2659 = vmatpush1.bf16.msra.mxu0 0
        %2660 = vmatprep.subr.bf16.mxu0 0
        %2661 = vmatpush1.bf16.msra.mxu0 0
        %2662 = vmatprep.subr.bf16.mxu0 0
        %2663 = vmatpush1.bf16.msra.mxu0 0
        %2664 = vmatprep.subr.bf16.mxu0 0
        %2665 = vmatpush1.bf16.msra.mxu0 0
        %2666 = vmatprep.subr.bf16.mxu0 0
        %2667 = vmatpush1.bf16.msra.mxu0 0
        %2668 = vmatprep.subr.bf16.mxu0 0
        %2669 = vmatpush1.bf16.msra.mxu0 0
        %2670 = vmatprep.subr.bf16.mxu0 0
        %2671 = vmatpush1.bf16.msra.mxu0 0
        %2672 = vmatprep.subr.bf16.mxu0 0
        %2673 = vmatpush1.bf16.msra.mxu0 0
        %2674 = vmatprep.subr.bf16.mxu0 0
        %2675 = vmatpush1.bf16.msra.mxu0 0
        %2676 = vmatprep.mubr.bf16.mxu0 0
        %2677 = vmatmul.mubr.bf16.gmra.mrb[0].mxu0 %v2633
        %v2678 = vpop.f32.mrb[0].mxu0
        %v2679 = vadd.f32 0.0, %v2678
        %v2680 = vpop.f32.mrb[0].mxu0
        %v2681 = vadd.f32 0.0, %v2680
        %v2682 = vpop.f32.mrb[0].mxu0
        %v2683 = vpop.f32.mrb[0].mxu0
        %2684 = vdwg.mxu0
        %2685 = vmatprep.subr.bf16.mxu0 0
        %2686 = vmatpush1.bf16.msra.mxu0 %v2606
        %2687 = vmatprep.subr.bf16.mxu0 0
        %2688 = vmatpush1.bf16.msra.mxu0 %v2630
        %2689 = vmatprep.subr.bf16.mxu0 0
        %2690 = vmatpush1.bf16.msra.mxu0 %v2642
        %2691 = vmatprep.subr.bf16.mxu0 0
        %2692 = vmatpush1.bf16.msra.mxu0 0
        %2693 = vmatprep.subr.bf16.mxu0 0
        %2694 = vmatpush1.bf16.msra.mxu0 0
        %2695 = vmatprep.subr.bf16.mxu0 0
        %2696 = vmatpush1.bf16.msra.mxu0 0
        %2697 = vmatprep.subr.bf16.mxu0 0
        %2698 = vmatpush1.bf16.msra.mxu0 0
        %2699 = vmatprep.subr.bf16.mxu0 0
        %2700 = vmatpush1.bf16.msra.mxu0 0
        %2701 = vmatprep.subr.bf16.mxu0 0
        %2702 = vmatpush1.bf16.msra.mxu0 0
        %2703 = vmatprep.subr.bf16.mxu0 0
        %2704 = vmatpush1.bf16.msra.mxu0 0
        %2705 = vmatprep.subr.bf16.mxu0 0
        %2706 = vmatpush1.bf16.msra.mxu0 0
        %2707 = vmatprep.subr.bf16.mxu0 0
        %2708 = vmatpush1.bf16.msra.mxu0 0
        %2709 = vmatprep.subr.bf16.mxu0 0
        %2710 = vmatpush1.bf16.msra.mxu0 0
        %2711 = vmatprep.subr.bf16.mxu0 0
        %2712 = vmatpush1.bf16.msra.mxu0 0
        %2713 = vmatprep.subr.bf16.mxu0 0
        %2714 = vmatpush1.bf16.msra.mxu0 0
        %2715 = vmatprep.subr.bf16.mxu0 0
        %2716 = vmatpush1.bf16.msra.mxu0 0
        %2717 = vmatprep.mubr.bf16.mxu0 0
        %2718 = vmatmul.mubr.bf16.gmra.mrb[0].mxu0 %v2633
        %v2719 = vpop.f32.mrb[0].mxu0
        %v2720 = vadd.f32 0.0, %v2719
        %v2721 = vpop.f32.mrb[0].mxu0
        %v2722 = vpop.f32.mrb[0].mxu0
        %v2723 = vpop.f32.mrb[0].mxu0
        %2724 = vdwg.mxu0
        %v2726 = vsel %vm1546, %v2386, 0
        %v2729 = vsel %vm913, %v2463, 0
        %v2732 = vsel %vm913, %v2464, 0
        %v2735 = vsel %vm913, %v2461, 0
        %2737 = vmatprep.subr.bf16.mxu0 %v2469
        %2738 = vmatpush1.bf16.msra.mxu0 %v2466
        %2739 = vmatprep.subr.bf16.mxu0 %v2480
        %2740 = vmatpush1.bf16.msra.mxu0 %v2476
        %2741 = vmatprep.subr.bf16.mxu0 %v2492
        %2742 = vmatpush1.bf16.msra.mxu0 %v2488
        %2743 = vmatprep.subr.bf16.mxu0 %v2504
        %2744 = vmatpush1.bf16.msra.mxu0 %v2500
        %2745 = vmatprep.subr.bf16.mxu0 %v2732
        %2746 = vmatpush1.bf16.msra.mxu0 %v2729
        %2747 = vmatprep.subr.bf16.mxu0 0
        %2748 = vmatpush1.bf16.msra.mxu0 0
        %2749 = vmatprep.subr.bf16.mxu0 0
        %2750 = vmatpush1.bf16.msra.mxu0 0
        %2751 = vmatprep.subr.bf16.mxu0 0
        %2752 = vmatpush1.bf16.msra.mxu0 0
        %2753 = vmatprep.subr.bf16.mxu0 0
        %2754 = vmatpush1.bf16.msra.mxu0 0
        %2755 = vmatprep.subr.bf16.mxu0 0
        %2756 = vmatpush1.bf16.msra.mxu0 0
        %2757 = vmatprep.subr.bf16.mxu0 0
        %2758 = vmatpush1.bf16.msra.mxu0 0
        %2759 = vmatprep.subr.bf16.mxu0 0
        %2760 = vmatpush1.bf16.msra.mxu0 0
        %2761 = vmatprep.subr.bf16.mxu0 0
        %2762 = vmatpush1.bf16.msra.mxu0 0
        %2763 = vmatprep.subr.bf16.mxu0 0
        %2764 = vmatpush1.bf16.msra.mxu0 0
        %2765 = vmatprep.subr.bf16.mxu0 0
        %2766 = vmatpush1.bf16.msra.mxu0 0
        %2767 = vmatprep.subr.bf16.mxu0 0
        %2768 = vmatpush1.bf16.msra.mxu0 0
        %2769 = vmatprep.mubr.bf16.mxu0 0
        %2770 = vmatmul.mubr.bf16.gmra.mrb[0].mxu0 %v2726
        %v2771 = vpop.f32.mrb[0].mxu0
        %v2772 = vadd.f32 %v2679, %v2771
        %v2773 = vpop.f32.mrb[0].mxu0
        %v2774 = vadd.f32 %v2681, %v2773
        %v2775 = vpop.f32.mrb[0].mxu0
        %v2776 = vpop.f32.mrb[0].mxu0
        %2777 = vdwg.mxu0
        %2778 = vmatprep.subr.bf16.mxu0 0
        %2779 = vmatpush1.bf16.msra.mxu0 %v2472
        %2780 = vmatprep.subr.bf16.mxu0 0
        %2781 = vmatpush1.bf16.msra.mxu0 %v2484
        %2782 = vmatprep.subr.bf16.mxu0 0
        %2783 = vmatpush1.bf16.msra.mxu0 %v2496
        %2784 = vmatprep.subr.bf16.mxu0 0
        %2785 = vmatpush1.bf16.msra.mxu0 %v2508
        %2786 = vmatprep.subr.bf16.mxu0 0
        %2787 = vmatpush1.bf16.msra.mxu0 %v2735
        %2788 = vmatprep.subr.bf16.mxu0 0
        %2789 = vmatpush1.bf16.msra.mxu0 0
        %2790 = vmatprep.subr.bf16.mxu0 0
        %2791 = vmatpush1.bf16.msra.mxu0 0
        %2792 = vmatprep.subr.bf16.mxu0 0
        %2793 = vmatpush1.bf16.msra.mxu0 0
        %2794 = vmatprep.subr.bf16.mxu0 0
        %2795 = vmatpush1.bf16.msra.mxu0 0
        %2796 = vmatprep.subr.bf16.mxu0 0
        %2797 = vmatpush1.bf16.msra.mxu0 0
        %2798 = vmatprep.subr.bf16.mxu0 0
        %2799 = vmatpush1.bf16.msra.mxu0 0
        %2800 = vmatprep.subr.bf16.mxu0 0
        %2801 = vmatpush1.bf16.msra.mxu0 0
        %2802 = vmatprep.subr.bf16.mxu0 0
        %2803 = vmatpush1.bf16.msra.mxu0 0
        %2804 = vmatprep.subr.bf16.mxu0 0
        %2805 = vmatpush1.bf16.msra.mxu0 0
        %2806 = vmatprep.subr.bf16.mxu0 0
        %2807 = vmatpush1.bf16.msra.mxu0 0
        %2808 = vmatprep.subr.bf16.mxu0 0
        %2809 = vmatpush1.bf16.msra.mxu0 0
        %2810 = vmatprep.mubr.bf16.mxu0 0
        %2811 = vmatmul.mubr.bf16.gmra.mrb[0].mxu0 %v2726
        %v2812 = vpop.f32.mrb[0].mxu0
        %v2813 = vadd.f32 %v2720, %v2812
        %v2814 = vpop.f32.mrb[0].mxu0
        %v2815 = vpop.f32.mrb[0].mxu0
        %v2816 = vpop.f32.mrb[0].mxu0
        %2817 = vdwg.mxu0
        %v2818 = vld [vmem:[#allocation22] sm:$0xff]
        %2820 = vset.pattern.permute.xlu0 0
        %2821 = vperm.xlu0 %2820, %v2818
        %v2822 = vpop.permute.xlu0 %2821
        %v2824 = vadd.f32 %v2772, %v2822
        %v2825 = vadd.f32 %v2774, %v2822
        %v2826 = vadd.f32 %v2813, %v2822
        %v2827 = vmax.f32 %v2824, 0.0
        %v2828 = vmax.f32 %v2825, 0.0
        %v2829 = vmax.f32 %v2826, 0.0
        %v2830 = vld [vmem:[#allocation23] sm:$0x7]
        %v2832 = vlaneseq
        %v2833 = vshrl.u32 %v2832, 7
        %v2834 = vsub.s32 0, %v2833
        %v2835 = vrot.slane %v2830, %v2834
        %v2836 = vlaneseq
        %v2837 = vshrl.u32 %v2836, 7
        %v2838 = vsub.s32 1, %v2837
        %v2839 = vrot.slane %v2830, %v2838
        %v2840 = vlaneseq
        %v2841 = vshrl.u32 %v2840, 7
        %v2842 = vsub.s32 2, %v2841
        %v2843 = vrot.slane %v2830, %v2842
        %v2847 = vmul.f32 %v2827, %v2835
        %v2848 = vmul.f32 %v2828, %v2839
        %v2849 = vmul.f32 %v2829, %v2843
        %v2850 = vpack.c.bf16 %v2847, %v2847
        %v2851 = vpack.c.bf16 %v2848, %v2848
        %v2852 = vpack.c.bf16 %v2849, %v2849
        %2856 = vrot.lane.b32.xlu0 %v2850, 19
        %v2857 = vpop.permute.xlu0 %2856
        %2858 = vrot.lane.b32.xlu0 %v2851, 19
        %v2859 = vpop.permute.xlu0 %2858
        %2860 = vrot.lane.b32.xlu0 %v2852, 19
        %v2861 = vpop.permute.xlu0 %2860
        %vm2862 = vcmask 154624
        %v2863 = vsel %vm2862, %v2857, %v2859
        %v2864 = vsel %vm2862, %v2859, %v2861
        %v2866 = vsel %vm855, 0, %v2857
        %v2868 = vsel %vm2383, %v2864, 0
        %v2869 = vld [vmem:[#allocation25] sm:$0xf]
        %v2870 = vld [vmem:[#allocation25 + $0x4] sm:$0xf]
        %v2873 = vrot.slane %v2866, 4
        %v2874 = vrot.slane %v2863, 4
        %v2875 = vrot.slane %v2868, 4
        %2876 = vrot.lane.b32.xlu0 %v2873, 127
        %v2877 = vpop.permute.xlu0 %2876
        %2878 = vrot.lane.b32.xlu0 %v2874, 127
        %v2879 = vpop.permute.xlu0 %2878
        %2880 = vrot.lane.b32.xlu0 %v2875, 127
        %v2881 = vpop.permute.xlu0 %2880
        %v2882 = vsel %vm2399, %v2877, %v2879
        %v2883 = vsel %vm2399, %v2879, %v2881
        %2884 = vrot.lane.b32.xlu0 %v2866, 126
        %v2885 = vpop.permute.xlu0 %2884
        %2886 = vrot.lane.b32.xlu0 %v2863, 126
        %v2887 = vpop.permute.xlu0 %2886
        %2888 = vrot.lane.b32.xlu0 %v2868, 126
        %v2889 = vpop.permute.xlu0 %2888
        %v2890 = vsel %vm2408, %v2885, %v2887
        %v2891 = vsel %vm2408, %v2887, %v2889
        %2892 = vrot.lane.b32.xlu0 %v2873, 110
        %v2893 = vpop.permute.xlu0 %2892
        %2894 = vrot.lane.b32.xlu0 %v2874, 110
        %v2895 = vpop.permute.xlu0 %2894
        %2896 = vrot.lane.b32.xlu0 %v2875, 110
        %v2897 = vpop.permute.xlu0 %2896
        %v2898 = vsel %vm2417, %v2893, %v2895
        %v2899 = vsel %vm2417, %v2895, %v2897
        %2900 = vrot.lane.b32.xlu0 %v2866, 109
        %v2901 = vpop.permute.xlu0 %2900
        %2902 = vrot.lane.b32.xlu0 %v2863, 109
        %v2903 = vpop.permute.xlu0 %2902
        %2904 = vrot.lane.b32.xlu0 %v2868, 109
        %v2905 = vpop.permute.xlu0 %2904
        %v2906 = vsel %vm2426, %v2901, %v2903
        %v2907 = vsel %vm2426, %v2903, %v2905
        %2908 = vrot.lane.b32.xlu0 %v2873, 108
        %v2909 = vpop.permute.xlu0 %2908
        %2910 = vrot.lane.b32.xlu0 %v2874, 108
        %v2911 = vpop.permute.xlu0 %2910
        %2912 = vrot.lane.b32.xlu0 %v2875, 108
        %v2913 = vpop.permute.xlu0 %2912
        %v2914 = vsel %vm2435, %v2909, %v2911
        %v2915 = vsel %vm2435, %v2911, %v2913
        %2916 = vrot.lane.b32.xlu0 %v2866, 92
        %v2917 = vpop.permute.xlu0 %2916
        %2918 = vrot.lane.b32.xlu0 %v2863, 92
        %v2919 = vpop.permute.xlu0 %2918
        %2920 = vrot.lane.b32.xlu0 %v2868, 92
        %v2921 = vpop.permute.xlu0 %2920
        %v2922 = vsel %vm2444, %v2917, %v2919
        %v2923 = vsel %vm2444, %v2919, %v2921
        %2924 = vrot.lane.b32.xlu0 %v2873, 91
        %v2925 = vpop.permute.xlu0 %2924
        %2926 = vrot.lane.b32.xlu0 %v2874, 91
        %v2927 = vpop.permute.xlu0 %2926
        %2928 = vrot.lane.b32.xlu0 %v2875, 91
        %v2929 = vpop.permute.xlu0 %2928
        %v2930 = vsel %vm2453, %v2925, %v2927
        %v2931 = vsel %vm2453, %v2927, %v2929
        %2932 = vrot.lane.b32.xlu0 %v2866, 90
        %v2933 = vpop.permute.xlu0 %2932
        %2934 = vrot.lane.b32.xlu0 %v2863, 90
        %v2935 = vpop.permute.xlu0 %2934
        %2936 = vrot.lane.b32.xlu0 %v2868, 90
        %v2937 = vpop.permute.xlu0 %2936
        %v2938 = vsel %vm2462, %v2933, %v2935
        %v2939 = vsel %vm2462, %v2935, %v2937
        %v2941 = vsel %vm913, %v2866, %v2882
        %v2945 = vsel %vm913, %v2863, %v2883
        %v2948 = vsel %vm913, %v2868, %v2881
        %v2952 = vsel %vm913, %v2890, %v2898
        %v2956 = vsel %vm913, %v2891, %v2899
        %v2960 = vsel %vm913, %v2889, %v2897
        %v2964 = vsel %vm913, %v2906, %v2914
        %v2968 = vsel %vm913, %v2907, %v2915
        %v2972 = vsel %vm913, %v2905, %v2913
        %v2976 = vsel %vm913, %v2922, %v2930
        %v2980 = vsel %vm913, %v2923, %v2931
        %v2984 = vsel %vm913, %v2921, %v2929
        %v2986 = vld [vmem:[#allocation26] sm:$0xff]
        %v2987 = vld [vmem:[#allocation26 + $0x8] sm:$0xff]
        %2989 = vset.pattern.permute.xlu0 0
        %2990 = vperm.xlu0 %2989, %v2986
        %v2991 = vpop.permute.xlu0 %2990
        %2994 = vset.pattern.permute.xlu0 0
        %2995 = vperm.xlu0 %2994, %v2987
        %v2996 = vpop.permute.xlu0 %2995
        %v3000 = vunpack.c.l.b16 %v2869
        %v3001 = vunpack.c.l.b16 %v2870
        %v3002 = vpack.c.b16 %v3001, %v3000
        %v3004 = vsel %vm1546, %v3002, 0
        %v3007 = vsel %vm913, %v2938, 0
        %v3010 = vsel %vm913, %v2939, 0
        %v3013 = vsel %vm913, %v2937, 0
        %3015 = vmatprep.subr.bf16.mxu0 %v2945
        %3016 = vmatpush1.bf16.msra.mxu0 %v2941
        %3017 = vmatprep.subr.bf16.mxu0 %v2956
        %3018 = vmatpush1.bf16.msra.mxu0 %v2952
        %3019 = vmatprep.subr.bf16.mxu0 %v2968
        %3020 = vmatpush1.bf16.msra.mxu0 %v2964
        %3021 = vmatprep.subr.bf16.mxu0 %v2980
        %3022 = vmatpush1.bf16.msra.mxu0 %v2976
        %3023 = vmatprep.subr.bf16.mxu0 %v3010
        %3024 = vmatpush1.bf16.msra.mxu0 %v3007
        %3025 = vmatprep.subr.bf16.mxu0 0
        %3026 = vmatpush1.bf16.msra.mxu0 0
        %3027 = vmatprep.subr.bf16.mxu0 0
        %3028 = vmatpush1.bf16.msra.mxu0 0
        %3029 = vmatprep.subr.bf16.mxu0 0
        %3030 = vmatpush1.bf16.msra.mxu0 0
        %3031 = vmatprep.subr.bf16.mxu0 0
        %3032 = vmatpush1.bf16.msra.mxu0 0
        %3033 = vmatprep.subr.bf16.mxu0 0
        %3034 = vmatpush1.bf16.msra.mxu0 0
        %3035 = vmatprep.subr.bf16.mxu0 0
        %3036 = vmatpush1.bf16.msra.mxu0 0
        %3037 = vmatprep.subr.bf16.mxu0 0
        %3038 = vmatpush1.bf16.msra.mxu0 0
        %3039 = vmatprep.subr.bf16.mxu0 0
        %3040 = vmatpush1.bf16.msra.mxu0 0
        %3041 = vmatprep.subr.bf16.mxu0 0
        %3042 = vmatpush1.bf16.msra.mxu0 0
        %3043 = vmatprep.subr.bf16.mxu0 0
        %3044 = vmatpush1.bf16.msra.mxu0 0
        %3045 = vmatprep.subr.bf16.mxu0 0
        %3046 = vmatpush1.bf16.msra.mxu0 0
        %3047 = vmatprep.mubr.bf16.mxu0 0
        %3048 = vmatmul.mubr.bf16.gmra.mrb[0].mxu0 %v3004
        %v3049 = vpop.f32.mrb[0].mxu0
        %v3050 = vadd.f32 %v2991, %v3049
        %v3051 = vpop.f32.mrb[0].mxu0
        %v3052 = vadd.f32 %v2991, %v3051
        %v3053 = vpop.f32.mrb[0].mxu0
        %v3054 = vadd.f32 %v2996, %v3053
        %v3055 = vpop.f32.mrb[0].mxu0
        %v3056 = vadd.f32 %v2996, %v3055
        %3057 = vdwg.mxu0
        %3058 = vmatprep.subr.bf16.mxu0 0
        %3059 = vmatpush1.bf16.msra.mxu0 %v2948
        %3060 = vmatprep.subr.bf16.mxu0 0
        %3061 = vmatpush1.bf16.msra.mxu0 %v2960
        %3062 = vmatprep.subr.bf16.mxu0 0
        %3063 = vmatpush1.bf16.msra.mxu0 %v2972
        %3064 = vmatprep.subr.bf16.mxu0 0
        %3065 = vmatpush1.bf16.msra.mxu0 %v2984
        %3066 = vmatprep.subr.bf16.mxu0 0
        %3067 = vmatpush1.bf16.msra.mxu0 %v3013
        %3068 = vmatprep.subr.bf16.mxu0 0
        %3069 = vmatpush1.bf16.msra.mxu0 0
        %3070 = vmatprep.subr.bf16.mxu0 0
        %3071 = vmatpush1.bf16.msra.mxu0 0
        %3072 = vmatprep.subr.bf16.mxu0 0
        %3073 = vmatpush1.bf16.msra.mxu0 0
        %3074 = vmatprep.subr.bf16.mxu0 0
        %3075 = vmatpush1.bf16.msra.mxu0 0
        %3076 = vmatprep.subr.bf16.mxu0 0
        %3077 = vmatpush1.bf16.msra.mxu0 0
        %3078 = vmatprep.subr.bf16.mxu0 0
        %3079 = vmatpush1.bf16.msra.mxu0 0
        %3080 = vmatprep.subr.bf16.mxu0 0
        %3081 = vmatpush1.bf16.msra.mxu0 0
        %3082 = vmatprep.subr.bf16.mxu0 0
        %3083 = vmatpush1.bf16.msra.mxu0 0
        %3084 = vmatprep.subr.bf16.mxu0 0
        %3085 = vmatpush1.bf16.msra.mxu0 0
        %3086 = vmatprep.subr.bf16.mxu0 0
        %3087 = vmatpush1.bf16.msra.mxu0 0
        %3088 = vmatprep.subr.bf16.mxu0 0
        %3089 = vmatpush1.bf16.msra.mxu0 0
        %3090 = vmatprep.mubr.bf16.mxu0 0
        %3091 = vmatmul.mubr.bf16.gmra.mrb[0].mxu0 %v3004
        %v3092 = vpop.f32.mrb[0].mxu0
        %v3093 = vadd.f32 %v2991, %v3092
        %v3094 = vpop.f32.mrb[0].mxu0
        %v3095 = vpop.f32.mrb[0].mxu0
        %v3096 = vadd.f32 %v2996, %v3095
        %v3097 = vpop.f32.mrb[0].mxu0
        %3098 = vdwg.mxu0
        %3101 = vrot.lane.b32.xlu0 %v3050, 126
        %v3102 = vpop.permute.xlu0 %3101
        %3103 = vrot.lane.b32.xlu0 %v3054, 126
        %v3104 = vpop.permute.xlu0 %3103
        %3107 = vrot.lane.b32.xlu0 %v3050, 124
        %v3108 = vpop.permute.xlu0 %3107
        %3109 = vrot.lane.b32.xlu0 %v3054, 124
        %v3110 = vpop.permute.xlu0 %3109
        %3113 = vrot.lane.b32.xlu0 %v3050, 122
        %v3114 = vpop.permute.xlu0 %3113
        %3115 = vrot.lane.b32.xlu0 %v3054, 122
        %v3116 = vpop.permute.xlu0 %3115
        %3119 = vrot.lane.b32.xlu0 %v3050, 120
        %v3120 = vpop.permute.xlu0 %3119
        %3121 = vrot.lane.b32.xlu0 %v3054, 120
        %v3122 = vpop.permute.xlu0 %3121
        %3125 = vrot.lane.b32.xlu0 %v3050, 118
        %v3126 = vpop.permute.xlu0 %3125
        %3127 = vrot.lane.b32.xlu0 %v3054, 118
        %v3128 = vpop.permute.xlu0 %3127
        %3131 = vrot.lane.b32.xlu0 %v3050, 116
        %v3132 = vpop.permute.xlu0 %3131
        %3133 = vrot.lane.b32.xlu0 %v3054, 116
        %v3134 = vpop.permute.xlu0 %3133
        %3139 = vrot.lane.b32.xlu0 %v3050, 114
        %v3140 = vpop.permute.xlu0 %3139
        %3141 = vrot.lane.b32.xlu0 %v3052, 114
        %v3142 = vpop.permute.xlu0 %3141
        %3143 = vrot.lane.b32.xlu0 %v3054, 114
        %v3144 = vpop.permute.xlu0 %3143
        %3145 = vrot.lane.b32.xlu0 %v3056, 114
        %v3146 = vpop.permute.xlu0 %3145
        %vm3147 = vcmask 932864
        %v3148 = vsel %vm3147, %v3140, %v3142
        %v3149 = vsel %vm3147, %v3144, %v3146
        %3152 = vrot.lane.b32.xlu0 %v3052, 112
        %v3153 = vpop.permute.xlu0 %3152
        %3154 = vrot.lane.b32.xlu0 %v3056, 112
        %v3155 = vpop.permute.xlu0 %3154
        %3158 = vrot.lane.b32.xlu0 %v3052, 110
        %v3159 = vpop.permute.xlu0 %3158
        %3160 = vrot.lane.b32.xlu0 %v3056, 110
        %v3161 = vpop.permute.xlu0 %3160
        %3164 = vrot.lane.b32.xlu0 %v3052, 108
        %v3165 = vpop.permute.xlu0 %3164
        %3166 = vrot.lane.b32.xlu0 %v3056, 108
        %v3167 = vpop.permute.xlu0 %3166
        %3170 = vrot.lane.b32.xlu0 %v3052, 106
        %v3171 = vpop.permute.xlu0 %3170
        %3172 = vrot.lane.b32.xlu0 %v3056, 106
        %v3173 = vpop.permute.xlu0 %3172
        %3176 = vrot.lane.b32.xlu0 %v3052, 104
        %v3177 = vpop.permute.xlu0 %3176
        %3178 = vrot.lane.b32.xlu0 %v3056, 104
        %v3179 = vpop.permute.xlu0 %3178
        %3182 = vrot.lane.b32.xlu0 %v3052, 102
        %v3183 = vpop.permute.xlu0 %3182
        %3184 = vrot.lane.b32.xlu0 %v3056, 102
        %v3185 = vpop.permute.xlu0 %3184
        %3190 = vrot.lane.b32.xlu0 %v3052, 100
        %v3191 = vpop.permute.xlu0 %3190
        %3192 = vrot.lane.b32.xlu0 %v3093, 100
        %v3193 = vpop.permute.xlu0 %3192
        %3194 = vrot.lane.b32.xlu0 %v3056, 100
        %v3195 = vpop.permute.xlu0 %3194
        %3196 = vrot.lane.b32.xlu0 %v3096, 100
        %v3197 = vpop.permute.xlu0 %3196
        %vm3198 = vcmask 818176
        %v3199 = vsel %vm3198, %v3191, %v3193
        %v3200 = vsel %vm3198, %v3195, %v3197
        %3203 = vrot.lane.b32.xlu0 %v3093, 98
        %v3204 = vpop.permute.xlu0 %3203
        %3205 = vrot.lane.b32.xlu0 %v3096, 98
        %v3206 = vpop.permute.xlu0 %3205
        %v3209 = vsel %vm2245, %v3050, %v3102
        %v3210 = vsel %vm2245, %v3054, %v3104
        %v3211 = vsel %vm2273, %v3209, %v3108
        %v3212 = vsel %vm2273, %v3210, %v3110
        %vm3213 = vcmask 392192
        %v3214 = vsel %vm3213, %v3211, %v3114
        %v3215 = vsel %vm3213, %v3212, %v3116
        %vm3216 = vcmask 523264
        %v3217 = vsel %vm3216, %v3214, %v3120
        %v3218 = vsel %vm3216, %v3215, %v3122
        %v3219 = vsel %vm1470, %v3217, %v3126
        %v3220 = vsel %vm1470, %v3218, %v3128
        %vm3221 = vcmask 785408
        %v3222 = vsel %vm3221, %v3219, %v3132
        %v3223 = vsel %vm3221, %v3220, %v3134
        %vm3224 = vcmask 916480
        %v3225 = vsel %vm3224, %v3222, %v3148
        %v3226 = vsel %vm3224, %v3223, %v3149
        %v3227 = vsel %vm2245, %v3153, %v3159
        %v3228 = vsel %vm2245, %v3155, %v3161
        %v3229 = vsel %vm2273, %v3227, %v3165
        %v3230 = vsel %vm2273, %v3228, %v3167
        %v3231 = vsel %vm3213, %v3229, %v3171
        %v3232 = vsel %vm3213, %v3230, %v3173
        %v3233 = vsel %vm3216, %v3231, %v3177
        %v3234 = vsel %vm3216, %v3232, %v3179
        %v3235 = vsel %vm1470, %v3233, %v3183
        %v3236 = vsel %vm1470, %v3234, %v3185
        %v3237 = vsel %vm3221, %v3235, %v3199
        %v3238 = vsel %vm3221, %v3236, %v3200
        %v3239 = vsel %vm3224, %v3237, %v3204
        %v3240 = vsel %vm3224, %v3238, %v3206
        %3241 = vst [vmem:[%s816] sm:$0xff] %v3225
        %3242 = vst [vmem:[%s816 + $0x8] sm:$0xff] %v3239
        %v3243 = vmax.f32 %v3226, 0.11
        %v3244 = vmax.f32 %v3240, 0.11
        %3245 = vst [vmem:[%s823] sm:$0xff] %v3243
        %3246 = vst [vmem:[%s823 + $0x8] sm:$0xff] %v3244
        %s3247 = sand.u32 %s407, 1
        %s3248 = scalar_lea.sflag [#allocation4], %s3247
        %s3249 = sand.u32 %s407, 1
        %s3250 = smul.addr %s3249, 16
        %s3251 = scalar_lea.vmem [#allocation28], %s3250
        %s3252 = sand.u32 %s433, 1
        %s3253 = scalar_lea.sflag [#allocation30], %s3252
        %s3254 = sand.u32 %s433, 1
        %s3255 = smul.addr %s3254, 16
        %s3256 = scalar_lea.vmem [#allocation29], %s3255
        // Predicated region
        $region149: #{hyper_cond_decoder.1} parent=83 // pred_check
          %p3257 = pneg %p417
        $region150: #{hyper_cond_decoder.1} parent=83 // pred_check_branch
          %3259 = sbr.rel (%p3257) target = $region152
        $region151: #{hyper_cond_decoder.1} parent=83 // pred_region
          %s3261 = ssub.s32 256, 256
          %3262 = vsyncadd %s3248, %s3261
          %s3263 = smul.addr %s48, 2
          %s3264 = smul.addr %s3263, 128
          %s3265 = scalar_lea.hbm %s16, %s3264
          %s3267 = sshll.u32 %s3251, 4
          %s3268 = int_to_ptr.vmem [resolvable:$true] %s3267
          %3270 = dma.vmem_to_hbm [thread:$0]  %s3268, 256, %s3265, %s3248
        $region152: #{hyper_cond_decoder.1} parent=83 // pred_fallthru
          _
        // Predicated region
        $region153: #{hyper_cond_decoder.1} parent=83 // pred_check
          %p3271 = pneg %p443
        $region154: #{hyper_cond_decoder.1} parent=83 // pred_check_branch
          %3273 = sbr.rel (%p3271) target = $region156
        $region155: #{hyper_cond_decoder.1} parent=83 // pred_region
          %s3275 = ssub.s32 256, 256
          %3276 = vsyncadd %s3253, %s3275
          %s3277 = smul.addr %s48, 2
          %s3278 = smul.addr %s3277, 128
          %s3279 = scalar_lea.hbm %s17, %s3278
          %s3281 = sshll.u32 %s3256, 4
          %s3282 = int_to_ptr.vmem [resolvable:$true] %s3281
          %3284 = dma.vmem_to_hbm [thread:$0]  %s3282, 256, %s3279, %s3253
        $region156: #{hyper_cond_decoder.1} parent=83 // pred_fallthru
          _
      $region84: #{hyper_cond_decoder.1} parent=5 // pred_fallthru
        _
      %p3285 = scmp.le.s32.totalorder 2, %s43
      // Predicated region
      $region157: #{hyper_cond_decoder.1} parent=5 // pred_check
        %p3286 = pneg %p3285
      $region158: #{hyper_cond_decoder.1} parent=5 // pred_check_branch
        %3288 = sbr.rel (%p3286) target = $region160
      $region159: #{hyper_cond_decoder.1} parent=5 // pred_region
        %s3289 = ssub.s32 %s43, 2
        // Predicated region
        $region161: #{hyper_cond_decoder.1} parent=159 // pred_check
          %p3290 = pneg %p423
        $region162: #{hyper_cond_decoder.1} parent=159 // pred_check_branch
          %3292 = sbr.rel (%p3290) target = $region164
        $region163: #{hyper_cond_decoder.1} parent=159 // pred_region
          %s3293 = sand.u32 %s408, 1
          %s3294 = scalar_lea.sflag [#allocation4], %s3293
          %s3295 = sand.u32 %s408, 1
          %s3296 = smul.addr %s3295, 16
          %s3297 = scalar_lea.vmem [#allocation28], %s3296
          %3298 = dma.done %s3294, 256
        $region164: #{hyper_cond_decoder.1} parent=159 // pred_fallthru
          _
        // Predicated region
        $region165: #{hyper_cond_decoder.1} parent=159 // pred_check
          %p3299 = pneg %p449
        $region166: #{hyper_cond_decoder.1} parent=159 // pred_check_branch
          %3301 = sbr.rel (%p3299) target = $region168
        $region167: #{hyper_cond_decoder.1} parent=159 // pred_region
          %s3302 = sand.u32 %s434, 1
          %s3303 = scalar_lea.sflag [#allocation30], %s3302
          %s3304 = sand.u32 %s434, 1
          %s3305 = smul.addr %s3304, 16
          %s3306 = scalar_lea.vmem [#allocation29], %s3305
          %3307 = dma.done %s3303, 256
        $region168: #{hyper_cond_decoder.1} parent=159 // pred_fallthru
          _
      $region160: #{hyper_cond_decoder.1} parent=5 // pred_fallthru
        _
    $region6: #{hyper_cond_decoder.1} parent=1 // loop_footer
      %s47 = sadd.s32 1, %s43
    $region7: #{hyper_cond_decoder.1} parent=1 // loop_footer_branch
      %42 = sbr.rel target = $region3
    $region8: #{hyper_cond_decoder.1} parent=1 // loop_exit
      _
    %3308 = vsyncpa [#allocation3], 1
    %s3309 = scalar_lea.sflag [#allocation3], 1
    %3310 = vsyncpa %s3309, 1
    %3311 = vsyncpa [#allocation6], 1
    %s3312 = scalar_lea.sflag [#allocation6], 1
    %3313 = vsyncpa %s3312, 1
    %3314 = vsyncpa [#allocation9], 1
    %3315 = vsyncpa [#allocation12], 1
    %3316 = vsyncpa [#allocation15], 1
    %3317 = vsyncpa [#allocation18], 1
    %3318 = vsyncpa [#allocation21], 1
    %3319 = vsyncpa [#allocation24], 1
    %3320 = vsyncpa [#allocation27], 1
    %3321 = vsyncpa [#allocation4], 1
    %s3322 = scalar_lea.sflag [#allocation4], 1
    %3323 = vsyncpa %s3322, 1
    %3324 = vsyncpa [#allocation30], 1
    %s3325 = scalar_lea.sflag [#allocation30], 1
    %3326 = vsyncpa %s3325, 1

</llo_original>
